<compile_context>
chip_gen: v6e
topology: v6e:2x2x1
jax: 0.10.0
libtpu: 0.0.40
codegen_flags: <defaults>
</compile_context>

<pallas_src>
import math
import jax
import jax.numpy as jnp
from jax.experimental import pallas as pl
from jax.experimental.pallas import tpu as pltpu

# ---------------- config (small, consistent with the module) ----------------
B = 2            # batch
S = 8            # sequence length
H = 32           # hidden_size
NUM_HEADS = 4
HEAD_DIM = H // NUM_HEADS
MLP_DIM = 64
NUM_LAYERS = 2
EPS = 1e-6

_INV_SQRT2 = 1.0 / math.sqrt(2.0)
_ATTN_SCALE = 1.0 / math.sqrt(HEAD_DIM)


# ------------------------------ in-kernel helpers -----------------------------
def _layernorm(x, gamma, beta):
    # x: (S, H), gamma/beta: (1, H).  nn.LayerNorm(eps=1e-6) semantics
    # (biased variance over the last dim).
    mean = jnp.mean(x, axis=-1, keepdims=True)
    var = jnp.mean((x - mean) ** 2, axis=-1, keepdims=True)
    inv = jax.lax.rsqrt(var + EPS)
    return (x - mean) * inv * gamma + beta


def _gelu_exact(x):
    # torch.nn.functional.gelu default = exact erf-based GELU.
    return 0.5 * x * (1.0 + jax.lax.erf(x * _INV_SQRT2))


# ------------------------------ fused encoder kernel --------------------------
def encoder_kernel(x_ref, wqkv_ref, bqkv_ref, wo_ref, w1_ref, b1_ref,
                   w2_ref, vec_ref, encln_ref, o_ref):
    # x_ref:    (1, S, H)        one sample per grid step
    # wqkv_ref: (L, H, 3H)       fused [Wq | Wk | Wv]
    # bqkv_ref: (L, 1, 3H)
    # wo_ref:   (L, H, H)
    # w1_ref:   (L, H, MLP_DIM)
    # b1_ref:   (L, 1, MLP_DIM)
    # w2_ref:   (L, MLP_DIM, H)
    # vec_ref:  (L, 6, H)        rows = [ln1_g, ln1_b, b_o, ln2_g, ln2_b, b_fc2]
    # encln_ref:(2, H)           rows = [gamma, beta] of final encoder LayerNorm
    x = x_ref[0]                                    # (S, H)

    for l in range(NUM_LAYERS):                     # static unrolled layer loop
        vecs = vec_ref[l]                           # (6, H)
        ln1g, ln1b = vecs[0:1, :], vecs[1:2, :]
        b_o = vecs[2:3, :]
        ln2g, ln2b = vecs[3:4, :], vecs[4:5, :]
        b_fc2 = vecs[5:6, :]

        # ---- attention sub-block (pre-LN) ----
        h = _layernorm(x, ln1g, ln1b)
        qkv = jnp.dot(h, wqkv_ref[l],
                      preferred_element_type=jnp.float32) + bqkv_ref[l]   # (S, 3H)

        wo_l = wo_ref[l]                            # (H, H)
        attn = jnp.zeros((S, H), jnp.float32)
        for hd in range(NUM_HEADS):                 # static loop over heads
            lo = hd * HEAD_DIM
            qh = qkv[:, lo:lo + HEAD_DIM]           # (S, hd)
            kh = qkv[:, H + lo:H + lo + HEAD_DIM]
            vh = qkv[:, 2 * H + lo:2 * H + lo + HEAD_DIM]
            s = jnp.dot(qh, kh.T, preferred_element_type=jnp.float32) * _ATTN_SCALE
            s = s - jnp.max(s, axis=-1, keepdims=True)
            p = jnp.exp(s)
            p = p / jnp.sum(p, axis=-1, keepdims=True)
            ctx = jnp.dot(p, vh, preferred_element_type=jnp.float32)       # (S, hd)
            # fold head context straight into the output projection:
            #   ctx_full @ Wo == sum_h ctx_h @ Wo[h*hd:(h+1)*hd, :]
            attn = attn + jnp.dot(ctx, wo_l[lo:lo + HEAD_DIM, :],
                                  preferred_element_type=jnp.float32)
        x = x + attn + b_o                          # residual (+ out-proj bias)

        # ---- MLP sub-block (pre-LN) ----
        h2 = _layernorm(x, ln2g, ln2b)
        m = jnp.dot(h2, w1_ref[l], preferred_element_type=jnp.float32) + b1_ref[l]
        m = _gelu_exact(m)
        m = jnp.dot(m, w2_ref[l], preferred_element_type=jnp.float32) + b_fc2
        x = x + m                                   # residual

    # ---- final encoder LayerNorm ----
    encln = encln_ref[...]                          # (2, H)
    o_ref[0] = _layernorm(x, encln[0:1, :], encln[1:2, :])


# ------------------------------ wrappers --------------------------------------
def _rep_spec(a):
    # full-array block replicated across the batch grid (fetched once)
    zeros = (0,) * a.ndim
    return pl.BlockSpec(a.shape, lambda b, z=zeros: z)


@jax.jit
def encoder_forward(x, w_qkv, b_qkv, w_o, w_fc1, b_fc1, w_fc2, vec_h, enc_ln):
    params = (w_qkv, b_qkv, w_o, w_fc1, b_fc1, w_fc2, vec_h, enc_ln)
    in_specs = [pl.BlockSpec((1, S, H), lambda b: (b, 0, 0))] + \
               [_rep_spec(p) for p in params]
    return pl.pallas_call(
        encoder_kernel,
        out_shape=jax.ShapeDtypeStruct((B, S, H), jnp.float32),
        grid_spec=pltpu.PrefetchScalarGridSpec(
            num_scalar_prefetch=0,
            grid=(B,),
            in_specs=in_specs,
            out_specs=pl.BlockSpec((1, S, H), lambda b: (b, 0, 0)),
        ),
        compiler_params=pltpu.CompilerParams(
            dimension_semantics=("parallel",)),
    )(x, *params)


def pack_params(layer_params, enc_g, enc_b):
    """Stack per-layer params along a leading layer axis, packed into 8 blobs."""
    w_qkv = jnp.stack([jnp.concatenate([p["wq"], p["wk"], p["wv"]], axis=1)
                       for p in layer_params])                       # (L, H, 3H)
    b_qkv = jnp.stack([jnp.concatenate([p["bq"], p["bk"], p["bv"]], axis=1)
                       for p in layer_params])                       # (L, 1, 3H)
    w_o = jnp.stack([p["wo"] for p in layer_params])                 # (L, H, H)
    w_fc1 = jnp.stack([p["w1"] for p in layer_params])               # (L, H, MLP)
    b_fc1 = jnp.stack([p["b1"] for p in layer_params])               # (L, 1, MLP)
    w_fc2 = jnp.stack([p["w2"] for p in layer_params])               # (L, MLP, H)
    vec_h = jnp.stack([jnp.concatenate(
        [p["ln1g"], p["ln1b"], p["bo"], p["ln2g"], p["ln2b"], p["b2"]], axis=0)
        for p in layer_params])                                      # (L, 6, H)
    enc_ln = jnp.concatenate([enc_g, enc_b], axis=0)                 # (2, H)
    return w_qkv, b_qkv, w_o, w_fc1, b_fc1, w_fc2, vec_h, enc_ln


# -------------------------- pure-JAX reference --------------------------------
def _block_ref(x, p):
    def ln(z, g, b):
        mu = jnp.mean(z, -1, keepdims=True)
        var = jnp.mean((z - mu) ** 2, -1, keepdims=True)
        return (z - mu) / jnp.sqrt(var + EPS) * g + b

    h = ln(x, p["ln1g"], p["ln1b"])
    q = h @ p["wq"] + p["bq"]
    k = h @ p["wk"] + p["bk"]
    v = h @ p["wv"] + p["bv"]

    def split(z):  # (B,S,H) -> (B,nh,S,hd)
        return z.reshape(B, S, NUM_HEADS, HEAD_DIM).transpose(0, 2, 1, 3)

    qh, kh, vh = split(q), split(k), split(v)
    scores = jnp.einsum("bnsd,bntd->bnst", qh, kh) / math.sqrt(HEAD_DIM)
    probs = jax.nn.softmax(scores, axis=-1)
    ctx = jnp.einsum("bnst,bntd->bnsd", probs, vh)
    ctx = ctx.transpose(0, 2, 1, 3).reshape(B, S, H)
    x1 = x + (ctx @ p["wo"] + p["bo"])

    h2 = ln(x1, p["ln2g"], p["ln2b"])
    m = h2 @ p["w1"] + p["b1"]
    m = 0.5 * m * (1.0 + jax.lax.erf(m / jnp.sqrt(2.0)))
    m = m @ p["w2"] + p["b2"]
    return x1 + m


def encoder_ref(x, layer_params, g, b):
    for p in layer_params:
        x = _block_ref(x, p)
    mu = jnp.mean(x, -1, keepdims=True)
    var = jnp.mean((x - mu) ** 2, -1, keepdims=True)
    return (x - mu) / jnp.sqrt(var + EPS) * g + b


# ------------------------------ param init ------------------------------------
def init_params(key):
    layer_params = []
    for _ in range(NUM_LAYERS):
        ks = jax.random.split(key, 13)
        key = ks[0]
        p = {
            "ln1g": 1.0 + 0.01 * jax.random.normal(ks[1], (1, H), jnp.float32),
            "ln1b": 0.01 * jax.random.normal(ks[2], (1, H), jnp.float32),
            "wq": 0.05 * jax.random.normal(ks[3], (H, H), jnp.float32),
            "bq": 0.01 * jax.random.normal(ks[4], (1, H), jnp.float32),
            "wk": 0.05 * jax.random.normal(ks[5], (H, H), jnp.float32),
            "bk": 0.01 * jax.random.normal(ks[6], (1, H), jnp.float32),
            "wv": 0.05 * jax.random.normal(ks[7], (H, H), jnp.float32),
            "bv": 0.01 * jax.random.normal(ks[8], (1, H), jnp.float32),
            "wo": 0.05 * jax.random.normal(ks[9], (H, H), jnp.float32),
            "bo": 0.01 * jax.random.normal(ks[10], (1, H), jnp.float32),
            "ln2g": 1.0 + 0.01 * jax.random.normal(ks[11], (1, H), jnp.float32),
            "ln2b": 0.01 * jax.random.normal(ks[12], (1, H), jnp.float32),
        }
        k2 = jax.random.split(key, 5)
        key = k2[0]
        p["w1"] = 0.05 * jax.random.normal(k2[1], (H, MLP_DIM), jnp.float32)
        p["b1"] = 1e-6 * jax.random.normal(k2[2], (1, MLP_DIM), jnp.float32)
        p["w2"] = 0.05 * jax.random.normal(k2[3], (MLP_DIM, H), jnp.float32)
        p["b2"] = 1e-6 * jax.random.normal(k2[4], (1, H), jnp.float32)
        layer_params.append(p)
    kg, kb = jax.random.split(key)
    enc_g = 1.0 + 0.01 * jax.random.normal(kg, (1, H), jnp.float32)
    enc_b = 0.01 * jax.random.normal(kb, (1, H), jnp.float32)
    return layer_params, enc_g, enc_b


# ---------------------------------- main ---------------------------------------
if __name__ == "__main__":
    key = jax.random.PRNGKey(0)
    kx, kp = jax.random.split(key)
    x = jax.random.normal(kx, (B, S, H), jnp.float32)
    layer_params, enc_g, enc_b = init_params(kp)
    packed = pack_params(layer_params, enc_g, enc_b)

    out = encoder_forward(x, *packed)
    out = jax.block_until_ready(out)

    ref = encoder_ref(x, layer_params, enc_g, enc_b)
    assert out.shape == (B, S, H)
    assert jnp.allclose(out, ref, atol=1e-4, rtol=1e-4), "mismatch vs JAX reference"

    print("KERNEL_OK")
</pallas_src>

<mosaic_0001>
module attributes {stable_mosaic.version = 11 : i64} {
  func.func @encoder_kernel(%arg0: i32, %arg1: memref<1x8x32xf32, #tpu.memory_space<vmem>>, %arg2: memref<2x32x96xf32, #tpu.memory_space<vmem>>, %arg3: memref<2x1x96xf32, #tpu.memory_space<vmem>>, %arg4: memref<2x32x32xf32, #tpu.memory_space<vmem>>, %arg5: memref<2x32x64xf32, #tpu.memory_space<vmem>>, %arg6: memref<2x1x64xf32, #tpu.memory_space<vmem>>, %arg7: memref<2x64x32xf32, #tpu.memory_space<vmem>>, %arg8: memref<2x6x32xf32, #tpu.memory_space<vmem>>, %arg9: memref<2x32xf32, #tpu.memory_space<vmem>>, %arg10: memref<1x8x32xf32, #tpu.memory_space<vmem>>) attributes {dimension_semantics = [#tpu.dimension_semantics<parallel>], iteration_bounds = array<i64: 2>, scalar_prefetch = 0 : i64, scratch_operands = 0 : i64, tpu.core_type = #tpu.core_type<tc>, window_params = [{transform_indices = @transform_0, window_bounds = array<i64: 1, 8, 32>}, {pipeline_mode = #tpu.pipeline_mode<synchronous>, transform_indices = @transform_1, window_bounds = array<i64: 2, 32, 96>}, {pipeline_mode = #tpu.pipeline_mode<synchronous>, transform_indices = @transform_2, window_bounds = array<i64: 2, 1, 96>}, {pipeline_mode = #tpu.pipeline_mode<synchronous>, transform_indices = @transform_3, window_bounds = array<i64: 2, 32, 32>}, {pipeline_mode = #tpu.pipeline_mode<synchronous>, transform_indices = @transform_4, window_bounds = array<i64: 2, 32, 64>}, {pipeline_mode = #tpu.pipeline_mode<synchronous>, transform_indices = @transform_5, window_bounds = array<i64: 2, 1, 64>}, {pipeline_mode = #tpu.pipeline_mode<synchronous>, transform_indices = @transform_6, window_bounds = array<i64: 2, 64, 32>}, {pipeline_mode = #tpu.pipeline_mode<synchronous>, transform_indices = @transform_7, window_bounds = array<i64: 2, 6, 32>}, {pipeline_mode = #tpu.pipeline_mode<synchronous>, transform_indices = @transform_8, window_bounds = array<i64: 2, 32>}, {transform_indices = @transform_9, window_bounds = array<i64: 1, 8, 32>}]} {
    %c0 = arith.constant 0 : index
    %c0_0 = arith.constant 0 : index
    %c0_1 = arith.constant 0 : index
    %0 = vector.load %arg1[%c0, %c0_0, %c0_1] : memref<1x8x32xf32, #tpu.memory_space<vmem>>, vector<1x8x32xf32>
    %1 = vector.shape_cast %0 : vector<1x8x32xf32> to vector<8x32xf32>
    %c0_2 = arith.constant 0 : index
    %c0_3 = arith.constant 0 : index
    %c0_4 = arith.constant 0 : index
    %2 = vector.load %arg8[%c0_2, %c0_3, %c0_4] : memref<2x6x32xf32, #tpu.memory_space<vmem>>, vector<1x6x32xf32>
    %3 = vector.shape_cast %2 : vector<1x6x32xf32> to vector<6x32xf32>
    %4 = vector.extract_strided_slice %3 {offsets = [0, 0], sizes = [1, 32], strides = [1, 1]} : vector<6x32xf32> to vector<1x32xf32>
    %5 = vector.extract_strided_slice %3 {offsets = [1, 0], sizes = [1, 32], strides = [1, 1]} : vector<6x32xf32> to vector<1x32xf32>
    %6 = vector.extract_strided_slice %3 {offsets = [2, 0], sizes = [1, 32], strides = [1, 1]} : vector<6x32xf32> to vector<1x32xf32>
    %7 = vector.extract_strided_slice %3 {offsets = [3, 0], sizes = [1, 32], strides = [1, 1]} : vector<6x32xf32> to vector<1x32xf32>
    %8 = vector.extract_strided_slice %3 {offsets = [4, 0], sizes = [1, 32], strides = [1, 1]} : vector<6x32xf32> to vector<1x32xf32>
    %9 = vector.extract_strided_slice %3 {offsets = [5, 0], sizes = [1, 32], strides = [1, 1]} : vector<6x32xf32> to vector<1x32xf32>
    %cst = arith.constant dense<0.000000e+00> : vector<8xf32>
    %10 = vector.multi_reduction <add>, %1, %cst [1] : vector<8x32xf32> to vector<8xf32>
    %11 = vector.shape_cast %10 : vector<8xf32> to vector<8x1xf32>
    %cst_5 = arith.constant 3.200000e+01 : f32
    %12 = vector.broadcast %cst_5 : f32 to vector<8x1xf32>
    %13 = arith.divf %11, %12 : vector<8x1xf32>
    %14 = vector.broadcast %13 : vector<8x1xf32> to vector<8x32xf32>
    %15 = arith.subf %1, %14 : vector<8x32xf32>
    %16 = arith.mulf %15, %15 : vector<8x32xf32>
    %cst_6 = arith.constant dense<0.000000e+00> : vector<8xf32>
    %17 = vector.multi_reduction <add>, %16, %cst_6 [1] : vector<8x32xf32> to vector<8xf32>
    %18 = vector.shape_cast %17 : vector<8xf32> to vector<8x1xf32>
    %cst_7 = arith.constant 3.200000e+01 : f32
    %19 = vector.broadcast %cst_7 : f32 to vector<8x1xf32>
    %20 = arith.divf %18, %19 : vector<8x1xf32>
    %cst_8 = arith.constant 9.99999997E-7 : f32
    %21 = vector.broadcast %cst_8 : f32 to vector<8x1xf32>
    %22 = arith.addf %20, %21 : vector<8x1xf32>
    %23 = math.rsqrt %22 : vector<8x1xf32>
    %24 = vector.broadcast %13 : vector<8x1xf32> to vector<8x32xf32>
    %25 = arith.subf %1, %24 : vector<8x32xf32>
    %26 = vector.broadcast %23 : vector<8x1xf32> to vector<8x32xf32>
    %27 = arith.mulf %25, %26 : vector<8x32xf32>
    %28 = vector.broadcast %4 : vector<1x32xf32> to vector<8x32xf32>
    %29 = arith.mulf %27, %28 : vector<8x32xf32>
    %30 = vector.broadcast %5 : vector<1x32xf32> to vector<8x32xf32>
    %31 = arith.addf %29, %30 : vector<8x32xf32>
    %c0_9 = arith.constant 0 : index
    %c0_10 = arith.constant 0 : index
    %c0_11 = arith.constant 0 : index
    %32 = vector.load %arg2[%c0_9, %c0_10, %c0_11] : memref<2x32x96xf32, #tpu.memory_space<vmem>>, vector<1x32x96xf32>
    %33 = vector.shape_cast %32 : vector<1x32x96xf32> to vector<32x96xf32>
    %cst_12 = arith.constant dense<0.000000e+00> : vector<8x96xf32>
    %34 = tpu.matmul %31, %33, %cst_12 {dimension_numbers = #tpu.dot_dimension_numbers<[1], [0], [0], [1], [0, 0, 1, 1], [], []>} : vector<8x32xf32>, vector<32x96xf32>, vector<8x96xf32> -> vector<8x96xf32>
    %c0_13 = arith.constant 0 : index
    %c0_14 = arith.constant 0 : index
    %c0_15 = arith.constant 0 : index
    %35 = vector.load %arg3[%c0_13, %c0_14, %c0_15] : memref<2x1x96xf32, #tpu.memory_space<vmem>>, vector<1x1x96xf32>
    %36 = vector.shape_cast %35 : vector<1x1x96xf32> to vector<1x96xf32>
    %37 = vector.broadcast %36 : vector<1x96xf32> to vector<8x96xf32>
    %38 = arith.addf %34, %37 : vector<8x96xf32>
    %c0_16 = arith.constant 0 : index
    %c0_17 = arith.constant 0 : index
    %c0_18 = arith.constant 0 : index
    %39 = vector.load %arg4[%c0_16, %c0_17, %c0_18] : memref<2x32x32xf32, #tpu.memory_space<vmem>>, vector<1x32x32xf32>
    %40 = vector.shape_cast %39 : vector<1x32x32xf32> to vector<32x32xf32>
    %cst_19 = arith.constant 0.000000e+00 : f32
    %41 = vector.broadcast %cst_19 : f32 to vector<8x32xf32>
    %42 = vector.extract_strided_slice %38 {offsets = [0, 0], sizes = [8, 8], strides = [1, 1]} : vector<8x96xf32> to vector<8x8xf32>
    %43 = vector.extract_strided_slice %38 {offsets = [0, 32], sizes = [8, 8], strides = [1, 1]} : vector<8x96xf32> to vector<8x8xf32>
    %44 = vector.extract_strided_slice %38 {offsets = [0, 64], sizes = [8, 8], strides = [1, 1]} : vector<8x96xf32> to vector<8x8xf32>
    %45 = tpu.transpose %43, [1, 0] : vector<8x8xf32> -> vector<8x8xf32>
    %cst_20 = arith.constant dense<0.000000e+00> : vector<8x8xf32>
    %46 = tpu.matmul %42, %45, %cst_20 {dimension_numbers = #tpu.dot_dimension_numbers<[1], [0], [0], [1], [0, 0, 1, 1], [], []>} : vector<8x8xf32>, vector<8x8xf32>, vector<8x8xf32> -> vector<8x8xf32>
    %cst_21 = arith.constant 0.353553385 : f32
    %47 = vector.broadcast %cst_21 : f32 to vector<8x8xf32>
    %48 = arith.mulf %46, %47 : vector<8x8xf32>
    %cst_22 = arith.constant dense<0xFF800000> : vector<8xf32>
    %49 = vector.multi_reduction <maximumf>, %48, %cst_22 [1] : vector<8x8xf32> to vector<8xf32>
    %50 = vector.shape_cast %49 : vector<8xf32> to vector<8x1xf32>
    %51 = vector.broadcast %50 : vector<8x1xf32> to vector<8x8xf32>
    %52 = arith.subf %48, %51 : vector<8x8xf32>
    %53 = math.exp %52 : vector<8x8xf32>
    %cst_23 = arith.constant dense<0.000000e+00> : vector<8xf32>
    %54 = vector.multi_reduction <add>, %53, %cst_23 [1] : vector<8x8xf32> to vector<8xf32>
    %55 = vector.shape_cast %54 : vector<8xf32> to vector<8x1xf32>
    %56 = vector.broadcast %55 : vector<8x1xf32> to vector<8x8xf32>
    %57 = arith.divf %53, %56 : vector<8x8xf32>
    %cst_24 = arith.constant dense<0.000000e+00> : vector<8x8xf32>
    %58 = tpu.matmul %57, %44, %cst_24 {dimension_numbers = #tpu.dot_dimension_numbers<[1], [0], [0], [1], [0, 0, 1, 1], [], []>} : vector<8x8xf32>, vector<8x8xf32>, vector<8x8xf32> -> vector<8x8xf32>
    %59 = vector.extract_strided_slice %40 {offsets = [0, 0], sizes = [8, 32], strides = [1, 1]} : vector<32x32xf32> to vector<8x32xf32>
    %cst_25 = arith.constant dense<0.000000e+00> : vector<8x32xf32>
    %60 = tpu.matmul %58, %59, %cst_25 {dimension_numbers = #tpu.dot_dimension_numbers<[1], [0], [0], [1], [0, 0, 1, 1], [], []>} : vector<8x8xf32>, vector<8x32xf32>, vector<8x32xf32> -> vector<8x32xf32>
    %61 = arith.addf %41, %60 : vector<8x32xf32>
    %62 = vector.extract_strided_slice %38 {offsets = [0, 8], sizes = [8, 8], strides = [1, 1]} : vector<8x96xf32> to vector<8x8xf32>
    %63 = vector.extract_strided_slice %38 {offsets = [0, 40], sizes = [8, 8], strides = [1, 1]} : vector<8x96xf32> to vector<8x8xf32>
    %64 = vector.extract_strided_slice %38 {offsets = [0, 72], sizes = [8, 8], strides = [1, 1]} : vector<8x96xf32> to vector<8x8xf32>
    %65 = tpu.transpose %63, [1, 0] : vector<8x8xf32> -> vector<8x8xf32>
    %cst_26 = arith.constant dense<0.000000e+00> : vector<8x8xf32>
    %66 = tpu.matmul %62, %65, %cst_26 {dimension_numbers = #tpu.dot_dimension_numbers<[1], [0], [0], [1], [0, 0, 1, 1], [], []>} : vector<8x8xf32>, vector<8x8xf32>, vector<8x8xf32> -> vector<8x8xf32>
    %cst_27 = arith.constant 0.353553385 : f32
    %67 = vector.broadcast %cst_27 : f32 to vector<8x8xf32>
    %68 = arith.mulf %66, %67 : vector<8x8xf32>
    %cst_28 = arith.constant dense<0xFF800000> : vector<8xf32>
    %69 = vector.multi_reduction <maximumf>, %68, %cst_28 [1] : vector<8x8xf32> to vector<8xf32>
    %70 = vector.shape_cast %69 : vector<8xf32> to vector<8x1xf32>
    %71 = vector.broadcast %70 : vector<8x1xf32> to vector<8x8xf32>
    %72 = arith.subf %68, %71 : vector<8x8xf32>
    %73 = math.exp %72 : vector<8x8xf32>
    %cst_29 = arith.constant dense<0.000000e+00> : vector<8xf32>
    %74 = vector.multi_reduction <add>, %73, %cst_29 [1] : vector<8x8xf32> to vector<8xf32>
    %75 = vector.shape_cast %74 : vector<8xf32> to vector<8x1xf32>
    %76 = vector.broadcast %75 : vector<8x1xf32> to vector<8x8xf32>
    %77 = arith.divf %73, %76 : vector<8x8xf32>
    %cst_30 = arith.constant dense<0.000000e+00> : vector<8x8xf32>
    %78 = tpu.matmul %77, %64, %cst_30 {dimension_numbers = #tpu.dot_dimension_numbers<[1], [0], [0], [1], [0, 0, 1, 1], [], []>} : vector<8x8xf32>, vector<8x8xf32>, vector<8x8xf32> -> vector<8x8xf32>
    %79 = vector.extract_strided_slice %40 {offsets = [8, 0], sizes = [8, 32], strides = [1, 1]} : vector<32x32xf32> to vector<8x32xf32>
    %cst_31 = arith.constant dense<0.000000e+00> : vector<8x32xf32>
    %80 = tpu.matmul %78, %79, %cst_31 {dimension_numbers = #tpu.dot_dimension_numbers<[1], [0], [0], [1], [0, 0, 1, 1], [], []>} : vector<8x8xf32>, vector<8x32xf32>, vector<8x32xf32> -> vector<8x32xf32>
    %81 = arith.addf %61, %80 : vector<8x32xf32>
    %82 = vector.extract_strided_slice %38 {offsets = [0, 16], sizes = [8, 8], strides = [1, 1]} : vector<8x96xf32> to vector<8x8xf32>
    %83 = vector.extract_strided_slice %38 {offsets = [0, 48], sizes = [8, 8], strides = [1, 1]} : vector<8x96xf32> to vector<8x8xf32>
    %84 = vector.extract_strided_slice %38 {offsets = [0, 80], sizes = [8, 8], strides = [1, 1]} : vector<8x96xf32> to vector<8x8xf32>
    %85 = tpu.transpose %83, [1, 0] : vector<8x8xf32> -> vector<8x8xf32>
    %cst_32 = arith.constant dense<0.000000e+00> : vector<8x8xf32>
    %86 = tpu.matmul %82, %85, %cst_32 {dimension_numbers = #tpu.dot_dimension_numbers<[1], [0], [0], [1], [0, 0, 1, 1], [], []>} : vector<8x8xf32>, vector<8x8xf32>, vector<8x8xf32> -> vector<8x8xf32>
    %cst_33 = arith.constant 0.353553385 : f32
    %87 = vector.broadcast %cst_33 : f32 to vector<8x8xf32>
    %88 = arith.mulf %86, %87 : vector<8x8xf32>
    %cst_34 = arith.constant dense<0xFF800000> : vector<8xf32>
    %89 = vector.multi_reduction <maximumf>, %88, %cst_34 [1] : vector<8x8xf32> to vector<8xf32>
    %90 = vector.shape_cast %89 : vector<8xf32> to vector<8x1xf32>
    %91 = vector.broadcast %90 : vector<8x1xf32> to vector<8x8xf32>
    %92 = arith.subf %88, %91 : vector<8x8xf32>
    %93 = math.exp %92 : vector<8x8xf32>
    %cst_35 = arith.constant dense<0.000000e+00> : vector<8xf32>
    %94 = vector.multi_reduction <add>, %93, %cst_35 [1] : vector<8x8xf32> to vector<8xf32>
    %95 = vector.shape_cast %94 : vector<8xf32> to vector<8x1xf32>
    %96 = vector.broadcast %95 : vector<8x1xf32> to vector<8x8xf32>
    %97 = arith.divf %93, %96 : vector<8x8xf32>
    %cst_36 = arith.constant dense<0.000000e+00> : vector<8x8xf32>
    %98 = tpu.matmul %97, %84, %cst_36 {dimension_numbers = #tpu.dot_dimension_numbers<[1], [0], [0], [1], [0, 0, 1, 1], [], []>} : vector<8x8xf32>, vector<8x8xf32>, vector<8x8xf32> -> vector<8x8xf32>
    %99 = vector.extract_strided_slice %40 {offsets = [16, 0], sizes = [8, 32], strides = [1, 1]} : vector<32x32xf32> to vector<8x32xf32>
    %cst_37 = arith.constant dense<0.000000e+00> : vector<8x32xf32>
    %100 = tpu.matmul %98, %99, %cst_37 {dimension_numbers = #tpu.dot_dimension_numbers<[1], [0], [0], [1], [0, 0, 1, 1], [], []>} : vector<8x8xf32>, vector<8x32xf32>, vector<8x32xf32> -> vector<8x32xf32>
    %101 = arith.addf %81, %100 : vector<8x32xf32>
    %102 = vector.extract_strided_slice %38 {offsets = [0, 24], sizes = [8, 8], strides = [1, 1]} : vector<8x96xf32> to vector<8x8xf32>
    %103 = vector.extract_strided_slice %38 {offsets = [0, 56], sizes = [8, 8], strides = [1, 1]} : vector<8x96xf32> to vector<8x8xf32>
    %104 = vector.extract_strided_slice %38 {offsets = [0, 88], sizes = [8, 8], strides = [1, 1]} : vector<8x96xf32> to vector<8x8xf32>
    %105 = tpu.transpose %103, [1, 0] : vector<8x8xf32> -> vector<8x8xf32>
    %cst_38 = arith.constant dense<0.000000e+00> : vector<8x8xf32>
    %106 = tpu.matmul %102, %105, %cst_38 {dimension_numbers = #tpu.dot_dimension_numbers<[1], [0], [0], [1], [0, 0, 1, 1], [], []>} : vector<8x8xf32>, vector<8x8xf32>, vector<8x8xf32> -> vector<8x8xf32>
    %cst_39 = arith.constant 0.353553385 : f32
    %107 = vector.broadcast %cst_39 : f32 to vector<8x8xf32>
    %108 = arith.mulf %106, %107 : vector<8x8xf32>
    %cst_40 = arith.constant dense<0xFF800000> : vector<8xf32>
    %109 = vector.multi_reduction <maximumf>, %108, %cst_40 [1] : vector<8x8xf32> to vector<8xf32>
    %110 = vector.shape_cast %109 : vector<8xf32> to vector<8x1xf32>
    %111 = vector.broadcast %110 : vector<8x1xf32> to vector<8x8xf32>
    %112 = arith.subf %108, %111 : vector<8x8xf32>
    %113 = math.exp %112 : vector<8x8xf32>
    %cst_41 = arith.constant dense<0.000000e+00> : vector<8xf32>
    %114 = vector.multi_reduction <add>, %113, %cst_41 [1] : vector<8x8xf32> to vector<8xf32>
    %115 = vector.shape_cast %114 : vector<8xf32> to vector<8x1xf32>
    %116 = vector.broadcast %115 : vector<8x1xf32> to vector<8x8xf32>
    %117 = arith.divf %113, %116 : vector<8x8xf32>
    %cst_42 = arith.constant dense<0.000000e+00> : vector<8x8xf32>
    %118 = tpu.matmul %117, %104, %cst_42 {dimension_numbers = #tpu.dot_dimension_numbers<[1], [0], [0], [1], [0, 0, 1, 1], [], []>} : vector<8x8xf32>, vector<8x8xf32>, vector<8x8xf32> -> vector<8x8xf32>
    %119 = vector.extract_strided_slice %40 {offsets = [24, 0], sizes = [8, 32], strides = [1, 1]} : vector<32x32xf32> to vector<8x32xf32>
    %cst_43 = arith.constant dense<0.000000e+00> : vector<8x32xf32>
    %120 = tpu.matmul %118, %119, %cst_43 {dimension_numbers = #tpu.dot_dimension_numbers<[1], [0], [0], [1], [0, 0, 1, 1], [], []>} : vector<8x8xf32>, vector<8x32xf32>, vector<8x32xf32> -> vector<8x32xf32>
    %121 = arith.addf %101, %120 : vector<8x32xf32>
    %122 = arith.addf %1, %121 : vector<8x32xf32>
    %123 = vector.broadcast %6 : vector<1x32xf32> to vector<8x32xf32>
    %124 = arith.addf %122, %123 : vector<8x32xf32>
    %cst_44 = arith.constant dense<0.000000e+00> : vector<8xf32>
    %125 = vector.multi_reduction <add>, %124, %cst_44 [1] : vector<8x32xf32> to vector<8xf32>
    %126 = vector.shape_cast %125 : vector<8xf32> to vector<8x1xf32>
    %cst_45 = arith.constant 3.200000e+01 : f32
    %127 = vector.broadcast %cst_45 : f32 to vector<8x1xf32>
    %128 = arith.divf %126, %127 : vector<8x1xf32>
    %129 = vector.broadcast %128 : vector<8x1xf32> to vector<8x32xf32>
    %130 = arith.subf %124, %129 : vector<8x32xf32>
    %131 = arith.mulf %130, %130 : vector<8x32xf32>
    %cst_46 = arith.constant dense<0.000000e+00> : vector<8xf32>
    %132 = vector.multi_reduction <add>, %131, %cst_46 [1] : vector<8x32xf32> to vector<8xf32>
    %133 = vector.shape_cast %132 : vector<8xf32> to vector<8x1xf32>
    %cst_47 = arith.constant 3.200000e+01 : f32
    %134 = vector.broadcast %cst_47 : f32 to vector<8x1xf32>
    %135 = arith.divf %133, %134 : vector<8x1xf32>
    %cst_48 = arith.constant 9.99999997E-7 : f32
    %136 = vector.broadcast %cst_48 : f32 to vector<8x1xf32>
    %137 = arith.addf %135, %136 : vector<8x1xf32>
    %138 = math.rsqrt %137 : vector<8x1xf32>
    %139 = vector.broadcast %128 : vector<8x1xf32> to vector<8x32xf32>
    %140 = arith.subf %124, %139 : vector<8x32xf32>
    %141 = vector.broadcast %138 : vector<8x1xf32> to vector<8x32xf32>
    %142 = arith.mulf %140, %141 : vector<8x32xf32>
    %143 = vector.broadcast %7 : vector<1x32xf32> to vector<8x32xf32>
    %144 = arith.mulf %142, %143 : vector<8x32xf32>
    %145 = vector.broadcast %8 : vector<1x32xf32> to vector<8x32xf32>
    %146 = arith.addf %144, %145 : vector<8x32xf32>
    %c0_49 = arith.constant 0 : index
    %c0_50 = arith.constant 0 : index
    %c0_51 = arith.constant 0 : index
    %147 = vector.load %arg5[%c0_49, %c0_50, %c0_51] : memref<2x32x64xf32, #tpu.memory_space<vmem>>, vector<1x32x64xf32>
    %148 = vector.shape_cast %147 : vector<1x32x64xf32> to vector<32x64xf32>
    %cst_52 = arith.constant dense<0.000000e+00> : vector<8x64xf32>
    %149 = tpu.matmul %146, %148, %cst_52 {dimension_numbers = #tpu.dot_dimension_numbers<[1], [0], [0], [1], [0, 0, 1, 1], [], []>} : vector<8x32xf32>, vector<32x64xf32>, vector<8x64xf32> -> vector<8x64xf32>
    %c0_53 = arith.constant 0 : index
    %c0_54 = arith.constant 0 : index
    %c0_55 = arith.constant 0 : index
    %150 = vector.load %arg6[%c0_53, %c0_54, %c0_55] : memref<2x1x64xf32, #tpu.memory_space<vmem>>, vector<1x1x64xf32>
    %151 = vector.shape_cast %150 : vector<1x1x64xf32> to vector<1x64xf32>
    %152 = vector.broadcast %151 : vector<1x64xf32> to vector<8x64xf32>
    %153 = arith.addf %149, %152 : vector<8x64xf32>
    %cst_56 = arith.constant 5.000000e-01 : f32
    %154 = vector.broadcast %cst_56 : f32 to vector<8x64xf32>
    %155 = arith.mulf %154, %153 : vector<8x64xf32>
    %cst_57 = arith.constant 0.707106769 : f32
    %156 = vector.broadcast %cst_57 : f32 to vector<8x64xf32>
    %157 = arith.mulf %153, %156 : vector<8x64xf32>
    %158 = math.erf %157 : vector<8x64xf32>
    %cst_58 = arith.constant 1.000000e+00 : f32
    %159 = vector.broadcast %cst_58 : f32 to vector<8x64xf32>
    %160 = arith.addf %159, %158 : vector<8x64xf32>
    %161 = arith.mulf %155, %160 : vector<8x64xf32>
    %c0_59 = arith.constant 0 : index
    %c0_60 = arith.constant 0 : index
    %c0_61 = arith.constant 0 : index
    %162 = vector.load %arg7[%c0_59, %c0_60, %c0_61] : memref<2x64x32xf32, #tpu.memory_space<vmem>>, vector<1x64x32xf32>
    %163 = vector.shape_cast %162 : vector<1x64x32xf32> to vector<64x32xf32>
    %cst_62 = arith.constant dense<0.000000e+00> : vector<8x32xf32>
    %164 = tpu.matmul %161, %163, %cst_62 {dimension_numbers = #tpu.dot_dimension_numbers<[1], [0], [0], [1], [0, 0, 1, 1], [], []>} : vector<8x64xf32>, vector<64x32xf32>, vector<8x32xf32> -> vector<8x32xf32>
    %165 = vector.broadcast %9 : vector<1x32xf32> to vector<8x32xf32>
    %166 = arith.addf %164, %165 : vector<8x32xf32>
    %167 = arith.addf %124, %166 : vector<8x32xf32>
    %c1 = arith.constant 1 : index
    %c0_63 = arith.constant 0 : index
    %c0_64 = arith.constant 0 : index
    %168 = vector.load %arg8[%c1, %c0_63, %c0_64] : memref<2x6x32xf32, #tpu.memory_space<vmem>>, vector<1x6x32xf32>
    %169 = vector.shape_cast %168 : vector<1x6x32xf32> to vector<6x32xf32>
    %170 = vector.extract_strided_slice %169 {offsets = [0, 0], sizes = [1, 32], strides = [1, 1]} : vector<6x32xf32> to vector<1x32xf32>
    %171 = vector.extract_strided_slice %169 {offsets = [1, 0], sizes = [1, 32], strides = [1, 1]} : vector<6x32xf32> to vector<1x32xf32>
    %172 = vector.extract_strided_slice %169 {offsets = [2, 0], sizes = [1, 32], strides = [1, 1]} : vector<6x32xf32> to vector<1x32xf32>
    %173 = vector.extract_strided_slice %169 {offsets = [3, 0], sizes = [1, 32], strides = [1, 1]} : vector<6x32xf32> to vector<1x32xf32>
    %174 = vector.extract_strided_slice %169 {offsets = [4, 0], sizes = [1, 32], strides = [1, 1]} : vector<6x32xf32> to vector<1x32xf32>
    %175 = vector.extract_strided_slice %169 {offsets = [5, 0], sizes = [1, 32], strides = [1, 1]} : vector<6x32xf32> to vector<1x32xf32>
    %cst_65 = arith.constant dense<0.000000e+00> : vector<8xf32>
    %176 = vector.multi_reduction <add>, %167, %cst_65 [1] : vector<8x32xf32> to vector<8xf32>
    %177 = vector.shape_cast %176 : vector<8xf32> to vector<8x1xf32>
    %cst_66 = arith.constant 3.200000e+01 : f32
    %178 = vector.broadcast %cst_66 : f32 to vector<8x1xf32>
    %179 = arith.divf %177, %178 : vector<8x1xf32>
    %180 = vector.broadcast %179 : vector<8x1xf32> to vector<8x32xf32>
    %181 = arith.subf %167, %180 : vector<8x32xf32>
    %182 = arith.mulf %181, %181 : vector<8x32xf32>
    %cst_67 = arith.constant dense<0.000000e+00> : vector<8xf32>
    %183 = vector.multi_reduction <add>, %182, %cst_67 [1] : vector<8x32xf32> to vector<8xf32>
    %184 = vector.shape_cast %183 : vector<8xf32> to vector<8x1xf32>
    %cst_68 = arith.constant 3.200000e+01 : f32
    %185 = vector.broadcast %cst_68 : f32 to vector<8x1xf32>
    %186 = arith.divf %184, %185 : vector<8x1xf32>
    %cst_69 = arith.constant 9.99999997E-7 : f32
    %187 = vector.broadcast %cst_69 : f32 to vector<8x1xf32>
    %188 = arith.addf %186, %187 : vector<8x1xf32>
    %189 = math.rsqrt %188 : vector<8x1xf32>
    %190 = vector.broadcast %179 : vector<8x1xf32> to vector<8x32xf32>
    %191 = arith.subf %167, %190 : vector<8x32xf32>
    %192 = vector.broadcast %189 : vector<8x1xf32> to vector<8x32xf32>
    %193 = arith.mulf %191, %192 : vector<8x32xf32>
    %194 = vector.broadcast %170 : vector<1x32xf32> to vector<8x32xf32>
    %195 = arith.mulf %193, %194 : vector<8x32xf32>
    %196 = vector.broadcast %171 : vector<1x32xf32> to vector<8x32xf32>
    %197 = arith.addf %195, %196 : vector<8x32xf32>
    %c1_70 = arith.constant 1 : index
    %c0_71 = arith.constant 0 : index
    %c0_72 = arith.constant 0 : index
    %198 = vector.load %arg2[%c1_70, %c0_71, %c0_72] : memref<2x32x96xf32, #tpu.memory_space<vmem>>, vector<1x32x96xf32>
    %199 = vector.shape_cast %198 : vector<1x32x96xf32> to vector<32x96xf32>
    %cst_73 = arith.constant dense<0.000000e+00> : vector<8x96xf32>
    %200 = tpu.matmul %197, %199, %cst_73 {dimension_numbers = #tpu.dot_dimension_numbers<[1], [0], [0], [1], [0, 0, 1, 1], [], []>} : vector<8x32xf32>, vector<32x96xf32>, vector<8x96xf32> -> vector<8x96xf32>
    %c1_74 = arith.constant 1 : index
    %c0_75 = arith.constant 0 : index
    %c0_76 = arith.constant 0 : index
    %201 = vector.load %arg3[%c1_74, %c0_75, %c0_76] : memref<2x1x96xf32, #tpu.memory_space<vmem>>, vector<1x1x96xf32>
    %202 = vector.shape_cast %201 : vector<1x1x96xf32> to vector<1x96xf32>
    %203 = vector.broadcast %202 : vector<1x96xf32> to vector<8x96xf32>
    %204 = arith.addf %200, %203 : vector<8x96xf32>
    %c1_77 = arith.constant 1 : index
    %c0_78 = arith.constant 0 : index
    %c0_79 = arith.constant 0 : index
    %205 = vector.load %arg4[%c1_77, %c0_78, %c0_79] : memref<2x32x32xf32, #tpu.memory_space<vmem>>, vector<1x32x32xf32>
    %206 = vector.shape_cast %205 : vector<1x32x32xf32> to vector<32x32xf32>
    %cst_80 = arith.constant 0.000000e+00 : f32
    %207 = vector.broadcast %cst_80 : f32 to vector<8x32xf32>
    %208 = vector.extract_strided_slice %204 {offsets = [0, 0], sizes = [8, 8], strides = [1, 1]} : vector<8x96xf32> to vector<8x8xf32>
    %209 = vector.extract_strided_slice %204 {offsets = [0, 32], sizes = [8, 8], strides = [1, 1]} : vector<8x96xf32> to vector<8x8xf32>
    %210 = vector.extract_strided_slice %204 {offsets = [0, 64], sizes = [8, 8], strides = [1, 1]} : vector<8x96xf32> to vector<8x8xf32>
    %211 = tpu.transpose %209, [1, 0] : vector<8x8xf32> -> vector<8x8xf32>
    %cst_81 = arith.constant dense<0.000000e+00> : vector<8x8xf32>
    %212 = tpu.matmul %208, %211, %cst_81 {dimension_numbers = #tpu.dot_dimension_numbers<[1], [0], [0], [1], [0, 0, 1, 1], [], []>} : vector<8x8xf32>, vector<8x8xf32>, vector<8x8xf32> -> vector<8x8xf32>
    %cst_82 = arith.constant 0.353553385 : f32
    %213 = vector.broadcast %cst_82 : f32 to vector<8x8xf32>
    %214 = arith.mulf %212, %213 : vector<8x8xf32>
    %cst_83 = arith.constant dense<0xFF800000> : vector<8xf32>
    %215 = vector.multi_reduction <maximumf>, %214, %cst_83 [1] : vector<8x8xf32> to vector<8xf32>
    %216 = vector.shape_cast %215 : vector<8xf32> to vector<8x1xf32>
    %217 = vector.broadcast %216 : vector<8x1xf32> to vector<8x8xf32>
    %218 = arith.subf %214, %217 : vector<8x8xf32>
    %219 = math.exp %218 : vector<8x8xf32>
    %cst_84 = arith.constant dense<0.000000e+00> : vector<8xf32>
    %220 = vector.multi_reduction <add>, %219, %cst_84 [1] : vector<8x8xf32> to vector<8xf32>
    %221 = vector.shape_cast %220 : vector<8xf32> to vector<8x1xf32>
    %222 = vector.broadcast %221 : vector<8x1xf32> to vector<8x8xf32>
    %223 = arith.divf %219, %222 : vector<8x8xf32>
    %cst_85 = arith.constant dense<0.000000e+00> : vector<8x8xf32>
    %224 = tpu.matmul %223, %210, %cst_85 {dimension_numbers = #tpu.dot_dimension_numbers<[1], [0], [0], [1], [0, 0, 1, 1], [], []>} : vector<8x8xf32>, vector<8x8xf32>, vector<8x8xf32> -> vector<8x8xf32>
    %225 = vector.extract_strided_slice %206 {offsets = [0, 0], sizes = [8, 32], strides = [1, 1]} : vector<32x32xf32> to vector<8x32xf32>
    %cst_86 = arith.constant dense<0.000000e+00> : vector<8x32xf32>
    %226 = tpu.matmul %224, %225, %cst_86 {dimension_numbers = #tpu.dot_dimension_numbers<[1], [0], [0], [1], [0, 0, 1, 1], [], []>} : vector<8x8xf32>, vector<8x32xf32>, vector<8x32xf32> -> vector<8x32xf32>
    %227 = arith.addf %207, %226 : vector<8x32xf32>
    %228 = vector.extract_strided_slice %204 {offsets = [0, 8], sizes = [8, 8], strides = [1, 1]} : vector<8x96xf32> to vector<8x8xf32>
    %229 = vector.extract_strided_slice %204 {offsets = [0, 40], sizes = [8, 8], strides = [1, 1]} : vector<8x96xf32> to vector<8x8xf32>
    %230 = vector.extract_strided_slice %204 {offsets = [0, 72], sizes = [8, 8], strides = [1, 1]} : vector<8x96xf32> to vector<8x8xf32>
    %231 = tpu.transpose %229, [1, 0] : vector<8x8xf32> -> vector<8x8xf32>
    %cst_87 = arith.constant dense<0.000000e+00> : vector<8x8xf32>
    %232 = tpu.matmul %228, %231, %cst_87 {dimension_numbers = #tpu.dot_dimension_numbers<[1], [0], [0], [1], [0, 0, 1, 1], [], []>} : vector<8x8xf32>, vector<8x8xf32>, vector<8x8xf32> -> vector<8x8xf32>
    %cst_88 = arith.constant 0.353553385 : f32
    %233 = vector.broadcast %cst_88 : f32 to vector<8x8xf32>
    %234 = arith.mulf %232, %233 : vector<8x8xf32>
    %cst_89 = arith.constant dense<0xFF800000> : vector<8xf32>
    %235 = vector.multi_reduction <maximumf>, %234, %cst_89 [1] : vector<8x8xf32> to vector<8xf32>
    %236 = vector.shape_cast %235 : vector<8xf32> to vector<8x1xf32>
    %237 = vector.broadcast %236 : vector<8x1xf32> to vector<8x8xf32>
    %238 = arith.subf %234, %237 : vector<8x8xf32>
    %239 = math.exp %238 : vector<8x8xf32>
    %cst_90 = arith.constant dense<0.000000e+00> : vector<8xf32>
    %240 = vector.multi_reduction <add>, %239, %cst_90 [1] : vector<8x8xf32> to vector<8xf32>
    %241 = vector.shape_cast %240 : vector<8xf32> to vector<8x1xf32>
    %242 = vector.broadcast %241 : vector<8x1xf32> to vector<8x8xf32>
    %243 = arith.divf %239, %242 : vector<8x8xf32>
    %cst_91 = arith.constant dense<0.000000e+00> : vector<8x8xf32>
    %244 = tpu.matmul %243, %230, %cst_91 {dimension_numbers = #tpu.dot_dimension_numbers<[1], [0], [0], [1], [0, 0, 1, 1], [], []>} : vector<8x8xf32>, vector<8x8xf32>, vector<8x8xf32> -> vector<8x8xf32>
    %245 = vector.extract_strided_slice %206 {offsets = [8, 0], sizes = [8, 32], strides = [1, 1]} : vector<32x32xf32> to vector<8x32xf32>
    %cst_92 = arith.constant dense<0.000000e+00> : vector<8x32xf32>
    %246 = tpu.matmul %244, %245, %cst_92 {dimension_numbers = #tpu.dot_dimension_numbers<[1], [0], [0], [1], [0, 0, 1, 1], [], []>} : vector<8x8xf32>, vector<8x32xf32>, vector<8x32xf32> -> vector<8x32xf32>
    %247 = arith.addf %227, %246 : vector<8x32xf32>
    %248 = vector.extract_strided_slice %204 {offsets = [0, 16], sizes = [8, 8], strides = [1, 1]} : vector<8x96xf32> to vector<8x8xf32>
    %249 = vector.extract_strided_slice %204 {offsets = [0, 48], sizes = [8, 8], strides = [1, 1]} : vector<8x96xf32> to vector<8x8xf32>
    %250 = vector.extract_strided_slice %204 {offsets = [0, 80], sizes = [8, 8], strides = [1, 1]} : vector<8x96xf32> to vector<8x8xf32>
    %251 = tpu.transpose %249, [1, 0] : vector<8x8xf32> -> vector<8x8xf32>
    %cst_93 = arith.constant dense<0.000000e+00> : vector<8x8xf32>
    %252 = tpu.matmul %248, %251, %cst_93 {dimension_numbers = #tpu.dot_dimension_numbers<[1], [0], [0], [1], [0, 0, 1, 1], [], []>} : vector<8x8xf32>, vector<8x8xf32>, vector<8x8xf32> -> vector<8x8xf32>
    %cst_94 = arith.constant 0.353553385 : f32
    %253 = vector.broadcast %cst_94 : f32 to vector<8x8xf32>
    %254 = arith.mulf %252, %253 : vector<8x8xf32>
    %cst_95 = arith.constant dense<0xFF800000> : vector<8xf32>
    %255 = vector.multi_reduction <maximumf>, %254, %cst_95 [1] : vector<8x8xf32> to vector<8xf32>
    %256 = vector.shape_cast %255 : vector<8xf32> to vector<8x1xf32>
    %257 = vector.broadcast %256 : vector<8x1xf32> to vector<8x8xf32>
    %258 = arith.subf %254, %257 : vector<8x8xf32>
    %259 = math.exp %258 : vector<8x8xf32>
    %cst_96 = arith.constant dense<0.000000e+00> : vector<8xf32>
    %260 = vector.multi_reduction <add>, %259, %cst_96 [1] : vector<8x8xf32> to vector<8xf32>
    %261 = vector.shape_cast %260 : vector<8xf32> to vector<8x1xf32>
    %262 = vector.broadcast %261 : vector<8x1xf32> to vector<8x8xf32>
    %263 = arith.divf %259, %262 : vector<8x8xf32>
    %cst_97 = arith.constant dense<0.000000e+00> : vector<8x8xf32>
    %264 = tpu.matmul %263, %250, %cst_97 {dimension_numbers = #tpu.dot_dimension_numbers<[1], [0], [0], [1], [0, 0, 1, 1], [], []>} : vector<8x8xf32>, vector<8x8xf32>, vector<8x8xf32> -> vector<8x8xf32>
    %265 = vector.extract_strided_slice %206 {offsets = [16, 0], sizes = [8, 32], strides = [1, 1]} : vector<32x32xf32> to vector<8x32xf32>
    %cst_98 = arith.constant dense<0.000000e+00> : vector<8x32xf32>
    %266 = tpu.matmul %264, %265, %cst_98 {dimension_numbers = #tpu.dot_dimension_numbers<[1], [0], [0], [1], [0, 0, 1, 1], [], []>} : vector<8x8xf32>, vector<8x32xf32>, vector<8x32xf32> -> vector<8x32xf32>
    %267 = arith.addf %247, %266 : vector<8x32xf32>
    %268 = vector.extract_strided_slice %204 {offsets = [0, 24], sizes = [8, 8], strides = [1, 1]} : vector<8x96xf32> to vector<8x8xf32>
    %269 = vector.extract_strided_slice %204 {offsets = [0, 56], sizes = [8, 8], strides = [1, 1]} : vector<8x96xf32> to vector<8x8xf32>
    %270 = vector.extract_strided_slice %204 {offsets = [0, 88], sizes = [8, 8], strides = [1, 1]} : vector<8x96xf32> to vector<8x8xf32>
    %271 = tpu.transpose %269, [1, 0] : vector<8x8xf32> -> vector<8x8xf32>
    %cst_99 = arith.constant dense<0.000000e+00> : vector<8x8xf32>
    %272 = tpu.matmul %268, %271, %cst_99 {dimension_numbers = #tpu.dot_dimension_numbers<[1], [0], [0], [1], [0, 0, 1, 1], [], []>} : vector<8x8xf32>, vector<8x8xf32>, vector<8x8xf32> -> vector<8x8xf32>
    %cst_100 = arith.constant 0.353553385 : f32
    %273 = vector.broadcast %cst_100 : f32 to vector<8x8xf32>
    %274 = arith.mulf %272, %273 : vector<8x8xf32>
    %cst_101 = arith.constant dense<0xFF800000> : vector<8xf32>
    %275 = vector.multi_reduction <maximumf>, %274, %cst_101 [1] : vector<8x8xf32> to vector<8xf32>
    %276 = vector.shape_cast %275 : vector<8xf32> to vector<8x1xf32>
    %277 = vector.broadcast %276 : vector<8x1xf32> to vector<8x8xf32>
    %278 = arith.subf %274, %277 : vector<8x8xf32>
    %279 = math.exp %278 : vector<8x8xf32>
    %cst_102 = arith.constant dense<0.000000e+00> : vector<8xf32>
    %280 = vector.multi_reduction <add>, %279, %cst_102 [1] : vector<8x8xf32> to vector<8xf32>
    %281 = vector.shape_cast %280 : vector<8xf32> to vector<8x1xf32>
    %282 = vector.broadcast %281 : vector<8x1xf32> to vector<8x8xf32>
    %283 = arith.divf %279, %282 : vector<8x8xf32>
    %cst_103 = arith.constant dense<0.000000e+00> : vector<8x8xf32>
    %284 = tpu.matmul %283, %270, %cst_103 {dimension_numbers = #tpu.dot_dimension_numbers<[1], [0], [0], [1], [0, 0, 1, 1], [], []>} : vector<8x8xf32>, vector<8x8xf32>, vector<8x8xf32> -> vector<8x8xf32>
    %285 = vector.extract_strided_slice %206 {offsets = [24, 0], sizes = [8, 32], strides = [1, 1]} : vector<32x32xf32> to vector<8x32xf32>
    %cst_104 = arith.constant dense<0.000000e+00> : vector<8x32xf32>
    %286 = tpu.matmul %284, %285, %cst_104 {dimension_numbers = #tpu.dot_dimension_numbers<[1], [0], [0], [1], [0, 0, 1, 1], [], []>} : vector<8x8xf32>, vector<8x32xf32>, vector<8x32xf32> -> vector<8x32xf32>
    %287 = arith.addf %267, %286 : vector<8x32xf32>
    %288 = arith.addf %167, %287 : vector<8x32xf32>
    %289 = vector.broadcast %172 : vector<1x32xf32> to vector<8x32xf32>
    %290 = arith.addf %288, %289 : vector<8x32xf32>
    %cst_105 = arith.constant dense<0.000000e+00> : vector<8xf32>
    %291 = vector.multi_reduction <add>, %290, %cst_105 [1] : vector<8x32xf32> to vector<8xf32>
    %292 = vector.shape_cast %291 : vector<8xf32> to vector<8x1xf32>
    %cst_106 = arith.constant 3.200000e+01 : f32
    %293 = vector.broadcast %cst_106 : f32 to vector<8x1xf32>
    %294 = arith.divf %292, %293 : vector<8x1xf32>
    %295 = vector.broadcast %294 : vector<8x1xf32> to vector<8x32xf32>
    %296 = arith.subf %290, %295 : vector<8x32xf32>
    %297 = arith.mulf %296, %296 : vector<8x32xf32>
    %cst_107 = arith.constant dense<0.000000e+00> : vector<8xf32>
    %298 = vector.multi_reduction <add>, %297, %cst_107 [1] : vector<8x32xf32> to vector<8xf32>
    %299 = vector.shape_cast %298 : vector<8xf32> to vector<8x1xf32>
    %cst_108 = arith.constant 3.200000e+01 : f32
    %300 = vector.broadcast %cst_108 : f32 to vector<8x1xf32>
    %301 = arith.divf %299, %300 : vector<8x1xf32>
    %cst_109 = arith.constant 9.99999997E-7 : f32
    %302 = vector.broadcast %cst_109 : f32 to vector<8x1xf32>
    %303 = arith.addf %301, %302 : vector<8x1xf32>
    %304 = math.rsqrt %303 : vector<8x1xf32>
    %305 = vector.broadcast %294 : vector<8x1xf32> to vector<8x32xf32>
    %306 = arith.subf %290, %305 : vector<8x32xf32>
    %307 = vector.broadcast %304 : vector<8x1xf32> to vector<8x32xf32>
    %308 = arith.mulf %306, %307 : vector<8x32xf32>
    %309 = vector.broadcast %173 : vector<1x32xf32> to vector<8x32xf32>
    %310 = arith.mulf %308, %309 : vector<8x32xf32>
    %311 = vector.broadcast %174 : vector<1x32xf32> to vector<8x32xf32>
    %312 = arith.addf %310, %311 : vector<8x32xf32>
    %c1_110 = arith.constant 1 : index
    %c0_111 = arith.constant 0 : index
    %c0_112 = arith.constant 0 : index
    %313 = vector.load %arg5[%c1_110, %c0_111, %c0_112] : memref<2x32x64xf32, #tpu.memory_space<vmem>>, vector<1x32x64xf32>
    %314 = vector.shape_cast %313 : vector<1x32x64xf32> to vector<32x64xf32>
    %cst_113 = arith.constant dense<0.000000e+00> : vector<8x64xf32>
    %315 = tpu.matmul %312, %314, %cst_113 {dimension_numbers = #tpu.dot_dimension_numbers<[1], [0], [0], [1], [0, 0, 1, 1], [], []>} : vector<8x32xf32>, vector<32x64xf32>, vector<8x64xf32> -> vector<8x64xf32>
    %c1_114 = arith.constant 1 : index
    %c0_115 = arith.constant 0 : index
    %c0_116 = arith.constant 0 : index
    %316 = vector.load %arg6[%c1_114, %c0_115, %c0_116] : memref<2x1x64xf32, #tpu.memory_space<vmem>>, vector<1x1x64xf32>
    %317 = vector.shape_cast %316 : vector<1x1x64xf32> to vector<1x64xf32>
    %318 = vector.broadcast %317 : vector<1x64xf32> to vector<8x64xf32>
    %319 = arith.addf %315, %318 : vector<8x64xf32>
    %cst_117 = arith.constant 5.000000e-01 : f32
    %320 = vector.broadcast %cst_117 : f32 to vector<8x64xf32>
    %321 = arith.mulf %320, %319 : vector<8x64xf32>
    %cst_118 = arith.constant 0.707106769 : f32
    %322 = vector.broadcast %cst_118 : f32 to vector<8x64xf32>
    %323 = arith.mulf %319, %322 : vector<8x64xf32>
    %324 = math.erf %323 : vector<8x64xf32>
    %cst_119 = arith.constant 1.000000e+00 : f32
    %325 = vector.broadcast %cst_119 : f32 to vector<8x64xf32>
    %326 = arith.addf %325, %324 : vector<8x64xf32>
    %327 = arith.mulf %321, %326 : vector<8x64xf32>
    %c1_120 = arith.constant 1 : index
    %c0_121 = arith.constant 0 : index
    %c0_122 = arith.constant 0 : index
    %328 = vector.load %arg7[%c1_120, %c0_121, %c0_122] : memref<2x64x32xf32, #tpu.memory_space<vmem>>, vector<1x64x32xf32>
    %329 = vector.shape_cast %328 : vector<1x64x32xf32> to vector<64x32xf32>
    %cst_123 = arith.constant dense<0.000000e+00> : vector<8x32xf32>
    %330 = tpu.matmul %327, %329, %cst_123 {dimension_numbers = #tpu.dot_dimension_numbers<[1], [0], [0], [1], [0, 0, 1, 1], [], []>} : vector<8x64xf32>, vector<64x32xf32>, vector<8x32xf32> -> vector<8x32xf32>
    %331 = vector.broadcast %175 : vector<1x32xf32> to vector<8x32xf32>
    %332 = arith.addf %330, %331 : vector<8x32xf32>
    %333 = arith.addf %290, %332 : vector<8x32xf32>
    %c0_124 = arith.constant 0 : index
    %c0_125 = arith.constant 0 : index
    %334 = vector.load %arg9[%c0_124, %c0_125] : memref<2x32xf32, #tpu.memory_space<vmem>>, vector<2x32xf32>
    %335 = vector.extract_strided_slice %334 {offsets = [0, 0], sizes = [1, 32], strides = [1, 1]} : vector<2x32xf32> to vector<1x32xf32>
    %336 = vector.extract_strided_slice %334 {offsets = [1, 0], sizes = [1, 32], strides = [1, 1]} : vector<2x32xf32> to vector<1x32xf32>
    %cst_126 = arith.constant dense<0.000000e+00> : vector<8xf32>
    %337 = vector.multi_reduction <add>, %333, %cst_126 [1] : vector<8x32xf32> to vector<8xf32>
    %338 = vector.shape_cast %337 : vector<8xf32> to vector<8x1xf32>
    %cst_127 = arith.constant 3.200000e+01 : f32
    %339 = vector.broadcast %cst_127 : f32 to vector<8x1xf32>
    %340 = arith.divf %338, %339 : vector<8x1xf32>
    %341 = vector.broadcast %340 : vector<8x1xf32> to vector<8x32xf32>
    %342 = arith.subf %333, %341 : vector<8x32xf32>
    %343 = arith.mulf %342, %342 : vector<8x32xf32>
    %cst_128 = arith.constant dense<0.000000e+00> : vector<8xf32>
    %344 = vector.multi_reduction <add>, %343, %cst_128 [1] : vector<8x32xf32> to vector<8xf32>
    %345 = vector.shape_cast %344 : vector<8xf32> to vector<8x1xf32>
    %cst_129 = arith.constant 3.200000e+01 : f32
    %346 = vector.broadcast %cst_129 : f32 to vector<8x1xf32>
    %347 = arith.divf %345, %346 : vector<8x1xf32>
    %cst_130 = arith.constant 9.99999997E-7 : f32
    %348 = vector.broadcast %cst_130 : f32 to vector<8x1xf32>
    %349 = arith.addf %347, %348 : vector<8x1xf32>
    %350 = math.rsqrt %349 : vector<8x1xf32>
    %351 = vector.broadcast %340 : vector<8x1xf32> to vector<8x32xf32>
    %352 = arith.subf %333, %351 : vector<8x32xf32>
    %353 = vector.broadcast %350 : vector<8x1xf32> to vector<8x32xf32>
    %354 = arith.mulf %352, %353 : vector<8x32xf32>
    %355 = vector.broadcast %335 : vector<1x32xf32> to vector<8x32xf32>
    %356 = arith.mulf %354, %355 : vector<8x32xf32>
    %357 = vector.broadcast %336 : vector<1x32xf32> to vector<8x32xf32>
    %358 = arith.addf %356, %357 : vector<8x32xf32>
    %c0_131 = arith.constant 0 : index
    %c0_132 = arith.constant 0 : index
    %c0_133 = arith.constant 0 : index
    %359 = vector.load %arg10[%c0_131, %c0_132, %c0_133] : memref<1x8x32xf32, #tpu.memory_space<vmem>>, vector<1x8x32xf32>
    %360 = vector.shape_cast %359 : vector<1x8x32xf32> to vector<8x32xf32>
    %361 = vector.shape_cast %358 : vector<8x32xf32> to vector<1x8x32xf32>
    tpu.vector_store %arg10[%c0_131, %c0_132, %c0_133], %361 {strides = array<i32>} : memref<1x8x32xf32, #tpu.memory_space<vmem>>, vector<1x8x32xf32>,
    return
  }
  func.func @transform_0(%arg0: i32) -> (i32, i32, i32) {
    %c0_i32 = arith.constant 0 : i32
    %c0_i32_0 = arith.constant 0 : i32
    %c0_i32_1 = arith.constant 0 : i32
    return %arg0, %c0_i32, %c0_i32_0 : i32, i32, i32
  }
  func.func @transform_1(%arg0: i32) -> (i32, i32, i32) {
    %c0_i32 = arith.constant 0 : i32
    %c0_i32_0 = arith.constant 0 : i32
    %c0_i32_1 = arith.constant 0 : i32
    %c0_i32_2 = arith.constant 0 : i32
    return %c0_i32, %c0_i32_0, %c0_i32_1 : i32, i32, i32
  }
  func.func @transform_2(%arg0: i32) -> (i32, i32, i32) {
    %c0_i32 = arith.constant 0 : i32
    %c0_i32_0 = arith.constant 0 : i32
    %c0_i32_1 = arith.constant 0 : i32
    %c0_i32_2 = arith.constant 0 : i32
    return %c0_i32, %c0_i32_0, %c0_i32_1 : i32, i32, i32
  }
  func.func @transform_3(%arg0: i32) -> (i32, i32, i32) {
    %c0_i32 = arith.constant 0 : i32
    %c0_i32_0 = arith.constant 0 : i32
    %c0_i32_1 = arith.constant 0 : i32
    %c0_i32_2 = arith.constant 0 : i32
    return %c0_i32, %c0_i32_0, %c0_i32_1 : i32, i32, i32
  }
  func.func @transform_4(%arg0: i32) -> (i32, i32, i32) {
    %c0_i32 = arith.constant 0 : i32
    %c0_i32_0 = arith.constant 0 : i32
    %c0_i32_1 = arith.constant 0 : i32
    %c0_i32_2 = arith.constant 0 : i32
    return %c0_i32, %c0_i32_0, %c0_i32_1 : i32, i32, i32
  }
  func.func @transform_5(%arg0: i32) -> (i32, i32, i32) {
    %c0_i32 = arith.constant 0 : i32
    %c0_i32_0 = arith.constant 0 : i32
    %c0_i32_1 = arith.constant 0 : i32
    %c0_i32_2 = arith.constant 0 : i32
    return %c0_i32, %c0_i32_0, %c0_i32_1 : i32, i32, i32
  }
  func.func @transform_6(%arg0: i32) -> (i32, i32, i32) {
    %c0_i32 = arith.constant 0 : i32
    %c0_i32_0 = arith.constant 0 : i32
    %c0_i32_1 = arith.constant 0 : i32
    %c0_i32_2 = arith.constant 0 : i32
    return %c0_i32, %c0_i32_0, %c0_i32_1 : i32, i32, i32
  }
  func.func @transform_7(%arg0: i32) -> (i32, i32, i32) {
    %c0_i32 = arith.constant 0 : i32
    %c0_i32_0 = arith.constant 0 : i32
    %c0_i32_1 = arith.constant 0 : i32
    %c0_i32_2 = arith.constant 0 : i32
    return %c0_i32, %c0_i32_0, %c0_i32_1 : i32, i32, i32
  }
  func.func @transform_8(%arg0: i32) -> (i32, i32) {
    %c0_i32 = arith.constant 0 : i32
    %c0_i32_0 = arith.constant 0 : i32
    %c0_i32_1 = arith.constant 0 : i32
    return %c0_i32, %c0_i32_0 : i32, i32
  }
  func.func @transform_9(%arg0: i32) -> (i32, i32, i32) {
    %c0_i32 = arith.constant 0 : i32
    %c0_i32_0 = arith.constant 0 : i32
    %c0_i32_1 = arith.constant 0 : i32
    return %arg0, %c0_i32, %c0_i32_0 : i32, i32, i32
  }
}

</mosaic_0001>

<llo_original>
// kernel: encoder_forward.1
$region0: #{encoder_forward.1}
  #allocation0 [shape = 'u32[]', space=smem, size = 0x4, offset = 0x4, fixed_abs, tag = 'smem constant byte address 0x4 - core index']
  #allocation1 [shape = 'u32[144,128]{1,0:T(1,128)}', space=vmem, size = 0x12000, scoped, tag = 'internal scratch']
  %s0 = inlined_call_operand.vmem [shape: f32[2,8,32], index: 0, kind: input, shape index: {}]
  %s1 = inlined_call_operand.vmem [shape: f32[2,32,96], index: 1, kind: input, shape index: {}]
  %s2 = inlined_call_operand.vmem [shape: f32[2,1,96], index: 2, kind: input, shape index: {}]
  %s3 = inlined_call_operand.vmem [shape: f32[2,32,32], index: 3, kind: input, shape index: {}]
  %s4 = inlined_call_operand.vmem [shape: f32[2,32,64], index: 4, kind: input, shape index: {}]
  %s5 = inlined_call_operand.vmem [shape: f32[2,1,64], index: 5, kind: input, shape index: {}]
  %s6 = inlined_call_operand.vmem [shape: f32[2,64,32], index: 6, kind: input, shape index: {}]
  %s7 = inlined_call_operand.vmem [shape: f32[2,6,32], index: 7, kind: input, shape index: {}]
  %s8 = inlined_call_operand.vmem [shape: f32[2,32], index: 8, kind: input, shape index: {}]
  %s9 = inlined_call_operand.hbm [shape: f32[2,8,32], index: 9, kind: output, shape index: {}]
  %s10 = sld [smem:[#allocation0]]
  $region69: #{encoder_forward.1} parent=0
    _
  %s12 = ssub.s32 1, %s10
  %s13 = scalar_select 0, %s12, %s10
  $region1: #{encoder_forward.1} parent=0
    #allocation2 [shape = 'u8[8192]{0}', space=vmem, size = 0x2000, scoped, tag = 'output window, operand 0']
    #allocation3 [shape = 's32[2]{0}', space=sflag, size = 0x8, scoped, tag = 'scoped memory for encoder_forward.1']
    %14 = vsyncpa [#allocation3], 0
    %s15 = scalar_lea.sflag [#allocation3], 1
    %16 = vsyncpa %s15, 0
    loop: start=0, step=1, limit=4
    $region2: #{encoder_forward.1} parent=1 // loop_pre_header
      _
    $region3: #{encoder_forward.1} parent=1 // loop_header
      %s18 = sphi 0, %s22
      %p19 = scmp.ge.s32.totalorder %s18, 4
      %s28 = sphi 0, %s30
      %s31 = sphi 0, %s28
      %s32 = sphi 0, %s31
      %s48 = sphi 0, %s32
      %s52 = sphi 0, %s52
      %s54 = sphi 0, %s52
      %s55 = sphi 0, %s54
      %s69 = sphi 0, %s55
      %s73 = sphi 0, %s73
      %s75 = sphi 0, %s73
      %s76 = sphi 0, %s75
      %s90 = sphi 0, %s76
      %s94 = sphi 0, %s94
      %s96 = sphi 0, %s94
      %s97 = sphi 0, %s96
      %s111 = sphi 0, %s97
      %s115 = sphi 0, %s115
      %s117 = sphi 0, %s115
      %s118 = sphi 0, %s117
      %s132 = sphi 0, %s118
      %s136 = sphi 0, %s136
      %s138 = sphi 0, %s136
      %s139 = sphi 0, %s138
      %s153 = sphi 0, %s139
      %s157 = sphi 0, %s157
      %s159 = sphi 0, %s157
      %s160 = sphi 0, %s159
      %s174 = sphi 0, %s160
      %s178 = sphi 0, %s178
      %s180 = sphi 0, %s178
      %s181 = sphi 0, %s180
      %s195 = sphi 0, %s181
      %s199 = sphi 0, %s199
      %s201 = sphi 0, %s199
      %s202 = sphi 0, %s201
      %s216 = sphi 0, %s202
      %s222 = sphi 0, %s224
      %s225 = sphi 0, %s222
      %s226 = sphi 0, %s225
      %s242 = sphi 0, %s226
    $region4: #{encoder_forward.1} parent=1 // loop_header_branch
      %21 = sbr.rel (%p19) target = $region8
    $region5: #{encoder_forward.1} parent=1 // loop_body
      %s23 = ssub.s32 %s18, 1
      %s24 = ssub.s32 %s18, 2
      %s25 = sadd.s32 %s18, 1
      %s26 = ssub.s32 %s18, %s25
      %p27 = scmp.eq.s32.totalorder %s26, 0
      %s29 = sadd.s32 %s28, 1
      %s30 = scalar_select %p27, %s28, %s29
      %p33 = pneg %p27
      %p34 = scmp.eq.s32.totalorder %s18, 1
      %p35 = por %p33, %p34
      %p36 = scmp.ne.s32.totalorder %s28, %s31
      %p37 = scmp.eq.s32.totalorder %s18, 0
      %p38 = por %p36, %p37
      %p39 = scmp.ne.s32.totalorder %s28, %s31
      %p40 = scmp.eq.s32.totalorder %s23, 1
      %p41 = por %p39, %p40
      %p42 = scmp.ne.s32.totalorder %s31, %s32
      %p43 = scmp.eq.s32.totalorder %s23, 0
      %p44 = por %p42, %p43
      %p45 = scmp.ne.s32.totalorder %s31, %s32
      %p46 = scmp.eq.s32.totalorder %s24, 1
      %p47 = por %p45, %p46
      %p49 = scmp.ne.s32.totalorder %s32, %s48
      %p50 = scmp.eq.s32.totalorder %s24, 0
      %p51 = por %p49, %p50
      %s53 = sadd.s32 %s52, 1
      %p56 = scmp.eq.s32.totalorder %s18, 1
      %p57 = scmp.ne.s32.totalorder %s52, %s54
      %p58 = scmp.eq.s32.totalorder %s18, 0
      %p59 = por %p57, %p58
      %p60 = scmp.ne.s32.totalorder %s52, %s54
      %p61 = scmp.eq.s32.totalorder %s23, 1
      %p62 = por %p60, %p61
      %p63 = scmp.ne.s32.totalorder %s54, %s55
      %p64 = scmp.eq.s32.totalorder %s23, 0
      %p65 = por %p63, %p64
      %p66 = scmp.ne.s32.totalorder %s54, %s55
      %p67 = scmp.eq.s32.totalorder %s24, 1
      %p68 = por %p66, %p67
      %p70 = scmp.ne.s32.totalorder %s55, %s69
      %p71 = scmp.eq.s32.totalorder %s24, 0
      %p72 = por %p70, %p71
      %s74 = sadd.s32 %s73, 1
      %p77 = scmp.eq.s32.totalorder %s18, 1
      %p78 = scmp.ne.s32.totalorder %s73, %s75
      %p79 = scmp.eq.s32.totalorder %s18, 0
      %p80 = por %p78, %p79
      %p81 = scmp.ne.s32.totalorder %s73, %s75
      %p82 = scmp.eq.s32.totalorder %s23, 1
      %p83 = por %p81, %p82
      %p84 = scmp.ne.s32.totalorder %s75, %s76
      %p85 = scmp.eq.s32.totalorder %s23, 0
      %p86 = por %p84, %p85
      %p87 = scmp.ne.s32.totalorder %s75, %s76
      %p88 = scmp.eq.s32.totalorder %s24, 1
      %p89 = por %p87, %p88
      %p91 = scmp.ne.s32.totalorder %s76, %s90
      %p92 = scmp.eq.s32.totalorder %s24, 0
      %p93 = por %p91, %p92
      %s95 = sadd.s32 %s94, 1
      %p98 = scmp.eq.s32.totalorder %s18, 1
      %p99 = scmp.ne.s32.totalorder %s94, %s96
      %p100 = scmp.eq.s32.totalorder %s18, 0
      %p101 = por %p99, %p100
      %p102 = scmp.ne.s32.totalorder %s94, %s96
      %p103 = scmp.eq.s32.totalorder %s23, 1
      %p104 = por %p102, %p103
      %p105 = scmp.ne.s32.totalorder %s96, %s97
      %p106 = scmp.eq.s32.totalorder %s23, 0
      %p107 = por %p105, %p106
      %p108 = scmp.ne.s32.totalorder %s96, %s97
      %p109 = scmp.eq.s32.totalorder %s24, 1
      %p110 = por %p108, %p109
      %p112 = scmp.ne.s32.totalorder %s97, %s111
      %p113 = scmp.eq.s32.totalorder %s24, 0
      %p114 = por %p112, %p113
      %s116 = sadd.s32 %s115, 1
      %p119 = scmp.eq.s32.totalorder %s18, 1
      %p120 = scmp.ne.s32.totalorder %s115, %s117
      %p121 = scmp.eq.s32.totalorder %s18, 0
      %p122 = por %p120, %p121
      %p123 = scmp.ne.s32.totalorder %s115, %s117
      %p124 = scmp.eq.s32.totalorder %s23, 1
      %p125 = por %p123, %p124
      %p126 = scmp.ne.s32.totalorder %s117, %s118
      %p127 = scmp.eq.s32.totalorder %s23, 0
      %p128 = por %p126, %p127
      %p129 = scmp.ne.s32.totalorder %s117, %s118
      %p130 = scmp.eq.s32.totalorder %s24, 1
      %p131 = por %p129, %p130
      %p133 = scmp.ne.s32.totalorder %s118, %s132
      %p134 = scmp.eq.s32.totalorder %s24, 0
      %p135 = por %p133, %p134
      %s137 = sadd.s32 %s136, 1
      %p140 = scmp.eq.s32.totalorder %s18, 1
      %p141 = scmp.ne.s32.totalorder %s136, %s138
      %p142 = scmp.eq.s32.totalorder %s18, 0
      %p143 = por %p141, %p142
      %p144 = scmp.ne.s32.totalorder %s136, %s138
      %p145 = scmp.eq.s32.totalorder %s23, 1
      %p146 = por %p144, %p145
      %p147 = scmp.ne.s32.totalorder %s138, %s139
      %p148 = scmp.eq.s32.totalorder %s23, 0
      %p149 = por %p147, %p148
      %p150 = scmp.ne.s32.totalorder %s138, %s139
      %p151 = scmp.eq.s32.totalorder %s24, 1
      %p152 = por %p150, %p151
      %p154 = scmp.ne.s32.totalorder %s139, %s153
      %p155 = scmp.eq.s32.totalorder %s24, 0
      %p156 = por %p154, %p155
      %s158 = sadd.s32 %s157, 1
      %p161 = scmp.eq.s32.totalorder %s18, 1
      %p162 = scmp.ne.s32.totalorder %s157, %s159
      %p163 = scmp.eq.s32.totalorder %s18, 0
      %p164 = por %p162, %p163
      %p165 = scmp.ne.s32.totalorder %s157, %s159
      %p166 = scmp.eq.s32.totalorder %s23, 1
      %p167 = por %p165, %p166
      %p168 = scmp.ne.s32.totalorder %s159, %s160
      %p169 = scmp.eq.s32.totalorder %s23, 0
      %p170 = por %p168, %p169
      %p171 = scmp.ne.s32.totalorder %s159, %s160
      %p172 = scmp.eq.s32.totalorder %s24, 1
      %p173 = por %p171, %p172
      %p175 = scmp.ne.s32.totalorder %s160, %s174
      %p176 = scmp.eq.s32.totalorder %s24, 0
      %p177 = por %p175, %p176
      %s179 = sadd.s32 %s178, 1
      %p182 = scmp.eq.s32.totalorder %s18, 1
      %p183 = scmp.ne.s32.totalorder %s178, %s180
      %p184 = scmp.eq.s32.totalorder %s18, 0
      %p185 = por %p183, %p184
      %p186 = scmp.ne.s32.totalorder %s178, %s180
      %p187 = scmp.eq.s32.totalorder %s23, 1
      %p188 = por %p186, %p187
      %p189 = scmp.ne.s32.totalorder %s180, %s181
      %p190 = scmp.eq.s32.totalorder %s23, 0
      %p191 = por %p189, %p190
      %p192 = scmp.ne.s32.totalorder %s180, %s181
      %p193 = scmp.eq.s32.totalorder %s24, 1
      %p194 = por %p192, %p193
      %p196 = scmp.ne.s32.totalorder %s181, %s195
      %p197 = scmp.eq.s32.totalorder %s24, 0
      %p198 = por %p196, %p197
      %s200 = sadd.s32 %s199, 1
      %p203 = scmp.eq.s32.totalorder %s18, 1
      %p204 = scmp.ne.s32.totalorder %s199, %s201
      %p205 = scmp.eq.s32.totalorder %s18, 0
      %p206 = por %p204, %p205
      %p207 = scmp.ne.s32.totalorder %s199, %s201
      %p208 = scmp.eq.s32.totalorder %s23, 1
      %p209 = por %p207, %p208
      %p210 = scmp.ne.s32.totalorder %s201, %s202
      %p211 = scmp.eq.s32.totalorder %s23, 0
      %p212 = por %p210, %p211
      %p213 = scmp.ne.s32.totalorder %s201, %s202
      %p214 = scmp.eq.s32.totalorder %s24, 1
      %p215 = por %p213, %p214
      %p217 = scmp.ne.s32.totalorder %s202, %s216
      %p218 = scmp.eq.s32.totalorder %s24, 0
      %p219 = por %p217, %p218
      %s220 = ssub.s32 %s18, %s25
      %p221 = scmp.eq.s32.totalorder %s220, 0
      %s223 = sadd.s32 %s222, 1
      %s224 = scalar_select %p221, %s222, %s223
      %p227 = pneg %p221
      %p228 = scmp.eq.s32.totalorder %s18, 1
      %p229 = por %p227, %p228
      %p230 = scmp.ne.s32.totalorder %s222, %s225
      %p231 = scmp.eq.s32.totalorder %s18, 0
      %p232 = por %p230, %p231
      %p233 = scmp.ne.s32.totalorder %s222, %s225
      %p234 = scmp.eq.s32.totalorder %s23, 1
      %p235 = por %p233, %p234
      %p236 = scmp.ne.s32.totalorder %s225, %s226
      %p237 = scmp.eq.s32.totalorder %s23, 0
      %p238 = por %p236, %p237
      %p239 = scmp.ne.s32.totalorder %s225, %s226
      %p240 = scmp.eq.s32.totalorder %s24, 1
      %p241 = por %p239, %p240
      %p243 = scmp.ne.s32.totalorder %s226, %s242
      %p244 = scmp.eq.s32.totalorder %s24, 0
      %p245 = por %p243, %p244
      %p246 = scmp.le.s32.totalorder 1, %s18
      %p247 = scmp.lt.s32.totalorder %s18, 3
      %p248 = pnand %p246, %p247
      %p249 = pneg %p248
      // Predicated region
      $region9: #{encoder_forward.1} parent=5 // pred_check
        _
      $region10: #{encoder_forward.1} parent=5 // pred_check_branch
        %251 = sbr.rel (%p248) target = $region12
      $region11: #{encoder_forward.1} parent=5 // pred_region
        %s252 = ssub.s32 %s18, 1
        // Predicated region
        $region13: #{encoder_forward.1} parent=11 // pred_check
          %p253 = pneg %p65
        $region14: #{encoder_forward.1} parent=11 // pred_check_branch
          %255 = sbr.rel (%p253) target = $region16
        $region15: #{encoder_forward.1} parent=11 // pred_region
          _
        $region16: #{encoder_forward.1} parent=11 // pred_fallthru
          _
        // Predicated region
        $region17: #{encoder_forward.1} parent=11 // pred_check
          %p256 = pneg %p86
        $region18: #{encoder_forward.1} parent=11 // pred_check_branch
          %258 = sbr.rel (%p256) target = $region20
        $region19: #{encoder_forward.1} parent=11 // pred_region
          _
        $region20: #{encoder_forward.1} parent=11 // pred_fallthru
          _
        // Predicated region
        $region21: #{encoder_forward.1} parent=11 // pred_check
          %p259 = pneg %p107
        $region22: #{encoder_forward.1} parent=11 // pred_check_branch
          %261 = sbr.rel (%p259) target = $region24
        $region23: #{encoder_forward.1} parent=11 // pred_region
          _
        $region24: #{encoder_forward.1} parent=11 // pred_fallthru
          _
        // Predicated region
        $region25: #{encoder_forward.1} parent=11 // pred_check
          %p262 = pneg %p128
        $region26: #{encoder_forward.1} parent=11 // pred_check_branch
          %264 = sbr.rel (%p262) target = $region28
        $region27: #{encoder_forward.1} parent=11 // pred_region
          _
        $region28: #{encoder_forward.1} parent=11 // pred_fallthru
          _
        // Predicated region
        $region29: #{encoder_forward.1} parent=11 // pred_check
          %p265 = pneg %p149
        $region30: #{encoder_forward.1} parent=11 // pred_check_branch
          %267 = sbr.rel (%p265) target = $region32
        $region31: #{encoder_forward.1} parent=11 // pred_region
          _
        $region32: #{encoder_forward.1} parent=11 // pred_fallthru
          _
        // Predicated region
        $region33: #{encoder_forward.1} parent=11 // pred_check
          %p268 = pneg %p170
        $region34: #{encoder_forward.1} parent=11 // pred_check_branch
          %270 = sbr.rel (%p268) target = $region36
        $region35: #{encoder_forward.1} parent=11 // pred_region
          _
        $region36: #{encoder_forward.1} parent=11 // pred_fallthru
          _
        // Predicated region
        $region37: #{encoder_forward.1} parent=11 // pred_check
          %p271 = pneg %p191
        $region38: #{encoder_forward.1} parent=11 // pred_check_branch
          %273 = sbr.rel (%p271) target = $region40
        $region39: #{encoder_forward.1} parent=11 // pred_region
          _
        $region40: #{encoder_forward.1} parent=11 // pred_fallthru
          _
        // Predicated region
        $region41: #{encoder_forward.1} parent=11 // pred_check
          %p274 = pneg %p212
        $region42: #{encoder_forward.1} parent=11 // pred_check_branch
          %276 = sbr.rel (%p274) target = $region44
        $region43: #{encoder_forward.1} parent=11 // pred_region
          _
        $region44: #{encoder_forward.1} parent=11 // pred_fallthru
          _
      $region12: #{encoder_forward.1} parent=5 // pred_fallthru
        _
      %p277 = scmp.lt.s32.totalorder %s18, 2
      // Predicated region
      $region45: #{encoder_forward.1} parent=5 // pred_check
        %p278 = pneg %p277
      $region46: #{encoder_forward.1} parent=5 // pred_check_branch
        %280 = sbr.rel (%p278) target = $region48
      $region47: #{encoder_forward.1} parent=5 // pred_region
        // Predicated region
        $region49: #{encoder_forward.1} parent=47 // pred_check
          %p281 = pneg %p38
        $region50: #{encoder_forward.1} parent=47 // pred_check_branch
          %283 = sbr.rel (%p281) target = $region52
        $region51: #{encoder_forward.1} parent=47 // pred_region
          %p284 = scmp.lt.s32.totalorder %s18, 1
          %s285 = scalar_select %p284, %s18, 1
          %s286 = smul.addr %s285, 8
          %s287 = scalar_lea.vmem %s0, %s286
        $region52: #{encoder_forward.1} parent=47 // pred_fallthru
          _
      $region48: #{encoder_forward.1} parent=5 // pred_fallthru
        _
      %p288 = scmp.le.s32.totalorder 1, %s18
      %p289 = scmp.lt.s32.totalorder %s18, 3
      %p290 = pnand %p288, %p289
      %p291 = pneg %p290
      // Predicated region
      $region53: #{encoder_forward.1} parent=5 // pred_check
        _
      $region54: #{encoder_forward.1} parent=5 // pred_check_branch
        %293 = sbr.rel (%p290) target = $region56
      $region55: #{encoder_forward.1} parent=5 // pred_region
        %s294 = ssub.s32 %s18, 1
        %p295 = scmp.lt.s32.totalorder %s23, 1
        %s296 = scalar_select %p295, %s23, 1
        %s297 = smul.addr %s296, 8
        %s298 = scalar_lea.vmem %s0, %s297
        %p299 = pneg %p44
        %p300 = pneg %p41
        %p301 = pneg %p65
        %p302 = pneg %p62
        %p303 = pneg %p86
        %p304 = pneg %p83
        %p305 = pneg %p107
        %p306 = pneg %p104
        %p307 = pneg %p128
        %p308 = pneg %p125
        %p309 = pneg %p149
        %p310 = pneg %p146
        %p311 = pneg %p170
        %p312 = pneg %p167
        %p313 = pneg %p191
        %p314 = pneg %p188
        %p315 = pneg %p212
        %p316 = pneg %p209
        %p317 = pneg %p238
        %p318 = pneg %p235
        %s319 = sand.u32 %s225, 1
        %s320 = scalar_lea.sflag [#allocation3], %s319
        %s321 = sand.u32 %s225, 1
        %s322 = smul.addr %s321, 8
        %s323 = scalar_lea.vmem [#allocation2], %s322
        %p324 = scmp.lt.s32.totalorder %s23, 1
        %s325 = scalar_select %p324, %s23, 1
        %s326 = smul.addr %s325, 8
        %s327 = scalar_lea.vmem %s0, %s326
        %v328 = vld [vmem:[%s327] sm:$0xff]
        %v329 = vld [vmem:[%s7] sm:$0x3f]
        %vm330 = vcmask 261120
        %v331 = vsel %vm330, %v328, 0.0
        %332 = vadd.xlane.f32.xlu0 %v331
        %v333 = vpop.xlane.xlu0 %332
        %v334 = vrcp.pop 32.0
        %v335 = vmul.f32 %v333, %v334
        %v336 = vsub.f32 %v328, %v335
        %v337 = vmul.f32 %v336, %v336
        %v338 = vsel %vm330, %v337, 0.0
        %339 = vadd.xlane.f32.xlu0 %v338
        %v340 = vpop.xlane.xlu0 %339
        %v341 = vmul.f32 %v340, %v334
        %v342 = vadd.f32 %v341, 1e-06
        %v343 = vrsqrt.pop %v342
        %v344 = vmul.f32 %v336, %v343
        %v345 = vlaneseq
        %v346 = vshrl.u32 %v345, 7
        %v347 = vsub.s32 0, %v346
        %v348 = vrot.slane %v329, %v347
        %v349 = vmul.f32 %v344, %v348
        %v350 = vlaneseq
        %v351 = vshrl.u32 %v350, 7
        %v352 = vsub.s32 1, %v351
        %v353 = vrot.slane %v329, %v352
        %v354 = vadd.f32 %v349, %v353
        %v355 = vld [vmem:[%s1] sm:$0xff]
        %v356 = vld [vmem:[%s1 + $0x8] sm:$0xff]
        %v357 = vld [vmem:[%s1 + $0x10] sm:$0xff]
        %v358 = vld [vmem:[%s1 + $0x18] sm:$0xff]
        %v359 = vld [vmem:[%s2] sm:$0x1]
        %v361 = vlaneseq
        %v362 = vshrl.u32 %v361, 7
        %v363 = vsub.s32 0, %v362
        %v364 = vrot.slane %v359, %v363
        %v367 = vsel %vm330, %v354, 0
        %369 = vmatprep.subr.mxu0 0.0
        %370 = vmatpush1.msra.mxu0 0.0
        %371 = vmatprep.subr.mxu0 0.0
        %372 = vmatpush1.msra.mxu0 0.0
        %373 = vmatprep.subr.mxu0 0.0
        %374 = vmatpush1.msra.mxu0 0.0
        %375 = vmatprep.subr.mxu0 0.0
        %376 = vmatpush1.msra.mxu0 0.0
        %377 = vmatprep.subr.mxu0 0.0
        %378 = vmatpush1.msra.mxu0 0.0
        %379 = vmatprep.subr.mxu0 0.0
        %380 = vmatpush1.msra.mxu0 0.0
        %381 = vmatprep.subr.mxu0 0.0
        %382 = vmatpush1.msra.mxu0 0.0
        %383 = vmatprep.subr.mxu0 0.0
        %384 = vmatpush1.msra.mxu0 0.0
        %385 = vmatprep.subr.mxu0 0.0
        %386 = vmatpush1.msra.mxu0 0.0
        %387 = vmatprep.subr.mxu0 0.0
        %388 = vmatpush1.msra.mxu0 0.0
        %389 = vmatprep.subr.mxu0 0.0
        %390 = vmatpush1.msra.mxu0 0.0
        %391 = vmatprep.subr.mxu0 0.0
        %392 = vmatpush1.msra.mxu0 0.0
        %393 = vmatprep.subr.mxu0 0.0
        %394 = vmatpush1.msra.mxu0 %v358
        %395 = vmatprep.subr.mxu0 0.0
        %396 = vmatpush1.msra.mxu0 %v357
        %397 = vmatprep.subr.mxu0 0.0
        %398 = vmatpush1.msra.mxu0 %v356
        %399 = vmatprep.subr.mxu0 0.0
        %400 = vmatpush1.msra.mxu0 %v355
        %401 = vmatprep.subr.mxu0 0.0
        %402 = vmatpush2.msra.mxu0 0.0
        %403 = vmatprep.subr.mxu0 0.0
        %404 = vmatpush2.msra.mxu0 0.0
        %405 = vmatprep.subr.mxu0 0.0
        %406 = vmatpush2.msra.mxu0 0.0
        %407 = vmatprep.subr.mxu0 0.0
        %408 = vmatpush2.msra.mxu0 0.0
        %409 = vmatprep.subr.mxu0 0.0
        %410 = vmatpush2.msra.mxu0 0.0
        %411 = vmatprep.subr.mxu0 0.0
        %412 = vmatpush2.msra.mxu0 0.0
        %413 = vmatprep.subr.mxu0 0.0
        %414 = vmatpush2.msra.mxu0 0.0
        %415 = vmatprep.subr.mxu0 0.0
        %416 = vmatpush2.msra.mxu0 0.0
        %417 = vmatprep.subr.mxu0 0.0
        %418 = vmatpush2.msra.mxu0 0.0
        %419 = vmatprep.subr.mxu0 0.0
        %420 = vmatpush2.msra.mxu0 0.0
        %421 = vmatprep.subr.mxu0 0.0
        %422 = vmatpush2.msra.mxu0 0.0
        %423 = vmatprep.subr.mxu0 0.0
        %424 = vmatpush2.msra.mxu0 0.0
        %425 = vmatprep.subr.mxu0 0.0
        %426 = vmatpush2.msra.mxu0 0.0
        %427 = vmatprep.subr.mxu0 0.0
        %428 = vmatpush2.msra.mxu0 0.0
        %429 = vmatprep.subr.mxu0 0.0
        %430 = vmatpush2.msra.mxu0 0.0
        %431 = vmatprep.subr.mxu0 0.0
        %432 = vmatpush2.msra.mxu0 0.0
        %433 = vmatprep.mubr.f32.mxu0 0.0
        %434 = vmatmul.mubr.f32.gmra.mxu0 %v367
        %v435 = vpop.f32.mrf.mxu0
        %v436 = vadd.f32 %v364, %v435
        %v437 = vpop.f32.mrf.mxu0
        %438 = vdwg.mxu0
        %v439 = vld [vmem:[%s3] sm:$0xff]
        %v440 = vld [vmem:[%s3 + $0x8] sm:$0xff]
        %v441 = vld [vmem:[%s3 + $0x10] sm:$0xff]
        %v442 = vld [vmem:[%s3 + $0x18] sm:$0xff]
        %444 = vrot.lane.b32.xlu0 %v436, 96
        %v445 = vpop.permute.xlu0 %444
        %vm446 = vcmask 64512
        %v447 = vsel %vm446, %v436, 0
        %v449 = vsel %vm446, %v445, 0
        %451 = vmatprep.subr.mxu0 0.0
        %452 = vmatpush1.xpose.msra.mxu0 0.0
        %453 = vmatprep.subr.mxu0 0.0
        %454 = vmatpush1.xpose.msra.mxu0 0.0
        %455 = vmatprep.subr.mxu0 0.0
        %456 = vmatpush1.xpose.msra.mxu0 0.0
        %457 = vmatprep.subr.mxu0 0.0
        %458 = vmatpush1.xpose.msra.mxu0 0.0
        %459 = vmatprep.subr.mxu0 0.0
        %460 = vmatpush1.xpose.msra.mxu0 0.0
        %461 = vmatprep.subr.mxu0 0.0
        %462 = vmatpush1.xpose.msra.mxu0 0.0
        %463 = vmatprep.subr.mxu0 0.0
        %464 = vmatpush1.xpose.msra.mxu0 0.0
        %465 = vmatprep.subr.mxu0 0.0
        %466 = vmatpush1.xpose.msra.mxu0 0.0
        %467 = vmatprep.subr.mxu0 0.0
        %468 = vmatpush1.xpose.msra.mxu0 0.0
        %469 = vmatprep.subr.mxu0 0.0
        %470 = vmatpush1.xpose.msra.mxu0 0.0
        %471 = vmatprep.subr.mxu0 0.0
        %472 = vmatpush1.xpose.msra.mxu0 0.0
        %473 = vmatprep.subr.mxu0 0.0
        %474 = vmatpush1.xpose.msra.mxu0 0.0
        %475 = vmatprep.subr.mxu0 0.0
        %476 = vmatpush1.xpose.msra.mxu0 0.0
        %477 = vmatprep.subr.mxu0 0.0
        %478 = vmatpush1.xpose.msra.mxu0 0.0
        %479 = vmatprep.subr.mxu0 0.0
        %480 = vmatpush1.xpose.msra.mxu0 0.0
        %481 = vmatprep.subr.mxu0 0.0
        %482 = vmatpush1.xpose.msra.mxu0 %v449
        %483 = vmatprep.subr.mxu0 0.0
        %484 = vmatpush2.xpose.msra.mxu0 0.0
        %485 = vmatprep.subr.mxu0 0.0
        %486 = vmatpush2.xpose.msra.mxu0 0.0
        %487 = vmatprep.subr.mxu0 0.0
        %488 = vmatpush2.xpose.msra.mxu0 0.0
        %489 = vmatprep.subr.mxu0 0.0
        %490 = vmatpush2.xpose.msra.mxu0 0.0
        %491 = vmatprep.subr.mxu0 0.0
        %492 = vmatpush2.xpose.msra.mxu0 0.0
        %493 = vmatprep.subr.mxu0 0.0
        %494 = vmatpush2.xpose.msra.mxu0 0.0
        %495 = vmatprep.subr.mxu0 0.0
        %496 = vmatpush2.xpose.msra.mxu0 0.0
        %497 = vmatprep.subr.mxu0 0.0
        %498 = vmatpush2.xpose.msra.mxu0 0.0
        %499 = vmatprep.subr.mxu0 0.0
        %500 = vmatpush2.xpose.msra.mxu0 0.0
        %501 = vmatprep.subr.mxu0 0.0
        %502 = vmatpush2.xpose.msra.mxu0 0.0
        %503 = vmatprep.subr.mxu0 0.0
        %504 = vmatpush2.xpose.msra.mxu0 0.0
        %505 = vmatprep.subr.mxu0 0.0
        %506 = vmatpush2.xpose.msra.mxu0 0.0
        %507 = vmatprep.subr.mxu0 0.0
        %508 = vmatpush2.xpose.msra.mxu0 0.0
        %509 = vmatprep.subr.mxu0 0.0
        %510 = vmatpush2.xpose.msra.mxu0 0.0
        %511 = vmatprep.subr.mxu0 0.0
        %512 = vmatpush2.xpose.msra.mxu0 0.0
        %513 = vmatprep.subr.mxu0 0.0
        %514 = vmatpush2.xpose.msra.mxu0 0.0
        %515 = vmatprep.mubr.f32.mxu0 0.0
        %516 = vmatmul.mubr.f32.gmra.mxu0 %v447
        %v517 = vpop.f32.mrf.mxu0
        %v518 = vadd.f32 0.0, %v517
        %v519 = vpop.f32.mrf.mxu0
        %520 = vdwg.mxu0
        %v521 = vmul.f32 %v518, 0.35355338
        %v522 = vsel %vm446, %v521, -inf
        %523 = vmax.xlane.f32.xlu0 %v522
        %v524 = vpop.xlane.xlu0 %523
        %v525 = vsub.f32 %v521, %v524
        %v526 = vmul.f32 %v525, 1.442695
        %v527 = vpow.pop %v526
        %v528 = vsel %vm446, %v527, 0.0
        %529 = vadd.xlane.f32.xlu0 %v528
        %v530 = vpop.xlane.xlu0 %529
        %v531 = vrcp.pop %v530
        %v532 = vmul.f32 %v527, %v531
        %533 = vrot.lane.b32.xlu0 %v436, 64
        %v534 = vpop.permute.xlu0 %533
        %v537 = vsel %vm446, %v532, 0
        %539 = vmatprep.subr.mxu0 0.0
        %540 = vmatpush1.msra.mxu0 0.0
        %541 = vmatprep.subr.mxu0 0.0
        %542 = vmatpush1.msra.mxu0 0.0
        %543 = vmatprep.subr.mxu0 0.0
        %544 = vmatpush1.msra.mxu0 0.0
        %545 = vmatprep.subr.mxu0 0.0
        %546 = vmatpush1.msra.mxu0 0.0
        %547 = vmatprep.subr.mxu0 0.0
        %548 = vmatpush1.msra.mxu0 0.0
        %549 = vmatprep.subr.mxu0 0.0
        %550 = vmatpush1.msra.mxu0 0.0
        %551 = vmatprep.subr.mxu0 0.0
        %552 = vmatpush1.msra.mxu0 0.0
        %553 = vmatprep.subr.mxu0 0.0
        %554 = vmatpush1.msra.mxu0 0.0
        %555 = vmatprep.subr.mxu0 0.0
        %556 = vmatpush1.msra.mxu0 0.0
        %557 = vmatprep.subr.mxu0 0.0
        %558 = vmatpush1.msra.mxu0 0.0
        %559 = vmatprep.subr.mxu0 0.0
        %560 = vmatpush1.msra.mxu0 0.0
        %561 = vmatprep.subr.mxu0 0.0
        %562 = vmatpush1.msra.mxu0 0.0
        %563 = vmatprep.subr.mxu0 0.0
        %564 = vmatpush1.msra.mxu0 0.0
        %565 = vmatprep.subr.mxu0 0.0
        %566 = vmatpush1.msra.mxu0 0.0
        %567 = vmatprep.subr.mxu0 0.0
        %568 = vmatpush1.msra.mxu0 0.0
        %569 = vmatprep.subr.mxu0 0.0
        %570 = vmatpush1.msra.mxu0 %v534
        %571 = vmatprep.subr.mxu0 0.0
        %572 = vmatpush2.msra.mxu0 0.0
        %573 = vmatprep.subr.mxu0 0.0
        %574 = vmatpush2.msra.mxu0 0.0
        %575 = vmatprep.subr.mxu0 0.0
        %576 = vmatpush2.msra.mxu0 0.0
        %577 = vmatprep.subr.mxu0 0.0
        %578 = vmatpush2.msra.mxu0 0.0
        %579 = vmatprep.subr.mxu0 0.0
        %580 = vmatpush2.msra.mxu0 0.0
        %581 = vmatprep.subr.mxu0 0.0
        %582 = vmatpush2.msra.mxu0 0.0
        %583 = vmatprep.subr.mxu0 0.0
        %584 = vmatpush2.msra.mxu0 0.0
        %585 = vmatprep.subr.mxu0 0.0
        %586 = vmatpush2.msra.mxu0 0.0
        %587 = vmatprep.subr.mxu0 0.0
        %588 = vmatpush2.msra.mxu0 0.0
        %589 = vmatprep.subr.mxu0 0.0
        %590 = vmatpush2.msra.mxu0 0.0
        %591 = vmatprep.subr.mxu0 0.0
        %592 = vmatpush2.msra.mxu0 0.0
        %593 = vmatprep.subr.mxu0 0.0
        %594 = vmatpush2.msra.mxu0 0.0
        %595 = vmatprep.subr.mxu0 0.0
        %596 = vmatpush2.msra.mxu0 0.0
        %597 = vmatprep.subr.mxu0 0.0
        %598 = vmatpush2.msra.mxu0 0.0
        %599 = vmatprep.subr.mxu0 0.0
        %600 = vmatpush2.msra.mxu0 0.0
        %601 = vmatprep.subr.mxu0 0.0
        %602 = vmatpush2.msra.mxu0 0.0
        %603 = vmatprep.mubr.f32.mxu0 0.0
        %604 = vmatmul.mubr.f32.gmra.mxu0 %v537
        %v605 = vpop.f32.mrf.mxu0
        %v606 = vadd.f32 0.0, %v605
        %v607 = vpop.f32.mrf.mxu0
        %608 = vdwg.mxu0
        %609 = vrot.lane.b32.xlu0 %v436, 120
        %v610 = vpop.permute.xlu0 %609
        %611 = vrot.lane.b32.xlu0 %v436, 88
        %v612 = vpop.permute.xlu0 %611
        %v613 = vsel %vm446, %v610, 0
        %v615 = vsel %vm446, %v612, 0
        %617 = vmatprep.subr.mxu0 0.0
        %618 = vmatpush1.xpose.msra.mxu0 0.0
        %619 = vmatprep.subr.mxu0 0.0
        %620 = vmatpush1.xpose.msra.mxu0 0.0
        %621 = vmatprep.subr.mxu0 0.0
        %622 = vmatpush1.xpose.msra.mxu0 0.0
        %623 = vmatprep.subr.mxu0 0.0
        %624 = vmatpush1.xpose.msra.mxu0 0.0
        %625 = vmatprep.subr.mxu0 0.0
        %626 = vmatpush1.xpose.msra.mxu0 0.0
        %627 = vmatprep.subr.mxu0 0.0
        %628 = vmatpush1.xpose.msra.mxu0 0.0
        %629 = vmatprep.subr.mxu0 0.0
        %630 = vmatpush1.xpose.msra.mxu0 0.0
        %631 = vmatprep.subr.mxu0 0.0
        %632 = vmatpush1.xpose.msra.mxu0 0.0
        %633 = vmatprep.subr.mxu0 0.0
        %634 = vmatpush1.xpose.msra.mxu0 0.0
        %635 = vmatprep.subr.mxu0 0.0
        %636 = vmatpush1.xpose.msra.mxu0 0.0
        %637 = vmatprep.subr.mxu0 0.0
        %638 = vmatpush1.xpose.msra.mxu0 0.0
        %639 = vmatprep.subr.mxu0 0.0
        %640 = vmatpush1.xpose.msra.mxu0 0.0
        %641 = vmatprep.subr.mxu0 0.0
        %642 = vmatpush1.xpose.msra.mxu0 0.0
        %643 = vmatprep.subr.mxu0 0.0
        %644 = vmatpush1.xpose.msra.mxu0 0.0
        %645 = vmatprep.subr.mxu0 0.0
        %646 = vmatpush1.xpose.msra.mxu0 0.0
        %647 = vmatprep.subr.mxu0 0.0
        %648 = vmatpush1.xpose.msra.mxu0 %v615
        %649 = vmatprep.subr.mxu0 0.0
        %650 = vmatpush2.xpose.msra.mxu0 0.0
        %651 = vmatprep.subr.mxu0 0.0
        %652 = vmatpush2.xpose.msra.mxu0 0.0
        %653 = vmatprep.subr.mxu0 0.0
        %654 = vmatpush2.xpose.msra.mxu0 0.0
        %655 = vmatprep.subr.mxu0 0.0
        %656 = vmatpush2.xpose.msra.mxu0 0.0
        %657 = vmatprep.subr.mxu0 0.0
        %658 = vmatpush2.xpose.msra.mxu0 0.0
        %659 = vmatprep.subr.mxu0 0.0
        %660 = vmatpush2.xpose.msra.mxu0 0.0
        %661 = vmatprep.subr.mxu0 0.0
        %662 = vmatpush2.xpose.msra.mxu0 0.0
        %663 = vmatprep.subr.mxu0 0.0
        %664 = vmatpush2.xpose.msra.mxu0 0.0
        %665 = vmatprep.subr.mxu0 0.0
        %666 = vmatpush2.xpose.msra.mxu0 0.0
        %667 = vmatprep.subr.mxu0 0.0
        %668 = vmatpush2.xpose.msra.mxu0 0.0
        %669 = vmatprep.subr.mxu0 0.0
        %670 = vmatpush2.xpose.msra.mxu0 0.0
        %671 = vmatprep.subr.mxu0 0.0
        %672 = vmatpush2.xpose.msra.mxu0 0.0
        %673 = vmatprep.subr.mxu0 0.0
        %674 = vmatpush2.xpose.msra.mxu0 0.0
        %675 = vmatprep.subr.mxu0 0.0
        %676 = vmatpush2.xpose.msra.mxu0 0.0
        %677 = vmatprep.subr.mxu0 0.0
        %678 = vmatpush2.xpose.msra.mxu0 0.0
        %679 = vmatprep.subr.mxu0 0.0
        %680 = vmatpush2.xpose.msra.mxu0 0.0
        %681 = vmatprep.mubr.f32.mxu0 0.0
        %682 = vmatmul.mubr.f32.gmra.mxu0 %v613
        %v683 = vpop.f32.mrf.mxu0
        %v684 = vadd.f32 0.0, %v683
        %v685 = vpop.f32.mrf.mxu0
        %686 = vdwg.mxu0
        %v687 = vmul.f32 %v684, 0.35355338
        %v688 = vsel %vm446, %v687, -inf
        %689 = vmax.xlane.f32.xlu0 %v688
        %v690 = vpop.xlane.xlu0 %689
        %v691 = vsub.f32 %v687, %v690
        %v692 = vmul.f32 %v691, 1.442695
        %v693 = vpow.pop %v692
        %v694 = vsel %vm446, %v693, 0.0
        %695 = vadd.xlane.f32.xlu0 %v694
        %v696 = vpop.xlane.xlu0 %695
        %v697 = vrcp.pop %v696
        %v698 = vmul.f32 %v693, %v697
        %699 = vrot.lane.b32.xlu0 %v436, 56
        %v700 = vpop.permute.xlu0 %699
        %v703 = vsel %vm446, %v698, 0
        %705 = vmatprep.subr.mxu0 0.0
        %706 = vmatpush1.msra.mxu0 0.0
        %707 = vmatprep.subr.mxu0 0.0
        %708 = vmatpush1.msra.mxu0 0.0
        %709 = vmatprep.subr.mxu0 0.0
        %710 = vmatpush1.msra.mxu0 0.0
        %711 = vmatprep.subr.mxu0 0.0
        %712 = vmatpush1.msra.mxu0 0.0
        %713 = vmatprep.subr.mxu0 0.0
        %714 = vmatpush1.msra.mxu0 0.0
        %715 = vmatprep.subr.mxu0 0.0
        %716 = vmatpush1.msra.mxu0 0.0
        %717 = vmatprep.subr.mxu0 0.0
        %718 = vmatpush1.msra.mxu0 0.0
        %719 = vmatprep.subr.mxu0 0.0
        %720 = vmatpush1.msra.mxu0 0.0
        %721 = vmatprep.subr.mxu0 0.0
        %722 = vmatpush1.msra.mxu0 0.0
        %723 = vmatprep.subr.mxu0 0.0
        %724 = vmatpush1.msra.mxu0 0.0
        %725 = vmatprep.subr.mxu0 0.0
        %726 = vmatpush1.msra.mxu0 0.0
        %727 = vmatprep.subr.mxu0 0.0
        %728 = vmatpush1.msra.mxu0 0.0
        %729 = vmatprep.subr.mxu0 0.0
        %730 = vmatpush1.msra.mxu0 0.0
        %731 = vmatprep.subr.mxu0 0.0
        %732 = vmatpush1.msra.mxu0 0.0
        %733 = vmatprep.subr.mxu0 0.0
        %734 = vmatpush1.msra.mxu0 0.0
        %735 = vmatprep.subr.mxu0 0.0
        %736 = vmatpush1.msra.mxu0 %v700
        %737 = vmatprep.subr.mxu0 0.0
        %738 = vmatpush2.msra.mxu0 0.0
        %739 = vmatprep.subr.mxu0 0.0
        %740 = vmatpush2.msra.mxu0 0.0
        %741 = vmatprep.subr.mxu0 0.0
        %742 = vmatpush2.msra.mxu0 0.0
        %743 = vmatprep.subr.mxu0 0.0
        %744 = vmatpush2.msra.mxu0 0.0
        %745 = vmatprep.subr.mxu0 0.0
        %746 = vmatpush2.msra.mxu0 0.0
        %747 = vmatprep.subr.mxu0 0.0
        %748 = vmatpush2.msra.mxu0 0.0
        %749 = vmatprep.subr.mxu0 0.0
        %750 = vmatpush2.msra.mxu0 0.0
        %751 = vmatprep.subr.mxu0 0.0
        %752 = vmatpush2.msra.mxu0 0.0
        %753 = vmatprep.subr.mxu0 0.0
        %754 = vmatpush2.msra.mxu0 0.0
        %755 = vmatprep.subr.mxu0 0.0
        %756 = vmatpush2.msra.mxu0 0.0
        %757 = vmatprep.subr.mxu0 0.0
        %758 = vmatpush2.msra.mxu0 0.0
        %759 = vmatprep.subr.mxu0 0.0
        %760 = vmatpush2.msra.mxu0 0.0
        %761 = vmatprep.subr.mxu0 0.0
        %762 = vmatpush2.msra.mxu0 0.0
        %763 = vmatprep.subr.mxu0 0.0
        %764 = vmatpush2.msra.mxu0 0.0
        %765 = vmatprep.subr.mxu0 0.0
        %766 = vmatpush2.msra.mxu0 0.0
        %767 = vmatprep.subr.mxu0 0.0
        %768 = vmatpush2.msra.mxu0 0.0
        %769 = vmatprep.mubr.f32.mxu0 0.0
        %770 = vmatmul.mubr.f32.gmra.mxu0 %v703
        %v771 = vpop.f32.mrf.mxu0
        %v772 = vadd.f32 0.0, %v771
        %v773 = vpop.f32.mrf.mxu0
        %774 = vdwg.mxu0
        %v776 = vsel %vm446, %v772, 0
        %778 = vmatprep.subr.mxu0 0.0
        %779 = vmatpush1.msra.mxu0 0.0
        %780 = vmatprep.subr.mxu0 0.0
        %781 = vmatpush1.msra.mxu0 0.0
        %782 = vmatprep.subr.mxu0 0.0
        %783 = vmatpush1.msra.mxu0 0.0
        %784 = vmatprep.subr.mxu0 0.0
        %785 = vmatpush1.msra.mxu0 0.0
        %786 = vmatprep.subr.mxu0 0.0
        %787 = vmatpush1.msra.mxu0 0.0
        %788 = vmatprep.subr.mxu0 0.0
        %789 = vmatpush1.msra.mxu0 0.0
        %790 = vmatprep.subr.mxu0 0.0
        %791 = vmatpush1.msra.mxu0 0.0
        %792 = vmatprep.subr.mxu0 0.0
        %793 = vmatpush1.msra.mxu0 0.0
        %794 = vmatprep.subr.mxu0 0.0
        %795 = vmatpush1.msra.mxu0 0.0
        %796 = vmatprep.subr.mxu0 0.0
        %797 = vmatpush1.msra.mxu0 0.0
        %798 = vmatprep.subr.mxu0 0.0
        %799 = vmatpush1.msra.mxu0 0.0
        %800 = vmatprep.subr.mxu0 0.0
        %801 = vmatpush1.msra.mxu0 0.0
        %802 = vmatprep.subr.mxu0 0.0
        %803 = vmatpush1.msra.mxu0 0.0
        %804 = vmatprep.subr.mxu0 0.0
        %805 = vmatpush1.msra.mxu0 0.0
        %806 = vmatprep.subr.mxu0 0.0
        %807 = vmatpush1.msra.mxu0 0.0
        %808 = vmatprep.subr.mxu0 0.0
        %809 = vmatpush1.msra.mxu0 %v440
        %810 = vmatprep.subr.mxu0 0.0
        %811 = vmatpush2.msra.mxu0 0.0
        %812 = vmatprep.subr.mxu0 0.0
        %813 = vmatpush2.msra.mxu0 0.0
        %814 = vmatprep.subr.mxu0 0.0
        %815 = vmatpush2.msra.mxu0 0.0
        %816 = vmatprep.subr.mxu0 0.0
        %817 = vmatpush2.msra.mxu0 0.0
        %818 = vmatprep.subr.mxu0 0.0
        %819 = vmatpush2.msra.mxu0 0.0
        %820 = vmatprep.subr.mxu0 0.0
        %821 = vmatpush2.msra.mxu0 0.0
        %822 = vmatprep.subr.mxu0 0.0
        %823 = vmatpush2.msra.mxu0 0.0
        %824 = vmatprep.subr.mxu0 0.0
        %825 = vmatpush2.msra.mxu0 0.0
        %826 = vmatprep.subr.mxu0 0.0
        %827 = vmatpush2.msra.mxu0 0.0
        %828 = vmatprep.subr.mxu0 0.0
        %829 = vmatpush2.msra.mxu0 0.0
        %830 = vmatprep.subr.mxu0 0.0
        %831 = vmatpush2.msra.mxu0 0.0
        %832 = vmatprep.subr.mxu0 0.0
        %833 = vmatpush2.msra.mxu0 0.0
        %834 = vmatprep.subr.mxu0 0.0
        %835 = vmatpush2.msra.mxu0 0.0
        %836 = vmatprep.subr.mxu0 0.0
        %837 = vmatpush2.msra.mxu0 0.0
        %838 = vmatprep.subr.mxu0 0.0
        %839 = vmatpush2.msra.mxu0 0.0
        %840 = vmatprep.subr.mxu0 0.0
        %841 = vmatpush2.msra.mxu0 0.0
        %842 = vmatprep.mubr.f32.mxu0 0.0
        %843 = vmatmul.mubr.f32.gmra.mxu0 %v776
        %v844 = vpop.f32.mrf.mxu0
        %v845 = vadd.f32 0.0, %v844
        %v846 = vpop.f32.mrf.mxu0
        %847 = vdwg.mxu0
        %v849 = vsel %vm446, %v606, 0
        %851 = vmatprep.subr.mxu0 0.0
        %852 = vmatpush1.msra.mxu0 0.0
        %853 = vmatprep.subr.mxu0 0.0
        %854 = vmatpush1.msra.mxu0 0.0
        %855 = vmatprep.subr.mxu0 0.0
        %856 = vmatpush1.msra.mxu0 0.0
        %857 = vmatprep.subr.mxu0 0.0
        %858 = vmatpush1.msra.mxu0 0.0
        %859 = vmatprep.subr.mxu0 0.0
        %860 = vmatpush1.msra.mxu0 0.0
        %861 = vmatprep.subr.mxu0 0.0
        %862 = vmatpush1.msra.mxu0 0.0
        %863 = vmatprep.subr.mxu0 0.0
        %864 = vmatpush1.msra.mxu0 0.0
        %865 = vmatprep.subr.mxu0 0.0
        %866 = vmatpush1.msra.mxu0 0.0
        %867 = vmatprep.subr.mxu0 0.0
        %868 = vmatpush1.msra.mxu0 0.0
        %869 = vmatprep.subr.mxu0 0.0
        %870 = vmatpush1.msra.mxu0 0.0
        %871 = vmatprep.subr.mxu0 0.0
        %872 = vmatpush1.msra.mxu0 0.0
        %873 = vmatprep.subr.mxu0 0.0
        %874 = vmatpush1.msra.mxu0 0.0
        %875 = vmatprep.subr.mxu0 0.0
        %876 = vmatpush1.msra.mxu0 0.0
        %877 = vmatprep.subr.mxu0 0.0
        %878 = vmatpush1.msra.mxu0 0.0
        %879 = vmatprep.subr.mxu0 0.0
        %880 = vmatpush1.msra.mxu0 0.0
        %881 = vmatprep.subr.mxu0 0.0
        %882 = vmatpush1.msra.mxu0 %v439
        %883 = vmatprep.subr.mxu0 0.0
        %884 = vmatpush2.msra.mxu0 0.0
        %885 = vmatprep.subr.mxu0 0.0
        %886 = vmatpush2.msra.mxu0 0.0
        %887 = vmatprep.subr.mxu0 0.0
        %888 = vmatpush2.msra.mxu0 0.0
        %889 = vmatprep.subr.mxu0 0.0
        %890 = vmatpush2.msra.mxu0 0.0
        %891 = vmatprep.subr.mxu0 0.0
        %892 = vmatpush2.msra.mxu0 0.0
        %893 = vmatprep.subr.mxu0 0.0
        %894 = vmatpush2.msra.mxu0 0.0
        %895 = vmatprep.subr.mxu0 0.0
        %896 = vmatpush2.msra.mxu0 0.0
        %897 = vmatprep.subr.mxu0 0.0
        %898 = vmatpush2.msra.mxu0 0.0
        %899 = vmatprep.subr.mxu0 0.0
        %900 = vmatpush2.msra.mxu0 0.0
        %901 = vmatprep.subr.mxu0 0.0
        %902 = vmatpush2.msra.mxu0 0.0
        %903 = vmatprep.subr.mxu0 0.0
        %904 = vmatpush2.msra.mxu0 0.0
        %905 = vmatprep.subr.mxu0 0.0
        %906 = vmatpush2.msra.mxu0 0.0
        %907 = vmatprep.subr.mxu0 0.0
        %908 = vmatpush2.msra.mxu0 0.0
        %909 = vmatprep.subr.mxu0 0.0
        %910 = vmatpush2.msra.mxu0 0.0
        %911 = vmatprep.subr.mxu0 0.0
        %912 = vmatpush2.msra.mxu0 0.0
        %913 = vmatprep.subr.mxu0 0.0
        %914 = vmatpush2.msra.mxu0 0.0
        %915 = vmatprep.mubr.f32.mxu0 0.0
        %916 = vmatmul.mubr.f32.gmra.mxu0 %v849
        %v917 = vpop.f32.mrf.mxu0
        %v918 = vadd.f32 %v845, %v917
        %v919 = vpop.f32.mrf.mxu0
        %920 = vdwg.mxu0
        %921 = vrot.lane.b32.xlu0 %v436, 112
        %v922 = vpop.permute.xlu0 %921
        %923 = vrot.lane.b32.xlu0 %v436, 80
        %v924 = vpop.permute.xlu0 %923
        %v925 = vsel %vm446, %v922, 0
        %v927 = vsel %vm446, %v924, 0
        %929 = vmatprep.subr.mxu0 0.0
        %930 = vmatpush1.xpose.msra.mxu0 0.0
        %931 = vmatprep.subr.mxu0 0.0
        %932 = vmatpush1.xpose.msra.mxu0 0.0
        %933 = vmatprep.subr.mxu0 0.0
        %934 = vmatpush1.xpose.msra.mxu0 0.0
        %935 = vmatprep.subr.mxu0 0.0
        %936 = vmatpush1.xpose.msra.mxu0 0.0
        %937 = vmatprep.subr.mxu0 0.0
        %938 = vmatpush1.xpose.msra.mxu0 0.0
        %939 = vmatprep.subr.mxu0 0.0
        %940 = vmatpush1.xpose.msra.mxu0 0.0
        %941 = vmatprep.subr.mxu0 0.0
        %942 = vmatpush1.xpose.msra.mxu0 0.0
        %943 = vmatprep.subr.mxu0 0.0
        %944 = vmatpush1.xpose.msra.mxu0 0.0
        %945 = vmatprep.subr.mxu0 0.0
        %946 = vmatpush1.xpose.msra.mxu0 0.0
        %947 = vmatprep.subr.mxu0 0.0
        %948 = vmatpush1.xpose.msra.mxu0 0.0
        %949 = vmatprep.subr.mxu0 0.0
        %950 = vmatpush1.xpose.msra.mxu0 0.0
        %951 = vmatprep.subr.mxu0 0.0
        %952 = vmatpush1.xpose.msra.mxu0 0.0
        %953 = vmatprep.subr.mxu0 0.0
        %954 = vmatpush1.xpose.msra.mxu0 0.0
        %955 = vmatprep.subr.mxu0 0.0
        %956 = vmatpush1.xpose.msra.mxu0 0.0
        %957 = vmatprep.subr.mxu0 0.0
        %958 = vmatpush1.xpose.msra.mxu0 0.0
        %959 = vmatprep.subr.mxu0 0.0
        %960 = vmatpush1.xpose.msra.mxu0 %v927
        %961 = vmatprep.subr.mxu0 0.0
        %962 = vmatpush2.xpose.msra.mxu0 0.0
        %963 = vmatprep.subr.mxu0 0.0
        %964 = vmatpush2.xpose.msra.mxu0 0.0
        %965 = vmatprep.subr.mxu0 0.0
        %966 = vmatpush2.xpose.msra.mxu0 0.0
        %967 = vmatprep.subr.mxu0 0.0
        %968 = vmatpush2.xpose.msra.mxu0 0.0
        %969 = vmatprep.subr.mxu0 0.0
        %970 = vmatpush2.xpose.msra.mxu0 0.0
        %971 = vmatprep.subr.mxu0 0.0
        %972 = vmatpush2.xpose.msra.mxu0 0.0
        %973 = vmatprep.subr.mxu0 0.0
        %974 = vmatpush2.xpose.msra.mxu0 0.0
        %975 = vmatprep.subr.mxu0 0.0
        %976 = vmatpush2.xpose.msra.mxu0 0.0
        %977 = vmatprep.subr.mxu0 0.0
        %978 = vmatpush2.xpose.msra.mxu0 0.0
        %979 = vmatprep.subr.mxu0 0.0
        %980 = vmatpush2.xpose.msra.mxu0 0.0
        %981 = vmatprep.subr.mxu0 0.0
        %982 = vmatpush2.xpose.msra.mxu0 0.0
        %983 = vmatprep.subr.mxu0 0.0
        %984 = vmatpush2.xpose.msra.mxu0 0.0
        %985 = vmatprep.subr.mxu0 0.0
        %986 = vmatpush2.xpose.msra.mxu0 0.0
        %987 = vmatprep.subr.mxu0 0.0
        %988 = vmatpush2.xpose.msra.mxu0 0.0
        %989 = vmatprep.subr.mxu0 0.0
        %990 = vmatpush2.xpose.msra.mxu0 0.0
        %991 = vmatprep.subr.mxu0 0.0
        %992 = vmatpush2.xpose.msra.mxu0 0.0
        %993 = vmatprep.mubr.f32.mxu0 0.0
        %994 = vmatmul.mubr.f32.gmra.mxu0 %v925
        %v995 = vpop.f32.mrf.mxu0
        %v996 = vadd.f32 0.0, %v995
        %v997 = vpop.f32.mrf.mxu0
        %998 = vdwg.mxu0
        %v999 = vmul.f32 %v996, 0.35355338
        %v1000 = vsel %vm446, %v999, -inf
        %1001 = vmax.xlane.f32.xlu0 %v1000
        %v1002 = vpop.xlane.xlu0 %1001
        %v1003 = vsub.f32 %v999, %v1002
        %v1004 = vmul.f32 %v1003, 1.442695
        %v1005 = vpow.pop %v1004
        %v1006 = vsel %vm446, %v1005, 0.0
        %1007 = vadd.xlane.f32.xlu0 %v1006
        %v1008 = vpop.xlane.xlu0 %1007
        %v1009 = vrcp.pop %v1008
        %v1010 = vmul.f32 %v1005, %v1009
        %1011 = vrot.lane.b32.xlu0 %v436, 48
        %v1012 = vpop.permute.xlu0 %1011
        %v1015 = vsel %vm446, %v1010, 0
        %1017 = vmatprep.subr.mxu0 0.0
        %1018 = vmatpush1.msra.mxu0 0.0
        %1019 = vmatprep.subr.mxu0 0.0
        %1020 = vmatpush1.msra.mxu0 0.0
        %1021 = vmatprep.subr.mxu0 0.0
        %1022 = vmatpush1.msra.mxu0 0.0
        %1023 = vmatprep.subr.mxu0 0.0
        %1024 = vmatpush1.msra.mxu0 0.0
        %1025 = vmatprep.subr.mxu0 0.0
        %1026 = vmatpush1.msra.mxu0 0.0
        %1027 = vmatprep.subr.mxu0 0.0
        %1028 = vmatpush1.msra.mxu0 0.0
        %1029 = vmatprep.subr.mxu0 0.0
        %1030 = vmatpush1.msra.mxu0 0.0
        %1031 = vmatprep.subr.mxu0 0.0
        %1032 = vmatpush1.msra.mxu0 0.0
        %1033 = vmatprep.subr.mxu0 0.0
        %1034 = vmatpush1.msra.mxu0 0.0
        %1035 = vmatprep.subr.mxu0 0.0
        %1036 = vmatpush1.msra.mxu0 0.0
        %1037 = vmatprep.subr.mxu0 0.0
        %1038 = vmatpush1.msra.mxu0 0.0
        %1039 = vmatprep.subr.mxu0 0.0
        %1040 = vmatpush1.msra.mxu0 0.0
        %1041 = vmatprep.subr.mxu0 0.0
        %1042 = vmatpush1.msra.mxu0 0.0
        %1043 = vmatprep.subr.mxu0 0.0
        %1044 = vmatpush1.msra.mxu0 0.0
        %1045 = vmatprep.subr.mxu0 0.0
        %1046 = vmatpush1.msra.mxu0 0.0
        %1047 = vmatprep.subr.mxu0 0.0
        %1048 = vmatpush1.msra.mxu0 %v1012
        %1049 = vmatprep.subr.mxu0 0.0
        %1050 = vmatpush2.msra.mxu0 0.0
        %1051 = vmatprep.subr.mxu0 0.0
        %1052 = vmatpush2.msra.mxu0 0.0
        %1053 = vmatprep.subr.mxu0 0.0
        %1054 = vmatpush2.msra.mxu0 0.0
        %1055 = vmatprep.subr.mxu0 0.0
        %1056 = vmatpush2.msra.mxu0 0.0
        %1057 = vmatprep.subr.mxu0 0.0
        %1058 = vmatpush2.msra.mxu0 0.0
        %1059 = vmatprep.subr.mxu0 0.0
        %1060 = vmatpush2.msra.mxu0 0.0
        %1061 = vmatprep.subr.mxu0 0.0
        %1062 = vmatpush2.msra.mxu0 0.0
        %1063 = vmatprep.subr.mxu0 0.0
        %1064 = vmatpush2.msra.mxu0 0.0
        %1065 = vmatprep.subr.mxu0 0.0
        %1066 = vmatpush2.msra.mxu0 0.0
        %1067 = vmatprep.subr.mxu0 0.0
        %1068 = vmatpush2.msra.mxu0 0.0
        %1069 = vmatprep.subr.mxu0 0.0
        %1070 = vmatpush2.msra.mxu0 0.0
        %1071 = vmatprep.subr.mxu0 0.0
        %1072 = vmatpush2.msra.mxu0 0.0
        %1073 = vmatprep.subr.mxu0 0.0
        %1074 = vmatpush2.msra.mxu0 0.0
        %1075 = vmatprep.subr.mxu0 0.0
        %1076 = vmatpush2.msra.mxu0 0.0
        %1077 = vmatprep.subr.mxu0 0.0
        %1078 = vmatpush2.msra.mxu0 0.0
        %1079 = vmatprep.subr.mxu0 0.0
        %1080 = vmatpush2.msra.mxu0 0.0
        %1081 = vmatprep.mubr.f32.mxu0 0.0
        %1082 = vmatmul.mubr.f32.gmra.mxu0 %v1015
        %v1083 = vpop.f32.mrf.mxu0
        %v1084 = vadd.f32 0.0, %v1083
        %v1085 = vpop.f32.mrf.mxu0
        %1086 = vdwg.mxu0
        %v1088 = vsel %vm446, %v1084, 0
        %1090 = vmatprep.subr.mxu0 0.0
        %1091 = vmatpush1.msra.mxu0 0.0
        %1092 = vmatprep.subr.mxu0 0.0
        %1093 = vmatpush1.msra.mxu0 0.0
        %1094 = vmatprep.subr.mxu0 0.0
        %1095 = vmatpush1.msra.mxu0 0.0
        %1096 = vmatprep.subr.mxu0 0.0
        %1097 = vmatpush1.msra.mxu0 0.0
        %1098 = vmatprep.subr.mxu0 0.0
        %1099 = vmatpush1.msra.mxu0 0.0
        %1100 = vmatprep.subr.mxu0 0.0
        %1101 = vmatpush1.msra.mxu0 0.0
        %1102 = vmatprep.subr.mxu0 0.0
        %1103 = vmatpush1.msra.mxu0 0.0
        %1104 = vmatprep.subr.mxu0 0.0
        %1105 = vmatpush1.msra.mxu0 0.0
        %1106 = vmatprep.subr.mxu0 0.0
        %1107 = vmatpush1.msra.mxu0 0.0
        %1108 = vmatprep.subr.mxu0 0.0
        %1109 = vmatpush1.msra.mxu0 0.0
        %1110 = vmatprep.subr.mxu0 0.0
        %1111 = vmatpush1.msra.mxu0 0.0
        %1112 = vmatprep.subr.mxu0 0.0
        %1113 = vmatpush1.msra.mxu0 0.0
        %1114 = vmatprep.subr.mxu0 0.0
        %1115 = vmatpush1.msra.mxu0 0.0
        %1116 = vmatprep.subr.mxu0 0.0
        %1117 = vmatpush1.msra.mxu0 0.0
        %1118 = vmatprep.subr.mxu0 0.0
        %1119 = vmatpush1.msra.mxu0 0.0
        %1120 = vmatprep.subr.mxu0 0.0
        %1121 = vmatpush1.msra.mxu0 %v441
        %1122 = vmatprep.subr.mxu0 0.0
        %1123 = vmatpush2.msra.mxu0 0.0
        %1124 = vmatprep.subr.mxu0 0.0
        %1125 = vmatpush2.msra.mxu0 0.0
        %1126 = vmatprep.subr.mxu0 0.0
        %1127 = vmatpush2.msra.mxu0 0.0
        %1128 = vmatprep.subr.mxu0 0.0
        %1129 = vmatpush2.msra.mxu0 0.0
        %1130 = vmatprep.subr.mxu0 0.0
        %1131 = vmatpush2.msra.mxu0 0.0
        %1132 = vmatprep.subr.mxu0 0.0
        %1133 = vmatpush2.msra.mxu0 0.0
        %1134 = vmatprep.subr.mxu0 0.0
        %1135 = vmatpush2.msra.mxu0 0.0
        %1136 = vmatprep.subr.mxu0 0.0
        %1137 = vmatpush2.msra.mxu0 0.0
        %1138 = vmatprep.subr.mxu0 0.0
        %1139 = vmatpush2.msra.mxu0 0.0
        %1140 = vmatprep.subr.mxu0 0.0
        %1141 = vmatpush2.msra.mxu0 0.0
        %1142 = vmatprep.subr.mxu0 0.0
        %1143 = vmatpush2.msra.mxu0 0.0
        %1144 = vmatprep.subr.mxu0 0.0
        %1145 = vmatpush2.msra.mxu0 0.0
        %1146 = vmatprep.subr.mxu0 0.0
        %1147 = vmatpush2.msra.mxu0 0.0
        %1148 = vmatprep.subr.mxu0 0.0
        %1149 = vmatpush2.msra.mxu0 0.0
        %1150 = vmatprep.subr.mxu0 0.0
        %1151 = vmatpush2.msra.mxu0 0.0
        %1152 = vmatprep.subr.mxu0 0.0
        %1153 = vmatpush2.msra.mxu0 0.0
        %1154 = vmatprep.mubr.f32.mxu0 0.0
        %1155 = vmatmul.mubr.f32.gmra.mxu0 %v1088
        %v1156 = vpop.f32.mrf.mxu0
        %v1157 = vadd.f32 0.0, %v1156
        %v1158 = vpop.f32.mrf.mxu0
        %1159 = vdwg.mxu0
        %v1160 = vadd.f32 %v918, %v1157
        %1161 = vrot.lane.b32.xlu0 %v436, 104
        %v1162 = vpop.permute.xlu0 %1161
        %1163 = vrot.lane.b32.xlu0 %v436, 72
        %v1164 = vpop.permute.xlu0 %1163
        %v1165 = vsel %vm446, %v1162, 0
        %v1167 = vsel %vm446, %v1164, 0
        %1169 = vmatprep.subr.mxu0 0.0
        %1170 = vmatpush1.xpose.msra.mxu0 0.0
        %1171 = vmatprep.subr.mxu0 0.0
        %1172 = vmatpush1.xpose.msra.mxu0 0.0
        %1173 = vmatprep.subr.mxu0 0.0
        %1174 = vmatpush1.xpose.msra.mxu0 0.0
        %1175 = vmatprep.subr.mxu0 0.0
        %1176 = vmatpush1.xpose.msra.mxu0 0.0
        %1177 = vmatprep.subr.mxu0 0.0
        %1178 = vmatpush1.xpose.msra.mxu0 0.0
        %1179 = vmatprep.subr.mxu0 0.0
        %1180 = vmatpush1.xpose.msra.mxu0 0.0
        %1181 = vmatprep.subr.mxu0 0.0
        %1182 = vmatpush1.xpose.msra.mxu0 0.0
        %1183 = vmatprep.subr.mxu0 0.0
        %1184 = vmatpush1.xpose.msra.mxu0 0.0
        %1185 = vmatprep.subr.mxu0 0.0
        %1186 = vmatpush1.xpose.msra.mxu0 0.0
        %1187 = vmatprep.subr.mxu0 0.0
        %1188 = vmatpush1.xpose.msra.mxu0 0.0
        %1189 = vmatprep.subr.mxu0 0.0
        %1190 = vmatpush1.xpose.msra.mxu0 0.0
        %1191 = vmatprep.subr.mxu0 0.0
        %1192 = vmatpush1.xpose.msra.mxu0 0.0
        %1193 = vmatprep.subr.mxu0 0.0
        %1194 = vmatpush1.xpose.msra.mxu0 0.0
        %1195 = vmatprep.subr.mxu0 0.0
        %1196 = vmatpush1.xpose.msra.mxu0 0.0
        %1197 = vmatprep.subr.mxu0 0.0
        %1198 = vmatpush1.xpose.msra.mxu0 0.0
        %1199 = vmatprep.subr.mxu0 0.0
        %1200 = vmatpush1.xpose.msra.mxu0 %v1167
        %1201 = vmatprep.subr.mxu0 0.0
        %1202 = vmatpush2.xpose.msra.mxu0 0.0
        %1203 = vmatprep.subr.mxu0 0.0
        %1204 = vmatpush2.xpose.msra.mxu0 0.0
        %1205 = vmatprep.subr.mxu0 0.0
        %1206 = vmatpush2.xpose.msra.mxu0 0.0
        %1207 = vmatprep.subr.mxu0 0.0
        %1208 = vmatpush2.xpose.msra.mxu0 0.0
        %1209 = vmatprep.subr.mxu0 0.0
        %1210 = vmatpush2.xpose.msra.mxu0 0.0
        %1211 = vmatprep.subr.mxu0 0.0
        %1212 = vmatpush2.xpose.msra.mxu0 0.0
        %1213 = vmatprep.subr.mxu0 0.0
        %1214 = vmatpush2.xpose.msra.mxu0 0.0
        %1215 = vmatprep.subr.mxu0 0.0
        %1216 = vmatpush2.xpose.msra.mxu0 0.0
        %1217 = vmatprep.subr.mxu0 0.0
        %1218 = vmatpush2.xpose.msra.mxu0 0.0
        %1219 = vmatprep.subr.mxu0 0.0
        %1220 = vmatpush2.xpose.msra.mxu0 0.0
        %1221 = vmatprep.subr.mxu0 0.0
        %1222 = vmatpush2.xpose.msra.mxu0 0.0
        %1223 = vmatprep.subr.mxu0 0.0
        %1224 = vmatpush2.xpose.msra.mxu0 0.0
        %1225 = vmatprep.subr.mxu0 0.0
        %1226 = vmatpush2.xpose.msra.mxu0 0.0
        %1227 = vmatprep.subr.mxu0 0.0
        %1228 = vmatpush2.xpose.msra.mxu0 0.0
        %1229 = vmatprep.subr.mxu0 0.0
        %1230 = vmatpush2.xpose.msra.mxu0 0.0
        %1231 = vmatprep.subr.mxu0 0.0
        %1232 = vmatpush2.xpose.msra.mxu0 0.0
        %1233 = vmatprep.mubr.f32.mxu0 0.0
        %1234 = vmatmul.mubr.f32.gmra.mxu0 %v1165
        %v1235 = vpop.f32.mrf.mxu0
        %v1236 = vadd.f32 0.0, %v1235
        %v1237 = vpop.f32.mrf.mxu0
        %1238 = vdwg.mxu0
        %v1239 = vmul.f32 %v1236, 0.35355338
        %v1240 = vsel %vm446, %v1239, -inf
        %1241 = vmax.xlane.f32.xlu0 %v1240
        %v1242 = vpop.xlane.xlu0 %1241
        %v1243 = vsub.f32 %v1239, %v1242
        %v1244 = vmul.f32 %v1243, 1.442695
        %v1245 = vpow.pop %v1244
        %v1246 = vsel %vm446, %v1245, 0.0
        %1247 = vadd.xlane.f32.xlu0 %v1246
        %v1248 = vpop.xlane.xlu0 %1247
        %v1249 = vrcp.pop %v1248
        %v1250 = vmul.f32 %v1245, %v1249
        %1251 = vrot.lane.b32.xlu0 %v436, 40
        %v1252 = vpop.permute.xlu0 %1251
        %v1255 = vsel %vm446, %v1250, 0
        %1257 = vmatprep.subr.mxu0 0.0
        %1258 = vmatpush1.msra.mxu0 0.0
        %1259 = vmatprep.subr.mxu0 0.0
        %1260 = vmatpush1.msra.mxu0 0.0
        %1261 = vmatprep.subr.mxu0 0.0
        %1262 = vmatpush1.msra.mxu0 0.0
        %1263 = vmatprep.subr.mxu0 0.0
        %1264 = vmatpush1.msra.mxu0 0.0
        %1265 = vmatprep.subr.mxu0 0.0
        %1266 = vmatpush1.msra.mxu0 0.0
        %1267 = vmatprep.subr.mxu0 0.0
        %1268 = vmatpush1.msra.mxu0 0.0
        %1269 = vmatprep.subr.mxu0 0.0
        %1270 = vmatpush1.msra.mxu0 0.0
        %1271 = vmatprep.subr.mxu0 0.0
        %1272 = vmatpush1.msra.mxu0 0.0
        %1273 = vmatprep.subr.mxu0 0.0
        %1274 = vmatpush1.msra.mxu0 0.0
        %1275 = vmatprep.subr.mxu0 0.0
        %1276 = vmatpush1.msra.mxu0 0.0
        %1277 = vmatprep.subr.mxu0 0.0
        %1278 = vmatpush1.msra.mxu0 0.0
        %1279 = vmatprep.subr.mxu0 0.0
        %1280 = vmatpush1.msra.mxu0 0.0
        %1281 = vmatprep.subr.mxu0 0.0
        %1282 = vmatpush1.msra.mxu0 0.0
        %1283 = vmatprep.subr.mxu0 0.0
        %1284 = vmatpush1.msra.mxu0 0.0
        %1285 = vmatprep.subr.mxu0 0.0
        %1286 = vmatpush1.msra.mxu0 0.0
        %1287 = vmatprep.subr.mxu0 0.0
        %1288 = vmatpush1.msra.mxu0 %v1252
        %1289 = vmatprep.subr.mxu0 0.0
        %1290 = vmatpush2.msra.mxu0 0.0
        %1291 = vmatprep.subr.mxu0 0.0
        %1292 = vmatpush2.msra.mxu0 0.0
        %1293 = vmatprep.subr.mxu0 0.0
        %1294 = vmatpush2.msra.mxu0 0.0
        %1295 = vmatprep.subr.mxu0 0.0
        %1296 = vmatpush2.msra.mxu0 0.0
        %1297 = vmatprep.subr.mxu0 0.0
        %1298 = vmatpush2.msra.mxu0 0.0
        %1299 = vmatprep.subr.mxu0 0.0
        %1300 = vmatpush2.msra.mxu0 0.0
        %1301 = vmatprep.subr.mxu0 0.0
        %1302 = vmatpush2.msra.mxu0 0.0
        %1303 = vmatprep.subr.mxu0 0.0
        %1304 = vmatpush2.msra.mxu0 0.0
        %1305 = vmatprep.subr.mxu0 0.0
        %1306 = vmatpush2.msra.mxu0 0.0
        %1307 = vmatprep.subr.mxu0 0.0
        %1308 = vmatpush2.msra.mxu0 0.0
        %1309 = vmatprep.subr.mxu0 0.0
        %1310 = vmatpush2.msra.mxu0 0.0
        %1311 = vmatprep.subr.mxu0 0.0
        %1312 = vmatpush2.msra.mxu0 0.0
        %1313 = vmatprep.subr.mxu0 0.0
        %1314 = vmatpush2.msra.mxu0 0.0
        %1315 = vmatprep.subr.mxu0 0.0
        %1316 = vmatpush2.msra.mxu0 0.0
        %1317 = vmatprep.subr.mxu0 0.0
        %1318 = vmatpush2.msra.mxu0 0.0
        %1319 = vmatprep.subr.mxu0 0.0
        %1320 = vmatpush2.msra.mxu0 0.0
        %1321 = vmatprep.mubr.f32.mxu0 0.0
        %1322 = vmatmul.mubr.f32.gmra.mxu0 %v1255
        %v1323 = vpop.f32.mrf.mxu0
        %v1324 = vadd.f32 0.0, %v1323
        %v1325 = vpop.f32.mrf.mxu0
        %1326 = vdwg.mxu0
        %v1328 = vsel %vm446, %v1324, 0
        %1330 = vmatprep.subr.mxu0 0.0
        %1331 = vmatpush1.msra.mxu0 0.0
        %1332 = vmatprep.subr.mxu0 0.0
        %1333 = vmatpush1.msra.mxu0 0.0
        %1334 = vmatprep.subr.mxu0 0.0
        %1335 = vmatpush1.msra.mxu0 0.0
        %1336 = vmatprep.subr.mxu0 0.0
        %1337 = vmatpush1.msra.mxu0 0.0
        %1338 = vmatprep.subr.mxu0 0.0
        %1339 = vmatpush1.msra.mxu0 0.0
        %1340 = vmatprep.subr.mxu0 0.0
        %1341 = vmatpush1.msra.mxu0 0.0
        %1342 = vmatprep.subr.mxu0 0.0
        %1343 = vmatpush1.msra.mxu0 0.0
        %1344 = vmatprep.subr.mxu0 0.0
        %1345 = vmatpush1.msra.mxu0 0.0
        %1346 = vmatprep.subr.mxu0 0.0
        %1347 = vmatpush1.msra.mxu0 0.0
        %1348 = vmatprep.subr.mxu0 0.0
        %1349 = vmatpush1.msra.mxu0 0.0
        %1350 = vmatprep.subr.mxu0 0.0
        %1351 = vmatpush1.msra.mxu0 0.0
        %1352 = vmatprep.subr.mxu0 0.0
        %1353 = vmatpush1.msra.mxu0 0.0
        %1354 = vmatprep.subr.mxu0 0.0
        %1355 = vmatpush1.msra.mxu0 0.0
        %1356 = vmatprep.subr.mxu0 0.0
        %1357 = vmatpush1.msra.mxu0 0.0
        %1358 = vmatprep.subr.mxu0 0.0
        %1359 = vmatpush1.msra.mxu0 0.0
        %1360 = vmatprep.subr.mxu0 0.0
        %1361 = vmatpush1.msra.mxu0 %v442
        %1362 = vmatprep.subr.mxu0 0.0
        %1363 = vmatpush2.msra.mxu0 0.0
        %1364 = vmatprep.subr.mxu0 0.0
        %1365 = vmatpush2.msra.mxu0 0.0
        %1366 = vmatprep.subr.mxu0 0.0
        %1367 = vmatpush2.msra.mxu0 0.0
        %1368 = vmatprep.subr.mxu0 0.0
        %1369 = vmatpush2.msra.mxu0 0.0
        %1370 = vmatprep.subr.mxu0 0.0
        %1371 = vmatpush2.msra.mxu0 0.0
        %1372 = vmatprep.subr.mxu0 0.0
        %1373 = vmatpush2.msra.mxu0 0.0
        %1374 = vmatprep.subr.mxu0 0.0
        %1375 = vmatpush2.msra.mxu0 0.0
        %1376 = vmatprep.subr.mxu0 0.0
        %1377 = vmatpush2.msra.mxu0 0.0
        %1378 = vmatprep.subr.mxu0 0.0
        %1379 = vmatpush2.msra.mxu0 0.0
        %1380 = vmatprep.subr.mxu0 0.0
        %1381 = vmatpush2.msra.mxu0 0.0
        %1382 = vmatprep.subr.mxu0 0.0
        %1383 = vmatpush2.msra.mxu0 0.0
        %1384 = vmatprep.subr.mxu0 0.0
        %1385 = vmatpush2.msra.mxu0 0.0
        %1386 = vmatprep.subr.mxu0 0.0
        %1387 = vmatpush2.msra.mxu0 0.0
        %1388 = vmatprep.subr.mxu0 0.0
        %1389 = vmatpush2.msra.mxu0 0.0
        %1390 = vmatprep.subr.mxu0 0.0
        %1391 = vmatpush2.msra.mxu0 0.0
        %1392 = vmatprep.subr.mxu0 0.0
        %1393 = vmatpush2.msra.mxu0 0.0
        %1394 = vmatprep.mubr.f32.mxu0 0.0
        %1395 = vmatmul.mubr.f32.gmra.mxu0 %v1328
        %v1396 = vpop.f32.mrf.mxu0
        %v1397 = vadd.f32 0.0, %v1396
        %v1398 = vpop.f32.mrf.mxu0
        %1399 = vdwg.mxu0
        %v1400 = vadd.f32 %v1160, %v1397
        %v1401 = vadd.f32 %v328, %v1400
        %v1402 = vlaneseq
        %v1403 = vshrl.u32 %v1402, 7
        %v1404 = vsub.s32 2, %v1403
        %v1405 = vrot.slane %v329, %v1404
        %v1406 = vadd.f32 %v1401, %v1405
        %v1407 = vsel %vm330, %v1406, 0.0
        %1408 = vadd.xlane.f32.xlu0 %v1407
        %v1409 = vpop.xlane.xlu0 %1408
        %v1410 = vmul.f32 %v1409, %v334
        %v1411 = vsub.f32 %v1406, %v1410
        %v1412 = vmul.f32 %v1411, %v1411
        %v1413 = vsel %vm330, %v1412, 0.0
        %1414 = vadd.xlane.f32.xlu0 %v1413
        %v1415 = vpop.xlane.xlu0 %1414
        %v1416 = vmul.f32 %v1415, %v334
        %v1417 = vadd.f32 %v1416, 1e-06
        %v1418 = vrsqrt.pop %v1417
        %v1419 = vmul.f32 %v1411, %v1418
        %v1420 = vlaneseq
        %v1421 = vshrl.u32 %v1420, 7
        %v1422 = vsub.s32 3, %v1421
        %v1423 = vrot.slane %v329, %v1422
        %v1424 = vmul.f32 %v1419, %v1423
        %v1425 = vlaneseq
        %v1426 = vshrl.u32 %v1425, 7
        %v1427 = vsub.s32 4, %v1426
        %v1428 = vrot.slane %v329, %v1427
        %v1429 = vadd.f32 %v1424, %v1428
        %v1430 = vld [vmem:[%s4] sm:$0xff]
        %v1431 = vld [vmem:[%s4 + $0x8] sm:$0xff]
        %v1432 = vld [vmem:[%s4 + $0x10] sm:$0xff]
        %v1433 = vld [vmem:[%s4 + $0x18] sm:$0xff]
        %v1434 = vld [vmem:[%s5] sm:$0x1]
        %v1436 = vlaneseq
        %v1437 = vshrl.u32 %v1436, 7
        %v1438 = vsub.s32 0, %v1437
        %v1439 = vrot.slane %v1434, %v1438
        %v1442 = vsel %vm330, %v1429, 0
        %1444 = vmatprep.subr.mxu0 0.0
        %1445 = vmatpush1.msra.mxu0 0.0
        %1446 = vmatprep.subr.mxu0 0.0
        %1447 = vmatpush1.msra.mxu0 0.0
        %1448 = vmatprep.subr.mxu0 0.0
        %1449 = vmatpush1.msra.mxu0 0.0
        %1450 = vmatprep.subr.mxu0 0.0
        %1451 = vmatpush1.msra.mxu0 0.0
        %1452 = vmatprep.subr.mxu0 0.0
        %1453 = vmatpush1.msra.mxu0 0.0
        %1454 = vmatprep.subr.mxu0 0.0
        %1455 = vmatpush1.msra.mxu0 0.0
        %1456 = vmatprep.subr.mxu0 0.0
        %1457 = vmatpush1.msra.mxu0 0.0
        %1458 = vmatprep.subr.mxu0 0.0
        %1459 = vmatpush1.msra.mxu0 0.0
        %1460 = vmatprep.subr.mxu0 0.0
        %1461 = vmatpush1.msra.mxu0 0.0
        %1462 = vmatprep.subr.mxu0 0.0
        %1463 = vmatpush1.msra.mxu0 0.0
        %1464 = vmatprep.subr.mxu0 0.0
        %1465 = vmatpush1.msra.mxu0 0.0
        %1466 = vmatprep.subr.mxu0 0.0
        %1467 = vmatpush1.msra.mxu0 0.0
        %1468 = vmatprep.subr.mxu0 0.0
        %1469 = vmatpush1.msra.mxu0 %v1433
        %1470 = vmatprep.subr.mxu0 0.0
        %1471 = vmatpush1.msra.mxu0 %v1432
        %1472 = vmatprep.subr.mxu0 0.0
        %1473 = vmatpush1.msra.mxu0 %v1431
        %1474 = vmatprep.subr.mxu0 0.0
        %1475 = vmatpush1.msra.mxu0 %v1430
        %1476 = vmatprep.subr.mxu0 0.0
        %1477 = vmatpush2.msra.mxu0 0.0
        %1478 = vmatprep.subr.mxu0 0.0
        %1479 = vmatpush2.msra.mxu0 0.0
        %1480 = vmatprep.subr.mxu0 0.0
        %1481 = vmatpush2.msra.mxu0 0.0
        %1482 = vmatprep.subr.mxu0 0.0
        %1483 = vmatpush2.msra.mxu0 0.0
        %1484 = vmatprep.subr.mxu0 0.0
        %1485 = vmatpush2.msra.mxu0 0.0
        %1486 = vmatprep.subr.mxu0 0.0
        %1487 = vmatpush2.msra.mxu0 0.0
        %1488 = vmatprep.subr.mxu0 0.0
        %1489 = vmatpush2.msra.mxu0 0.0
        %1490 = vmatprep.subr.mxu0 0.0
        %1491 = vmatpush2.msra.mxu0 0.0
        %1492 = vmatprep.subr.mxu0 0.0
        %1493 = vmatpush2.msra.mxu0 0.0
        %1494 = vmatprep.subr.mxu0 0.0
        %1495 = vmatpush2.msra.mxu0 0.0
        %1496 = vmatprep.subr.mxu0 0.0
        %1497 = vmatpush2.msra.mxu0 0.0
        %1498 = vmatprep.subr.mxu0 0.0
        %1499 = vmatpush2.msra.mxu0 0.0
        %1500 = vmatprep.subr.mxu0 0.0
        %1501 = vmatpush2.msra.mxu0 0.0
        %1502 = vmatprep.subr.mxu0 0.0
        %1503 = vmatpush2.msra.mxu0 0.0
        %1504 = vmatprep.subr.mxu0 0.0
        %1505 = vmatpush2.msra.mxu0 0.0
        %1506 = vmatprep.subr.mxu0 0.0
        %1507 = vmatpush2.msra.mxu0 0.0
        %1508 = vmatprep.mubr.f32.mxu0 0.0
        %1509 = vmatmul.mubr.f32.gmra.mxu0 %v1442
        %v1510 = vpop.f32.mrf.mxu0
        %v1511 = vadd.f32 %v1439, %v1510
        %v1512 = vpop.f32.mrf.mxu0
        %1513 = vdwg.mxu0
        %v1514 = vmul.f32 %v1511, 0.5
        %v1515 = vmul.f32 %v1511, 0.70710677
        %v1516 = verf.f32.pop %v1515
        %v1517 = vadd.f32 %v1516, 1.0
        %v1518 = vmul.f32 %v1514, %v1517
        %v1519 = vld [vmem:[%s6] sm:$0xff]
        %v1520 = vld [vmem:[%s6 + $0x8] sm:$0xff]
        %v1521 = vld [vmem:[%s6 + $0x10] sm:$0xff]
        %v1522 = vld [vmem:[%s6 + $0x18] sm:$0xff]
        %v1523 = vld [vmem:[%s6 + $0x20] sm:$0xff]
        %v1524 = vld [vmem:[%s6 + $0x28] sm:$0xff]
        %v1525 = vld [vmem:[%s6 + $0x30] sm:$0xff]
        %v1526 = vld [vmem:[%s6 + $0x38] sm:$0xff]
        %v1527 = vlaneseq
        %v1528 = vshrl.u32 %v1527, 7
        %v1529 = vsub.s32 5, %v1528
        %v1530 = vrot.slane %v329, %v1529
        %vm1531 = vcmask 523264
        %v1533 = vsel %vm1531, %v1518, 0
        %1535 = vmatprep.subr.mxu0 0.0
        %1536 = vmatpush1.msra.mxu0 0.0
        %1537 = vmatprep.subr.mxu0 0.0
        %1538 = vmatpush1.msra.mxu0 0.0
        %1539 = vmatprep.subr.mxu0 0.0
        %1540 = vmatpush1.msra.mxu0 0.0
        %1541 = vmatprep.subr.mxu0 0.0
        %1542 = vmatpush1.msra.mxu0 0.0
        %1543 = vmatprep.subr.mxu0 0.0
        %1544 = vmatpush1.msra.mxu0 0.0
        %1545 = vmatprep.subr.mxu0 0.0
        %1546 = vmatpush1.msra.mxu0 0.0
        %1547 = vmatprep.subr.mxu0 0.0
        %1548 = vmatpush1.msra.mxu0 0.0
        %1549 = vmatprep.subr.mxu0 0.0
        %1550 = vmatpush1.msra.mxu0 0.0
        %1551 = vmatprep.subr.mxu0 0.0
        %1552 = vmatpush1.msra.mxu0 %v1526
        %1553 = vmatprep.subr.mxu0 0.0
        %1554 = vmatpush1.msra.mxu0 %v1525
        %1555 = vmatprep.subr.mxu0 0.0
        %1556 = vmatpush1.msra.mxu0 %v1524
        %1557 = vmatprep.subr.mxu0 0.0
        %1558 = vmatpush1.msra.mxu0 %v1523
        %1559 = vmatprep.subr.mxu0 0.0
        %1560 = vmatpush1.msra.mxu0 %v1522
        %1561 = vmatprep.subr.mxu0 0.0
        %1562 = vmatpush1.msra.mxu0 %v1521
        %1563 = vmatprep.subr.mxu0 0.0
        %1564 = vmatpush1.msra.mxu0 %v1520
        %1565 = vmatprep.subr.mxu0 0.0
        %1566 = vmatpush1.msra.mxu0 %v1519
        %1567 = vmatprep.subr.mxu0 0.0
        %1568 = vmatpush2.msra.mxu0 0.0
        %1569 = vmatprep.subr.mxu0 0.0
        %1570 = vmatpush2.msra.mxu0 0.0
        %1571 = vmatprep.subr.mxu0 0.0
        %1572 = vmatpush2.msra.mxu0 0.0
        %1573 = vmatprep.subr.mxu0 0.0
        %1574 = vmatpush2.msra.mxu0 0.0
        %1575 = vmatprep.subr.mxu0 0.0
        %1576 = vmatpush2.msra.mxu0 0.0
        %1577 = vmatprep.subr.mxu0 0.0
        %1578 = vmatpush2.msra.mxu0 0.0
        %1579 = vmatprep.subr.mxu0 0.0
        %1580 = vmatpush2.msra.mxu0 0.0
        %1581 = vmatprep.subr.mxu0 0.0
        %1582 = vmatpush2.msra.mxu0 0.0
        %1583 = vmatprep.subr.mxu0 0.0
        %1584 = vmatpush2.msra.mxu0 0.0
        %1585 = vmatprep.subr.mxu0 0.0
        %1586 = vmatpush2.msra.mxu0 0.0
        %1587 = vmatprep.subr.mxu0 0.0
        %1588 = vmatpush2.msra.mxu0 0.0
        %1589 = vmatprep.subr.mxu0 0.0
        %1590 = vmatpush2.msra.mxu0 0.0
        %1591 = vmatprep.subr.mxu0 0.0
        %1592 = vmatpush2.msra.mxu0 0.0
        %1593 = vmatprep.subr.mxu0 0.0
        %1594 = vmatpush2.msra.mxu0 0.0
        %1595 = vmatprep.subr.mxu0 0.0
        %1596 = vmatpush2.msra.mxu0 0.0
        %1597 = vmatprep.subr.mxu0 0.0
        %1598 = vmatpush2.msra.mxu0 0.0
        %1599 = vmatprep.mubr.f32.mxu0 0.0
        %1600 = vmatmul.mubr.f32.gmra.mxu0 %v1533
        %v1601 = vpop.f32.mrf.mxu0
        %v1602 = vadd.f32 %v1530, %v1601
        %v1603 = vpop.f32.mrf.mxu0
        %1604 = vdwg.mxu0
        %v1605 = vadd.f32 %v1406, %v1602
        %s1606 = scalar_lea.vmem %s7, 8
        %v1607 = vld [vmem:[%s1606] sm:$0x3f]
        %v1608 = vsel %vm330, %v1605, 0.0
        %1609 = vadd.xlane.f32.xlu0 %v1608
        %v1610 = vpop.xlane.xlu0 %1609
        %v1611 = vmul.f32 %v1610, %v334
        %v1612 = vsub.f32 %v1605, %v1611
        %v1613 = vmul.f32 %v1612, %v1612
        %v1614 = vsel %vm330, %v1613, 0.0
        %1615 = vadd.xlane.f32.xlu0 %v1614
        %v1616 = vpop.xlane.xlu0 %1615
        %v1617 = vmul.f32 %v1616, %v334
        %v1618 = vadd.f32 %v1617, 1e-06
        %v1619 = vrsqrt.pop %v1618
        %v1620 = vmul.f32 %v1612, %v1619
        %v1621 = vlaneseq
        %v1622 = vshrl.u32 %v1621, 7
        %v1623 = vsub.s32 0, %v1622
        %v1624 = vrot.slane %v1607, %v1623
        %v1625 = vmul.f32 %v1620, %v1624
        %v1626 = vlaneseq
        %v1627 = vshrl.u32 %v1626, 7
        %v1628 = vsub.s32 1, %v1627
        %v1629 = vrot.slane %v1607, %v1628
        %v1630 = vadd.f32 %v1625, %v1629
        %s1631 = scalar_lea.vmem %s1, 32
        %v1632 = vld [vmem:[%s1631] sm:$0xff]
        %v1633 = vld [vmem:[%s1631 + $0x8] sm:$0xff]
        %v1634 = vld [vmem:[%s1631 + $0x10] sm:$0xff]
        %v1635 = vld [vmem:[%s1631 + $0x18] sm:$0xff]
        %s1636 = scalar_lea.vmem %s2, 1
        %v1637 = vld [vmem:[%s1636] sm:$0x1]
        %v1639 = vlaneseq
        %v1640 = vshrl.u32 %v1639, 7
        %v1641 = vsub.s32 0, %v1640
        %v1642 = vrot.slane %v1637, %v1641
        %v1645 = vsel %vm330, %v1630, 0
        %1647 = vmatprep.subr.mxu0 0.0
        %1648 = vmatpush1.msra.mxu0 0.0
        %1649 = vmatprep.subr.mxu0 0.0
        %1650 = vmatpush1.msra.mxu0 0.0
        %1651 = vmatprep.subr.mxu0 0.0
        %1652 = vmatpush1.msra.mxu0 0.0
        %1653 = vmatprep.subr.mxu0 0.0
        %1654 = vmatpush1.msra.mxu0 0.0
        %1655 = vmatprep.subr.mxu0 0.0
        %1656 = vmatpush1.msra.mxu0 0.0
        %1657 = vmatprep.subr.mxu0 0.0
        %1658 = vmatpush1.msra.mxu0 0.0
        %1659 = vmatprep.subr.mxu0 0.0
        %1660 = vmatpush1.msra.mxu0 0.0
        %1661 = vmatprep.subr.mxu0 0.0
        %1662 = vmatpush1.msra.mxu0 0.0
        %1663 = vmatprep.subr.mxu0 0.0
        %1664 = vmatpush1.msra.mxu0 0.0
        %1665 = vmatprep.subr.mxu0 0.0
        %1666 = vmatpush1.msra.mxu0 0.0
        %1667 = vmatprep.subr.mxu0 0.0
        %1668 = vmatpush1.msra.mxu0 0.0
        %1669 = vmatprep.subr.mxu0 0.0
        %1670 = vmatpush1.msra.mxu0 0.0
        %1671 = vmatprep.subr.mxu0 0.0
        %1672 = vmatpush1.msra.mxu0 %v1635
        %1673 = vmatprep.subr.mxu0 0.0
        %1674 = vmatpush1.msra.mxu0 %v1634
        %1675 = vmatprep.subr.mxu0 0.0
        %1676 = vmatpush1.msra.mxu0 %v1633
        %1677 = vmatprep.subr.mxu0 0.0
        %1678 = vmatpush1.msra.mxu0 %v1632
        %1679 = vmatprep.subr.mxu0 0.0
        %1680 = vmatpush2.msra.mxu0 0.0
        %1681 = vmatprep.subr.mxu0 0.0
        %1682 = vmatpush2.msra.mxu0 0.0
        %1683 = vmatprep.subr.mxu0 0.0
        %1684 = vmatpush2.msra.mxu0 0.0
        %1685 = vmatprep.subr.mxu0 0.0
        %1686 = vmatpush2.msra.mxu0 0.0
        %1687 = vmatprep.subr.mxu0 0.0
        %1688 = vmatpush2.msra.mxu0 0.0
        %1689 = vmatprep.subr.mxu0 0.0
        %1690 = vmatpush2.msra.mxu0 0.0
        %1691 = vmatprep.subr.mxu0 0.0
        %1692 = vmatpush2.msra.mxu0 0.0
        %1693 = vmatprep.subr.mxu0 0.0
        %1694 = vmatpush2.msra.mxu0 0.0
        %1695 = vmatprep.subr.mxu0 0.0
        %1696 = vmatpush2.msra.mxu0 0.0
        %1697 = vmatprep.subr.mxu0 0.0
        %1698 = vmatpush2.msra.mxu0 0.0
        %1699 = vmatprep.subr.mxu0 0.0
        %1700 = vmatpush2.msra.mxu0 0.0
        %1701 = vmatprep.subr.mxu0 0.0
        %1702 = vmatpush2.msra.mxu0 0.0
        %1703 = vmatprep.subr.mxu0 0.0
        %1704 = vmatpush2.msra.mxu0 0.0
        %1705 = vmatprep.subr.mxu0 0.0
        %1706 = vmatpush2.msra.mxu0 0.0
        %1707 = vmatprep.subr.mxu0 0.0
        %1708 = vmatpush2.msra.mxu0 0.0
        %1709 = vmatprep.subr.mxu0 0.0
        %1710 = vmatpush2.msra.mxu0 0.0
        %1711 = vmatprep.mubr.f32.mxu0 0.0
        %1712 = vmatmul.mubr.f32.gmra.mxu0 %v1645
        %v1713 = vpop.f32.mrf.mxu0
        %v1714 = vadd.f32 %v1642, %v1713
        %v1715 = vpop.f32.mrf.mxu0
        %1716 = vdwg.mxu0
        %s1717 = scalar_lea.vmem %s3, 32
        %v1718 = vld [vmem:[%s1717] sm:$0xff]
        %v1719 = vld [vmem:[%s1717 + $0x8] sm:$0xff]
        %v1720 = vld [vmem:[%s1717 + $0x10] sm:$0xff]
        %v1721 = vld [vmem:[%s1717 + $0x18] sm:$0xff]
        %1723 = vrot.lane.b32.xlu0 %v1714, 96
        %v1724 = vpop.permute.xlu0 %1723
        %v1725 = vsel %vm446, %v1714, 0
        %v1727 = vsel %vm446, %v1724, 0
        %1729 = vmatprep.subr.mxu0 0.0
        %1730 = vmatpush1.xpose.msra.mxu0 0.0
        %1731 = vmatprep.subr.mxu0 0.0
        %1732 = vmatpush1.xpose.msra.mxu0 0.0
        %1733 = vmatprep.subr.mxu0 0.0
        %1734 = vmatpush1.xpose.msra.mxu0 0.0
        %1735 = vmatprep.subr.mxu0 0.0
        %1736 = vmatpush1.xpose.msra.mxu0 0.0
        %1737 = vmatprep.subr.mxu0 0.0
        %1738 = vmatpush1.xpose.msra.mxu0 0.0
        %1739 = vmatprep.subr.mxu0 0.0
        %1740 = vmatpush1.xpose.msra.mxu0 0.0
        %1741 = vmatprep.subr.mxu0 0.0
        %1742 = vmatpush1.xpose.msra.mxu0 0.0
        %1743 = vmatprep.subr.mxu0 0.0
        %1744 = vmatpush1.xpose.msra.mxu0 0.0
        %1745 = vmatprep.subr.mxu0 0.0
        %1746 = vmatpush1.xpose.msra.mxu0 0.0
        %1747 = vmatprep.subr.mxu0 0.0
        %1748 = vmatpush1.xpose.msra.mxu0 0.0
        %1749 = vmatprep.subr.mxu0 0.0
        %1750 = vmatpush1.xpose.msra.mxu0 0.0
        %1751 = vmatprep.subr.mxu0 0.0
        %1752 = vmatpush1.xpose.msra.mxu0 0.0
        %1753 = vmatprep.subr.mxu0 0.0
        %1754 = vmatpush1.xpose.msra.mxu0 0.0
        %1755 = vmatprep.subr.mxu0 0.0
        %1756 = vmatpush1.xpose.msra.mxu0 0.0
        %1757 = vmatprep.subr.mxu0 0.0
        %1758 = vmatpush1.xpose.msra.mxu0 0.0
        %1759 = vmatprep.subr.mxu0 0.0
        %1760 = vmatpush1.xpose.msra.mxu0 %v1727
        %1761 = vmatprep.subr.mxu0 0.0
        %1762 = vmatpush2.xpose.msra.mxu0 0.0
        %1763 = vmatprep.subr.mxu0 0.0
        %1764 = vmatpush2.xpose.msra.mxu0 0.0
        %1765 = vmatprep.subr.mxu0 0.0
        %1766 = vmatpush2.xpose.msra.mxu0 0.0
        %1767 = vmatprep.subr.mxu0 0.0
        %1768 = vmatpush2.xpose.msra.mxu0 0.0
        %1769 = vmatprep.subr.mxu0 0.0
        %1770 = vmatpush2.xpose.msra.mxu0 0.0
        %1771 = vmatprep.subr.mxu0 0.0
        %1772 = vmatpush2.xpose.msra.mxu0 0.0
        %1773 = vmatprep.subr.mxu0 0.0
        %1774 = vmatpush2.xpose.msra.mxu0 0.0
        %1775 = vmatprep.subr.mxu0 0.0
        %1776 = vmatpush2.xpose.msra.mxu0 0.0
        %1777 = vmatprep.subr.mxu0 0.0
        %1778 = vmatpush2.xpose.msra.mxu0 0.0
        %1779 = vmatprep.subr.mxu0 0.0
        %1780 = vmatpush2.xpose.msra.mxu0 0.0
        %1781 = vmatprep.subr.mxu0 0.0
        %1782 = vmatpush2.xpose.msra.mxu0 0.0
        %1783 = vmatprep.subr.mxu0 0.0
        %1784 = vmatpush2.xpose.msra.mxu0 0.0
        %1785 = vmatprep.subr.mxu0 0.0
        %1786 = vmatpush2.xpose.msra.mxu0 0.0
        %1787 = vmatprep.subr.mxu0 0.0
        %1788 = vmatpush2.xpose.msra.mxu0 0.0
        %1789 = vmatprep.subr.mxu0 0.0
        %1790 = vmatpush2.xpose.msra.mxu0 0.0
        %1791 = vmatprep.subr.mxu0 0.0
        %1792 = vmatpush2.xpose.msra.mxu0 0.0
        %1793 = vmatprep.mubr.f32.mxu0 0.0
        %1794 = vmatmul.mubr.f32.gmra.mxu0 %v1725
        %v1795 = vpop.f32.mrf.mxu0
        %v1796 = vadd.f32 0.0, %v1795
        %v1797 = vpop.f32.mrf.mxu0
        %1798 = vdwg.mxu0
        %v1799 = vmul.f32 %v1796, 0.35355338
        %v1800 = vsel %vm446, %v1799, -inf
        %1801 = vmax.xlane.f32.xlu0 %v1800
        %v1802 = vpop.xlane.xlu0 %1801
        %v1803 = vsub.f32 %v1799, %v1802
        %v1804 = vmul.f32 %v1803, 1.442695
        %v1805 = vpow.pop %v1804
        %v1806 = vsel %vm446, %v1805, 0.0
        %1807 = vadd.xlane.f32.xlu0 %v1806
        %v1808 = vpop.xlane.xlu0 %1807
        %v1809 = vrcp.pop %v1808
        %v1810 = vmul.f32 %v1805, %v1809
        %1811 = vrot.lane.b32.xlu0 %v1714, 64
        %v1812 = vpop.permute.xlu0 %1811
        %v1815 = vsel %vm446, %v1810, 0
        %1817 = vmatprep.subr.mxu0 0.0
        %1818 = vmatpush1.msra.mxu0 0.0
        %1819 = vmatprep.subr.mxu0 0.0
        %1820 = vmatpush1.msra.mxu0 0.0
        %1821 = vmatprep.subr.mxu0 0.0
        %1822 = vmatpush1.msra.mxu0 0.0
        %1823 = vmatprep.subr.mxu0 0.0
        %1824 = vmatpush1.msra.mxu0 0.0
        %1825 = vmatprep.subr.mxu0 0.0
        %1826 = vmatpush1.msra.mxu0 0.0
        %1827 = vmatprep.subr.mxu0 0.0
        %1828 = vmatpush1.msra.mxu0 0.0
        %1829 = vmatprep.subr.mxu0 0.0
        %1830 = vmatpush1.msra.mxu0 0.0
        %1831 = vmatprep.subr.mxu0 0.0
        %1832 = vmatpush1.msra.mxu0 0.0
        %1833 = vmatprep.subr.mxu0 0.0
        %1834 = vmatpush1.msra.mxu0 0.0
        %1835 = vmatprep.subr.mxu0 0.0
        %1836 = vmatpush1.msra.mxu0 0.0
        %1837 = vmatprep.subr.mxu0 0.0
        %1838 = vmatpush1.msra.mxu0 0.0
        %1839 = vmatprep.subr.mxu0 0.0
        %1840 = vmatpush1.msra.mxu0 0.0
        %1841 = vmatprep.subr.mxu0 0.0
        %1842 = vmatpush1.msra.mxu0 0.0
        %1843 = vmatprep.subr.mxu0 0.0
        %1844 = vmatpush1.msra.mxu0 0.0
        %1845 = vmatprep.subr.mxu0 0.0
        %1846 = vmatpush1.msra.mxu0 0.0
        %1847 = vmatprep.subr.mxu0 0.0
        %1848 = vmatpush1.msra.mxu0 %v1812
        %1849 = vmatprep.subr.mxu0 0.0
        %1850 = vmatpush2.msra.mxu0 0.0
        %1851 = vmatprep.subr.mxu0 0.0
        %1852 = vmatpush2.msra.mxu0 0.0
        %1853 = vmatprep.subr.mxu0 0.0
        %1854 = vmatpush2.msra.mxu0 0.0
        %1855 = vmatprep.subr.mxu0 0.0
        %1856 = vmatpush2.msra.mxu0 0.0
        %1857 = vmatprep.subr.mxu0 0.0
        %1858 = vmatpush2.msra.mxu0 0.0
        %1859 = vmatprep.subr.mxu0 0.0
        %1860 = vmatpush2.msra.mxu0 0.0
        %1861 = vmatprep.subr.mxu0 0.0
        %1862 = vmatpush2.msra.mxu0 0.0
        %1863 = vmatprep.subr.mxu0 0.0
        %1864 = vmatpush2.msra.mxu0 0.0
        %1865 = vmatprep.subr.mxu0 0.0
        %1866 = vmatpush2.msra.mxu0 0.0
        %1867 = vmatprep.subr.mxu0 0.0
        %1868 = vmatpush2.msra.mxu0 0.0
        %1869 = vmatprep.subr.mxu0 0.0
        %1870 = vmatpush2.msra.mxu0 0.0
        %1871 = vmatprep.subr.mxu0 0.0
        %1872 = vmatpush2.msra.mxu0 0.0
        %1873 = vmatprep.subr.mxu0 0.0
        %1874 = vmatpush2.msra.mxu0 0.0
        %1875 = vmatprep.subr.mxu0 0.0
        %1876 = vmatpush2.msra.mxu0 0.0
        %1877 = vmatprep.subr.mxu0 0.0
        %1878 = vmatpush2.msra.mxu0 0.0
        %1879 = vmatprep.subr.mxu0 0.0
        %1880 = vmatpush2.msra.mxu0 0.0
        %1881 = vmatprep.mubr.f32.mxu0 0.0
        %1882 = vmatmul.mubr.f32.gmra.mxu0 %v1815
        %v1883 = vpop.f32.mrf.mxu0
        %v1884 = vadd.f32 0.0, %v1883
        %v1885 = vpop.f32.mrf.mxu0
        %1886 = vdwg.mxu0
        %1887 = vrot.lane.b32.xlu0 %v1714, 120
        %v1888 = vpop.permute.xlu0 %1887
        %1889 = vrot.lane.b32.xlu0 %v1714, 88
        %v1890 = vpop.permute.xlu0 %1889
        %v1891 = vsel %vm446, %v1888, 0
        %v1893 = vsel %vm446, %v1890, 0
        %1895 = vmatprep.subr.mxu0 0.0
        %1896 = vmatpush1.xpose.msra.mxu0 0.0
        %1897 = vmatprep.subr.mxu0 0.0
        %1898 = vmatpush1.xpose.msra.mxu0 0.0
        %1899 = vmatprep.subr.mxu0 0.0
        %1900 = vmatpush1.xpose.msra.mxu0 0.0
        %1901 = vmatprep.subr.mxu0 0.0
        %1902 = vmatpush1.xpose.msra.mxu0 0.0
        %1903 = vmatprep.subr.mxu0 0.0
        %1904 = vmatpush1.xpose.msra.mxu0 0.0
        %1905 = vmatprep.subr.mxu0 0.0
        %1906 = vmatpush1.xpose.msra.mxu0 0.0
        %1907 = vmatprep.subr.mxu0 0.0
        %1908 = vmatpush1.xpose.msra.mxu0 0.0
        %1909 = vmatprep.subr.mxu0 0.0
        %1910 = vmatpush1.xpose.msra.mxu0 0.0
        %1911 = vmatprep.subr.mxu0 0.0
        %1912 = vmatpush1.xpose.msra.mxu0 0.0
        %1913 = vmatprep.subr.mxu0 0.0
        %1914 = vmatpush1.xpose.msra.mxu0 0.0
        %1915 = vmatprep.subr.mxu0 0.0
        %1916 = vmatpush1.xpose.msra.mxu0 0.0
        %1917 = vmatprep.subr.mxu0 0.0
        %1918 = vmatpush1.xpose.msra.mxu0 0.0
        %1919 = vmatprep.subr.mxu0 0.0
        %1920 = vmatpush1.xpose.msra.mxu0 0.0
        %1921 = vmatprep.subr.mxu0 0.0
        %1922 = vmatpush1.xpose.msra.mxu0 0.0
        %1923 = vmatprep.subr.mxu0 0.0
        %1924 = vmatpush1.xpose.msra.mxu0 0.0
        %1925 = vmatprep.subr.mxu0 0.0
        %1926 = vmatpush1.xpose.msra.mxu0 %v1893
        %1927 = vmatprep.subr.mxu0 0.0
        %1928 = vmatpush2.xpose.msra.mxu0 0.0
        %1929 = vmatprep.subr.mxu0 0.0
        %1930 = vmatpush2.xpose.msra.mxu0 0.0
        %1931 = vmatprep.subr.mxu0 0.0
        %1932 = vmatpush2.xpose.msra.mxu0 0.0
        %1933 = vmatprep.subr.mxu0 0.0
        %1934 = vmatpush2.xpose.msra.mxu0 0.0
        %1935 = vmatprep.subr.mxu0 0.0
        %1936 = vmatpush2.xpose.msra.mxu0 0.0
        %1937 = vmatprep.subr.mxu0 0.0
        %1938 = vmatpush2.xpose.msra.mxu0 0.0
        %1939 = vmatprep.subr.mxu0 0.0
        %1940 = vmatpush2.xpose.msra.mxu0 0.0
        %1941 = vmatprep.subr.mxu0 0.0
        %1942 = vmatpush2.xpose.msra.mxu0 0.0
        %1943 = vmatprep.subr.mxu0 0.0
        %1944 = vmatpush2.xpose.msra.mxu0 0.0
        %1945 = vmatprep.subr.mxu0 0.0
        %1946 = vmatpush2.xpose.msra.mxu0 0.0
        %1947 = vmatprep.subr.mxu0 0.0
        %1948 = vmatpush2.xpose.msra.mxu0 0.0
        %1949 = vmatprep.subr.mxu0 0.0
        %1950 = vmatpush2.xpose.msra.mxu0 0.0
        %1951 = vmatprep.subr.mxu0 0.0
        %1952 = vmatpush2.xpose.msra.mxu0 0.0
        %1953 = vmatprep.subr.mxu0 0.0
        %1954 = vmatpush2.xpose.msra.mxu0 0.0
        %1955 = vmatprep.subr.mxu0 0.0
        %1956 = vmatpush2.xpose.msra.mxu0 0.0
        %1957 = vmatprep.subr.mxu0 0.0
        %1958 = vmatpush2.xpose.msra.mxu0 0.0
        %1959 = vmatprep.mubr.f32.mxu0 0.0
        %1960 = vmatmul.mubr.f32.gmra.mxu0 %v1891
        %v1961 = vpop.f32.mrf.mxu0
        %v1962 = vadd.f32 0.0, %v1961
        %v1963 = vpop.f32.mrf.mxu0
        %1964 = vdwg.mxu0
        %v1965 = vmul.f32 %v1962, 0.35355338
        %v1966 = vsel %vm446, %v1965, -inf
        %1967 = vmax.xlane.f32.xlu0 %v1966
        %v1968 = vpop.xlane.xlu0 %1967
        %v1969 = vsub.f32 %v1965, %v1968
        %v1970 = vmul.f32 %v1969, 1.442695
        %v1971 = vpow.pop %v1970
        %v1972 = vsel %vm446, %v1971, 0.0
        %1973 = vadd.xlane.f32.xlu0 %v1972
        %v1974 = vpop.xlane.xlu0 %1973
        %v1975 = vrcp.pop %v1974
        %v1976 = vmul.f32 %v1971, %v1975
        %1977 = vrot.lane.b32.xlu0 %v1714, 56
        %v1978 = vpop.permute.xlu0 %1977
        %v1981 = vsel %vm446, %v1976, 0
        %1983 = vmatprep.subr.mxu0 0.0
        %1984 = vmatpush1.msra.mxu0 0.0
        %1985 = vmatprep.subr.mxu0 0.0
        %1986 = vmatpush1.msra.mxu0 0.0
        %1987 = vmatprep.subr.mxu0 0.0
        %1988 = vmatpush1.msra.mxu0 0.0
        %1989 = vmatprep.subr.mxu0 0.0
        %1990 = vmatpush1.msra.mxu0 0.0
        %1991 = vmatprep.subr.mxu0 0.0
        %1992 = vmatpush1.msra.mxu0 0.0
        %1993 = vmatprep.subr.mxu0 0.0
        %1994 = vmatpush1.msra.mxu0 0.0
        %1995 = vmatprep.subr.mxu0 0.0
        %1996 = vmatpush1.msra.mxu0 0.0
        %1997 = vmatprep.subr.mxu0 0.0
        %1998 = vmatpush1.msra.mxu0 0.0
        %1999 = vmatprep.subr.mxu0 0.0
        %2000 = vmatpush1.msra.mxu0 0.0
        %2001 = vmatprep.subr.mxu0 0.0
        %2002 = vmatpush1.msra.mxu0 0.0
        %2003 = vmatprep.subr.mxu0 0.0
        %2004 = vmatpush1.msra.mxu0 0.0
        %2005 = vmatprep.subr.mxu0 0.0
        %2006 = vmatpush1.msra.mxu0 0.0
        %2007 = vmatprep.subr.mxu0 0.0
        %2008 = vmatpush1.msra.mxu0 0.0
        %2009 = vmatprep.subr.mxu0 0.0
        %2010 = vmatpush1.msra.mxu0 0.0
        %2011 = vmatprep.subr.mxu0 0.0
        %2012 = vmatpush1.msra.mxu0 0.0
        %2013 = vmatprep.subr.mxu0 0.0
        %2014 = vmatpush1.msra.mxu0 %v1978
        %2015 = vmatprep.subr.mxu0 0.0
        %2016 = vmatpush2.msra.mxu0 0.0
        %2017 = vmatprep.subr.mxu0 0.0
        %2018 = vmatpush2.msra.mxu0 0.0
        %2019 = vmatprep.subr.mxu0 0.0
        %2020 = vmatpush2.msra.mxu0 0.0
        %2021 = vmatprep.subr.mxu0 0.0
        %2022 = vmatpush2.msra.mxu0 0.0
        %2023 = vmatprep.subr.mxu0 0.0
        %2024 = vmatpush2.msra.mxu0 0.0
        %2025 = vmatprep.subr.mxu0 0.0
        %2026 = vmatpush2.msra.mxu0 0.0
        %2027 = vmatprep.subr.mxu0 0.0
        %2028 = vmatpush2.msra.mxu0 0.0
        %2029 = vmatprep.subr.mxu0 0.0
        %2030 = vmatpush2.msra.mxu0 0.0
        %2031 = vmatprep.subr.mxu0 0.0
        %2032 = vmatpush2.msra.mxu0 0.0
        %2033 = vmatprep.subr.mxu0 0.0
        %2034 = vmatpush2.msra.mxu0 0.0
        %2035 = vmatprep.subr.mxu0 0.0
        %2036 = vmatpush2.msra.mxu0 0.0
        %2037 = vmatprep.subr.mxu0 0.0
        %2038 = vmatpush2.msra.mxu0 0.0
        %2039 = vmatprep.subr.mxu0 0.0
        %2040 = vmatpush2.msra.mxu0 0.0
        %2041 = vmatprep.subr.mxu0 0.0
        %2042 = vmatpush2.msra.mxu0 0.0
        %2043 = vmatprep.subr.mxu0 0.0
        %2044 = vmatpush2.msra.mxu0 0.0
        %2045 = vmatprep.subr.mxu0 0.0
        %2046 = vmatpush2.msra.mxu0 0.0
        %2047 = vmatprep.mubr.f32.mxu0 0.0
        %2048 = vmatmul.mubr.f32.gmra.mxu0 %v1981
        %v2049 = vpop.f32.mrf.mxu0
        %v2050 = vadd.f32 0.0, %v2049
        %v2051 = vpop.f32.mrf.mxu0
        %2052 = vdwg.mxu0
        %v2054 = vsel %vm446, %v2050, 0
        %2056 = vmatprep.subr.mxu0 0.0
        %2057 = vmatpush1.msra.mxu0 0.0
        %2058 = vmatprep.subr.mxu0 0.0
        %2059 = vmatpush1.msra.mxu0 0.0
        %2060 = vmatprep.subr.mxu0 0.0
        %2061 = vmatpush1.msra.mxu0 0.0
        %2062 = vmatprep.subr.mxu0 0.0
        %2063 = vmatpush1.msra.mxu0 0.0
        %2064 = vmatprep.subr.mxu0 0.0
        %2065 = vmatpush1.msra.mxu0 0.0
        %2066 = vmatprep.subr.mxu0 0.0
        %2067 = vmatpush1.msra.mxu0 0.0
        %2068 = vmatprep.subr.mxu0 0.0
        %2069 = vmatpush1.msra.mxu0 0.0
        %2070 = vmatprep.subr.mxu0 0.0
        %2071 = vmatpush1.msra.mxu0 0.0
        %2072 = vmatprep.subr.mxu0 0.0
        %2073 = vmatpush1.msra.mxu0 0.0
        %2074 = vmatprep.subr.mxu0 0.0
        %2075 = vmatpush1.msra.mxu0 0.0
        %2076 = vmatprep.subr.mxu0 0.0
        %2077 = vmatpush1.msra.mxu0 0.0
        %2078 = vmatprep.subr.mxu0 0.0
        %2079 = vmatpush1.msra.mxu0 0.0
        %2080 = vmatprep.subr.mxu0 0.0
        %2081 = vmatpush1.msra.mxu0 0.0
        %2082 = vmatprep.subr.mxu0 0.0
        %2083 = vmatpush1.msra.mxu0 0.0
        %2084 = vmatprep.subr.mxu0 0.0
        %2085 = vmatpush1.msra.mxu0 0.0
        %2086 = vmatprep.subr.mxu0 0.0
        %2087 = vmatpush1.msra.mxu0 %v1719
        %2088 = vmatprep.subr.mxu0 0.0
        %2089 = vmatpush2.msra.mxu0 0.0
        %2090 = vmatprep.subr.mxu0 0.0
        %2091 = vmatpush2.msra.mxu0 0.0
        %2092 = vmatprep.subr.mxu0 0.0
        %2093 = vmatpush2.msra.mxu0 0.0
        %2094 = vmatprep.subr.mxu0 0.0
        %2095 = vmatpush2.msra.mxu0 0.0
        %2096 = vmatprep.subr.mxu0 0.0
        %2097 = vmatpush2.msra.mxu0 0.0
        %2098 = vmatprep.subr.mxu0 0.0
        %2099 = vmatpush2.msra.mxu0 0.0
        %2100 = vmatprep.subr.mxu0 0.0
        %2101 = vmatpush2.msra.mxu0 0.0
        %2102 = vmatprep.subr.mxu0 0.0
        %2103 = vmatpush2.msra.mxu0 0.0
        %2104 = vmatprep.subr.mxu0 0.0
        %2105 = vmatpush2.msra.mxu0 0.0
        %2106 = vmatprep.subr.mxu0 0.0
        %2107 = vmatpush2.msra.mxu0 0.0
        %2108 = vmatprep.subr.mxu0 0.0
        %2109 = vmatpush2.msra.mxu0 0.0
        %2110 = vmatprep.subr.mxu0 0.0
        %2111 = vmatpush2.msra.mxu0 0.0
        %2112 = vmatprep.subr.mxu0 0.0
        %2113 = vmatpush2.msra.mxu0 0.0
        %2114 = vmatprep.subr.mxu0 0.0
        %2115 = vmatpush2.msra.mxu0 0.0
        %2116 = vmatprep.subr.mxu0 0.0
        %2117 = vmatpush2.msra.mxu0 0.0
        %2118 = vmatprep.subr.mxu0 0.0
        %2119 = vmatpush2.msra.mxu0 0.0
        %2120 = vmatprep.mubr.f32.mxu0 0.0
        %2121 = vmatmul.mubr.f32.gmra.mxu0 %v2054
        %v2122 = vpop.f32.mrf.mxu0
        %v2123 = vadd.f32 0.0, %v2122
        %v2124 = vpop.f32.mrf.mxu0
        %2125 = vdwg.mxu0
        %v2127 = vsel %vm446, %v1884, 0
        %2129 = vmatprep.subr.mxu0 0.0
        %2130 = vmatpush1.msra.mxu0 0.0
        %2131 = vmatprep.subr.mxu0 0.0
        %2132 = vmatpush1.msra.mxu0 0.0
        %2133 = vmatprep.subr.mxu0 0.0
        %2134 = vmatpush1.msra.mxu0 0.0
        %2135 = vmatprep.subr.mxu0 0.0
        %2136 = vmatpush1.msra.mxu0 0.0
        %2137 = vmatprep.subr.mxu0 0.0
        %2138 = vmatpush1.msra.mxu0 0.0
        %2139 = vmatprep.subr.mxu0 0.0
        %2140 = vmatpush1.msra.mxu0 0.0
        %2141 = vmatprep.subr.mxu0 0.0
        %2142 = vmatpush1.msra.mxu0 0.0
        %2143 = vmatprep.subr.mxu0 0.0
        %2144 = vmatpush1.msra.mxu0 0.0
        %2145 = vmatprep.subr.mxu0 0.0
        %2146 = vmatpush1.msra.mxu0 0.0
        %2147 = vmatprep.subr.mxu0 0.0
        %2148 = vmatpush1.msra.mxu0 0.0
        %2149 = vmatprep.subr.mxu0 0.0
        %2150 = vmatpush1.msra.mxu0 0.0
        %2151 = vmatprep.subr.mxu0 0.0
        %2152 = vmatpush1.msra.mxu0 0.0
        %2153 = vmatprep.subr.mxu0 0.0
        %2154 = vmatpush1.msra.mxu0 0.0
        %2155 = vmatprep.subr.mxu0 0.0
        %2156 = vmatpush1.msra.mxu0 0.0
        %2157 = vmatprep.subr.mxu0 0.0
        %2158 = vmatpush1.msra.mxu0 0.0
        %2159 = vmatprep.subr.mxu0 0.0
        %2160 = vmatpush1.msra.mxu0 %v1718
        %2161 = vmatprep.subr.mxu0 0.0
        %2162 = vmatpush2.msra.mxu0 0.0
        %2163 = vmatprep.subr.mxu0 0.0
        %2164 = vmatpush2.msra.mxu0 0.0
        %2165 = vmatprep.subr.mxu0 0.0
        %2166 = vmatpush2.msra.mxu0 0.0
        %2167 = vmatprep.subr.mxu0 0.0
        %2168 = vmatpush2.msra.mxu0 0.0
        %2169 = vmatprep.subr.mxu0 0.0
        %2170 = vmatpush2.msra.mxu0 0.0
        %2171 = vmatprep.subr.mxu0 0.0
        %2172 = vmatpush2.msra.mxu0 0.0
        %2173 = vmatprep.subr.mxu0 0.0
        %2174 = vmatpush2.msra.mxu0 0.0
        %2175 = vmatprep.subr.mxu0 0.0
        %2176 = vmatpush2.msra.mxu0 0.0
        %2177 = vmatprep.subr.mxu0 0.0
        %2178 = vmatpush2.msra.mxu0 0.0
        %2179 = vmatprep.subr.mxu0 0.0
        %2180 = vmatpush2.msra.mxu0 0.0
        %2181 = vmatprep.subr.mxu0 0.0
        %2182 = vmatpush2.msra.mxu0 0.0
        %2183 = vmatprep.subr.mxu0 0.0
        %2184 = vmatpush2.msra.mxu0 0.0
        %2185 = vmatprep.subr.mxu0 0.0
        %2186 = vmatpush2.msra.mxu0 0.0
        %2187 = vmatprep.subr.mxu0 0.0
        %2188 = vmatpush2.msra.mxu0 0.0
        %2189 = vmatprep.subr.mxu0 0.0
        %2190 = vmatpush2.msra.mxu0 0.0
        %2191 = vmatprep.subr.mxu0 0.0
        %2192 = vmatpush2.msra.mxu0 0.0
        %2193 = vmatprep.mubr.f32.mxu0 0.0
        %2194 = vmatmul.mubr.f32.gmra.mxu0 %v2127
        %v2195 = vpop.f32.mrf.mxu0
        %v2196 = vadd.f32 %v2123, %v2195
        %v2197 = vpop.f32.mrf.mxu0
        %2198 = vdwg.mxu0
        %2199 = vrot.lane.b32.xlu0 %v1714, 112
        %v2200 = vpop.permute.xlu0 %2199
        %2201 = vrot.lane.b32.xlu0 %v1714, 80
        %v2202 = vpop.permute.xlu0 %2201
        %v2203 = vsel %vm446, %v2200, 0
        %v2205 = vsel %vm446, %v2202, 0
        %2207 = vmatprep.subr.mxu0 0.0
        %2208 = vmatpush1.xpose.msra.mxu0 0.0
        %2209 = vmatprep.subr.mxu0 0.0
        %2210 = vmatpush1.xpose.msra.mxu0 0.0
        %2211 = vmatprep.subr.mxu0 0.0
        %2212 = vmatpush1.xpose.msra.mxu0 0.0
        %2213 = vmatprep.subr.mxu0 0.0
        %2214 = vmatpush1.xpose.msra.mxu0 0.0
        %2215 = vmatprep.subr.mxu0 0.0
        %2216 = vmatpush1.xpose.msra.mxu0 0.0
        %2217 = vmatprep.subr.mxu0 0.0
        %2218 = vmatpush1.xpose.msra.mxu0 0.0
        %2219 = vmatprep.subr.mxu0 0.0
        %2220 = vmatpush1.xpose.msra.mxu0 0.0
        %2221 = vmatprep.subr.mxu0 0.0
        %2222 = vmatpush1.xpose.msra.mxu0 0.0
        %2223 = vmatprep.subr.mxu0 0.0
        %2224 = vmatpush1.xpose.msra.mxu0 0.0
        %2225 = vmatprep.subr.mxu0 0.0
        %2226 = vmatpush1.xpose.msra.mxu0 0.0
        %2227 = vmatprep.subr.mxu0 0.0
        %2228 = vmatpush1.xpose.msra.mxu0 0.0
        %2229 = vmatprep.subr.mxu0 0.0
        %2230 = vmatpush1.xpose.msra.mxu0 0.0
        %2231 = vmatprep.subr.mxu0 0.0
        %2232 = vmatpush1.xpose.msra.mxu0 0.0
        %2233 = vmatprep.subr.mxu0 0.0
        %2234 = vmatpush1.xpose.msra.mxu0 0.0
        %2235 = vmatprep.subr.mxu0 0.0
        %2236 = vmatpush1.xpose.msra.mxu0 0.0
        %2237 = vmatprep.subr.mxu0 0.0
        %2238 = vmatpush1.xpose.msra.mxu0 %v2205
        %2239 = vmatprep.subr.mxu0 0.0
        %2240 = vmatpush2.xpose.msra.mxu0 0.0
        %2241 = vmatprep.subr.mxu0 0.0
        %2242 = vmatpush2.xpose.msra.mxu0 0.0
        %2243 = vmatprep.subr.mxu0 0.0
        %2244 = vmatpush2.xpose.msra.mxu0 0.0
        %2245 = vmatprep.subr.mxu0 0.0
        %2246 = vmatpush2.xpose.msra.mxu0 0.0
        %2247 = vmatprep.subr.mxu0 0.0
        %2248 = vmatpush2.xpose.msra.mxu0 0.0
        %2249 = vmatprep.subr.mxu0 0.0
        %2250 = vmatpush2.xpose.msra.mxu0 0.0
        %2251 = vmatprep.subr.mxu0 0.0
        %2252 = vmatpush2.xpose.msra.mxu0 0.0
        %2253 = vmatprep.subr.mxu0 0.0
        %2254 = vmatpush2.xpose.msra.mxu0 0.0
        %2255 = vmatprep.subr.mxu0 0.0
        %2256 = vmatpush2.xpose.msra.mxu0 0.0
        %2257 = vmatprep.subr.mxu0 0.0
        %2258 = vmatpush2.xpose.msra.mxu0 0.0
        %2259 = vmatprep.subr.mxu0 0.0
        %2260 = vmatpush2.xpose.msra.mxu0 0.0
        %2261 = vmatprep.subr.mxu0 0.0
        %2262 = vmatpush2.xpose.msra.mxu0 0.0
        %2263 = vmatprep.subr.mxu0 0.0
        %2264 = vmatpush2.xpose.msra.mxu0 0.0
        %2265 = vmatprep.subr.mxu0 0.0
        %2266 = vmatpush2.xpose.msra.mxu0 0.0
        %2267 = vmatprep.subr.mxu0 0.0
        %2268 = vmatpush2.xpose.msra.mxu0 0.0
        %2269 = vmatprep.subr.mxu0 0.0
        %2270 = vmatpush2.xpose.msra.mxu0 0.0
        %2271 = vmatprep.mubr.f32.mxu0 0.0
        %2272 = vmatmul.mubr.f32.gmra.mxu0 %v2203
        %v2273 = vpop.f32.mrf.mxu0
        %v2274 = vadd.f32 0.0, %v2273
        %v2275 = vpop.f32.mrf.mxu0
        %2276 = vdwg.mxu0
        %v2277 = vmul.f32 %v2274, 0.35355338
        %v2278 = vsel %vm446, %v2277, -inf
        %2279 = vmax.xlane.f32.xlu0 %v2278
        %v2280 = vpop.xlane.xlu0 %2279
        %v2281 = vsub.f32 %v2277, %v2280
        %v2282 = vmul.f32 %v2281, 1.442695
        %v2283 = vpow.pop %v2282
        %v2284 = vsel %vm446, %v2283, 0.0
        %2285 = vadd.xlane.f32.xlu0 %v2284
        %v2286 = vpop.xlane.xlu0 %2285
        %v2287 = vrcp.pop %v2286
        %v2288 = vmul.f32 %v2283, %v2287
        %2289 = vrot.lane.b32.xlu0 %v1714, 48
        %v2290 = vpop.permute.xlu0 %2289
        %v2293 = vsel %vm446, %v2288, 0
        %2295 = vmatprep.subr.mxu0 0.0
        %2296 = vmatpush1.msra.mxu0 0.0
        %2297 = vmatprep.subr.mxu0 0.0
        %2298 = vmatpush1.msra.mxu0 0.0
        %2299 = vmatprep.subr.mxu0 0.0
        %2300 = vmatpush1.msra.mxu0 0.0
        %2301 = vmatprep.subr.mxu0 0.0
        %2302 = vmatpush1.msra.mxu0 0.0
        %2303 = vmatprep.subr.mxu0 0.0
        %2304 = vmatpush1.msra.mxu0 0.0
        %2305 = vmatprep.subr.mxu0 0.0
        %2306 = vmatpush1.msra.mxu0 0.0
        %2307 = vmatprep.subr.mxu0 0.0
        %2308 = vmatpush1.msra.mxu0 0.0
        %2309 = vmatprep.subr.mxu0 0.0
        %2310 = vmatpush1.msra.mxu0 0.0
        %2311 = vmatprep.subr.mxu0 0.0
        %2312 = vmatpush1.msra.mxu0 0.0
        %2313 = vmatprep.subr.mxu0 0.0
        %2314 = vmatpush1.msra.mxu0 0.0
        %2315 = vmatprep.subr.mxu0 0.0
        %2316 = vmatpush1.msra.mxu0 0.0
        %2317 = vmatprep.subr.mxu0 0.0
        %2318 = vmatpush1.msra.mxu0 0.0
        %2319 = vmatprep.subr.mxu0 0.0
        %2320 = vmatpush1.msra.mxu0 0.0
        %2321 = vmatprep.subr.mxu0 0.0
        %2322 = vmatpush1.msra.mxu0 0.0
        %2323 = vmatprep.subr.mxu0 0.0
        %2324 = vmatpush1.msra.mxu0 0.0
        %2325 = vmatprep.subr.mxu0 0.0
        %2326 = vmatpush1.msra.mxu0 %v2290
        %2327 = vmatprep.subr.mxu0 0.0
        %2328 = vmatpush2.msra.mxu0 0.0
        %2329 = vmatprep.subr.mxu0 0.0
        %2330 = vmatpush2.msra.mxu0 0.0
        %2331 = vmatprep.subr.mxu0 0.0
        %2332 = vmatpush2.msra.mxu0 0.0
        %2333 = vmatprep.subr.mxu0 0.0
        %2334 = vmatpush2.msra.mxu0 0.0
        %2335 = vmatprep.subr.mxu0 0.0
        %2336 = vmatpush2.msra.mxu0 0.0
        %2337 = vmatprep.subr.mxu0 0.0
        %2338 = vmatpush2.msra.mxu0 0.0
        %2339 = vmatprep.subr.mxu0 0.0
        %2340 = vmatpush2.msra.mxu0 0.0
        %2341 = vmatprep.subr.mxu0 0.0
        %2342 = vmatpush2.msra.mxu0 0.0
        %2343 = vmatprep.subr.mxu0 0.0
        %2344 = vmatpush2.msra.mxu0 0.0
        %2345 = vmatprep.subr.mxu0 0.0
        %2346 = vmatpush2.msra.mxu0 0.0
        %2347 = vmatprep.subr.mxu0 0.0
        %2348 = vmatpush2.msra.mxu0 0.0
        %2349 = vmatprep.subr.mxu0 0.0
        %2350 = vmatpush2.msra.mxu0 0.0
        %2351 = vmatprep.subr.mxu0 0.0
        %2352 = vmatpush2.msra.mxu0 0.0
        %2353 = vmatprep.subr.mxu0 0.0
        %2354 = vmatpush2.msra.mxu0 0.0
        %2355 = vmatprep.subr.mxu0 0.0
        %2356 = vmatpush2.msra.mxu0 0.0
        %2357 = vmatprep.subr.mxu0 0.0
        %2358 = vmatpush2.msra.mxu0 0.0
        %2359 = vmatprep.mubr.f32.mxu0 0.0
        %2360 = vmatmul.mubr.f32.gmra.mxu0 %v2293
        %v2361 = vpop.f32.mrf.mxu0
        %v2362 = vadd.f32 0.0, %v2361
        %v2363 = vpop.f32.mrf.mxu0
        %2364 = vdwg.mxu0
        %v2366 = vsel %vm446, %v2362, 0
        %2368 = vmatprep.subr.mxu0 0.0
        %2369 = vmatpush1.msra.mxu0 0.0
        %2370 = vmatprep.subr.mxu0 0.0
        %2371 = vmatpush1.msra.mxu0 0.0
        %2372 = vmatprep.subr.mxu0 0.0
        %2373 = vmatpush1.msra.mxu0 0.0
        %2374 = vmatprep.subr.mxu0 0.0
        %2375 = vmatpush1.msra.mxu0 0.0
        %2376 = vmatprep.subr.mxu0 0.0
        %2377 = vmatpush1.msra.mxu0 0.0
        %2378 = vmatprep.subr.mxu0 0.0
        %2379 = vmatpush1.msra.mxu0 0.0
        %2380 = vmatprep.subr.mxu0 0.0
        %2381 = vmatpush1.msra.mxu0 0.0
        %2382 = vmatprep.subr.mxu0 0.0
        %2383 = vmatpush1.msra.mxu0 0.0
        %2384 = vmatprep.subr.mxu0 0.0
        %2385 = vmatpush1.msra.mxu0 0.0
        %2386 = vmatprep.subr.mxu0 0.0
        %2387 = vmatpush1.msra.mxu0 0.0
        %2388 = vmatprep.subr.mxu0 0.0
        %2389 = vmatpush1.msra.mxu0 0.0
        %2390 = vmatprep.subr.mxu0 0.0
        %2391 = vmatpush1.msra.mxu0 0.0
        %2392 = vmatprep.subr.mxu0 0.0
        %2393 = vmatpush1.msra.mxu0 0.0
        %2394 = vmatprep.subr.mxu0 0.0
        %2395 = vmatpush1.msra.mxu0 0.0
        %2396 = vmatprep.subr.mxu0 0.0
        %2397 = vmatpush1.msra.mxu0 0.0
        %2398 = vmatprep.subr.mxu0 0.0
        %2399 = vmatpush1.msra.mxu0 %v1720
        %2400 = vmatprep.subr.mxu0 0.0
        %2401 = vmatpush2.msra.mxu0 0.0
        %2402 = vmatprep.subr.mxu0 0.0
        %2403 = vmatpush2.msra.mxu0 0.0
        %2404 = vmatprep.subr.mxu0 0.0
        %2405 = vmatpush2.msra.mxu0 0.0
        %2406 = vmatprep.subr.mxu0 0.0
        %2407 = vmatpush2.msra.mxu0 0.0
        %2408 = vmatprep.subr.mxu0 0.0
        %2409 = vmatpush2.msra.mxu0 0.0
        %2410 = vmatprep.subr.mxu0 0.0
        %2411 = vmatpush2.msra.mxu0 0.0
        %2412 = vmatprep.subr.mxu0 0.0
        %2413 = vmatpush2.msra.mxu0 0.0
        %2414 = vmatprep.subr.mxu0 0.0
        %2415 = vmatpush2.msra.mxu0 0.0
        %2416 = vmatprep.subr.mxu0 0.0
        %2417 = vmatpush2.msra.mxu0 0.0
        %2418 = vmatprep.subr.mxu0 0.0
        %2419 = vmatpush2.msra.mxu0 0.0
        %2420 = vmatprep.subr.mxu0 0.0
        %2421 = vmatpush2.msra.mxu0 0.0
        %2422 = vmatprep.subr.mxu0 0.0
        %2423 = vmatpush2.msra.mxu0 0.0
        %2424 = vmatprep.subr.mxu0 0.0
        %2425 = vmatpush2.msra.mxu0 0.0
        %2426 = vmatprep.subr.mxu0 0.0
        %2427 = vmatpush2.msra.mxu0 0.0
        %2428 = vmatprep.subr.mxu0 0.0
        %2429 = vmatpush2.msra.mxu0 0.0
        %2430 = vmatprep.subr.mxu0 0.0
        %2431 = vmatpush2.msra.mxu0 0.0
        %2432 = vmatprep.mubr.f32.mxu0 0.0
        %2433 = vmatmul.mubr.f32.gmra.mxu0 %v2366
        %v2434 = vpop.f32.mrf.mxu0
        %v2435 = vadd.f32 0.0, %v2434
        %v2436 = vpop.f32.mrf.mxu0
        %2437 = vdwg.mxu0
        %v2438 = vadd.f32 %v2196, %v2435
        %2439 = vrot.lane.b32.xlu0 %v1714, 104
        %v2440 = vpop.permute.xlu0 %2439
        %2441 = vrot.lane.b32.xlu0 %v1714, 72
        %v2442 = vpop.permute.xlu0 %2441
        %v2443 = vsel %vm446, %v2440, 0
        %v2445 = vsel %vm446, %v2442, 0
        %2447 = vmatprep.subr.mxu0 0.0
        %2448 = vmatpush1.xpose.msra.mxu0 0.0
        %2449 = vmatprep.subr.mxu0 0.0
        %2450 = vmatpush1.xpose.msra.mxu0 0.0
        %2451 = vmatprep.subr.mxu0 0.0
        %2452 = vmatpush1.xpose.msra.mxu0 0.0
        %2453 = vmatprep.subr.mxu0 0.0
        %2454 = vmatpush1.xpose.msra.mxu0 0.0
        %2455 = vmatprep.subr.mxu0 0.0
        %2456 = vmatpush1.xpose.msra.mxu0 0.0
        %2457 = vmatprep.subr.mxu0 0.0
        %2458 = vmatpush1.xpose.msra.mxu0 0.0
        %2459 = vmatprep.subr.mxu0 0.0
        %2460 = vmatpush1.xpose.msra.mxu0 0.0
        %2461 = vmatprep.subr.mxu0 0.0
        %2462 = vmatpush1.xpose.msra.mxu0 0.0
        %2463 = vmatprep.subr.mxu0 0.0
        %2464 = vmatpush1.xpose.msra.mxu0 0.0
        %2465 = vmatprep.subr.mxu0 0.0
        %2466 = vmatpush1.xpose.msra.mxu0 0.0
        %2467 = vmatprep.subr.mxu0 0.0
        %2468 = vmatpush1.xpose.msra.mxu0 0.0
        %2469 = vmatprep.subr.mxu0 0.0
        %2470 = vmatpush1.xpose.msra.mxu0 0.0
        %2471 = vmatprep.subr.mxu0 0.0
        %2472 = vmatpush1.xpose.msra.mxu0 0.0
        %2473 = vmatprep.subr.mxu0 0.0
        %2474 = vmatpush1.xpose.msra.mxu0 0.0
        %2475 = vmatprep.subr.mxu0 0.0
        %2476 = vmatpush1.xpose.msra.mxu0 0.0
        %2477 = vmatprep.subr.mxu0 0.0
        %2478 = vmatpush1.xpose.msra.mxu0 %v2445
        %2479 = vmatprep.subr.mxu0 0.0
        %2480 = vmatpush2.xpose.msra.mxu0 0.0
        %2481 = vmatprep.subr.mxu0 0.0
        %2482 = vmatpush2.xpose.msra.mxu0 0.0
        %2483 = vmatprep.subr.mxu0 0.0
        %2484 = vmatpush2.xpose.msra.mxu0 0.0
        %2485 = vmatprep.subr.mxu0 0.0
        %2486 = vmatpush2.xpose.msra.mxu0 0.0
        %2487 = vmatprep.subr.mxu0 0.0
        %2488 = vmatpush2.xpose.msra.mxu0 0.0
        %2489 = vmatprep.subr.mxu0 0.0
        %2490 = vmatpush2.xpose.msra.mxu0 0.0
        %2491 = vmatprep.subr.mxu0 0.0
        %2492 = vmatpush2.xpose.msra.mxu0 0.0
        %2493 = vmatprep.subr.mxu0 0.0
        %2494 = vmatpush2.xpose.msra.mxu0 0.0
        %2495 = vmatprep.subr.mxu0 0.0
        %2496 = vmatpush2.xpose.msra.mxu0 0.0
        %2497 = vmatprep.subr.mxu0 0.0
        %2498 = vmatpush2.xpose.msra.mxu0 0.0
        %2499 = vmatprep.subr.mxu0 0.0
        %2500 = vmatpush2.xpose.msra.mxu0 0.0
        %2501 = vmatprep.subr.mxu0 0.0
        %2502 = vmatpush2.xpose.msra.mxu0 0.0
        %2503 = vmatprep.subr.mxu0 0.0
        %2504 = vmatpush2.xpose.msra.mxu0 0.0
        %2505 = vmatprep.subr.mxu0 0.0
        %2506 = vmatpush2.xpose.msra.mxu0 0.0
        %2507 = vmatprep.subr.mxu0 0.0
        %2508 = vmatpush2.xpose.msra.mxu0 0.0
        %2509 = vmatprep.subr.mxu0 0.0
        %2510 = vmatpush2.xpose.msra.mxu0 0.0
        %2511 = vmatprep.mubr.f32.mxu0 0.0
        %2512 = vmatmul.mubr.f32.gmra.mxu0 %v2443
        %v2513 = vpop.f32.mrf.mxu0
        %v2514 = vadd.f32 0.0, %v2513
        %v2515 = vpop.f32.mrf.mxu0
        %2516 = vdwg.mxu0
        %v2517 = vmul.f32 %v2514, 0.35355338
        %v2518 = vsel %vm446, %v2517, -inf
        %2519 = vmax.xlane.f32.xlu0 %v2518
        %v2520 = vpop.xlane.xlu0 %2519
        %v2521 = vsub.f32 %v2517, %v2520
        %v2522 = vmul.f32 %v2521, 1.442695
        %v2523 = vpow.pop %v2522
        %v2524 = vsel %vm446, %v2523, 0.0
        %2525 = vadd.xlane.f32.xlu0 %v2524
        %v2526 = vpop.xlane.xlu0 %2525
        %v2527 = vrcp.pop %v2526
        %v2528 = vmul.f32 %v2523, %v2527
        %2529 = vrot.lane.b32.xlu0 %v1714, 40
        %v2530 = vpop.permute.xlu0 %2529
        %v2533 = vsel %vm446, %v2528, 0
        %2535 = vmatprep.subr.mxu0 0.0
        %2536 = vmatpush1.msra.mxu0 0.0
        %2537 = vmatprep.subr.mxu0 0.0
        %2538 = vmatpush1.msra.mxu0 0.0
        %2539 = vmatprep.subr.mxu0 0.0
        %2540 = vmatpush1.msra.mxu0 0.0
        %2541 = vmatprep.subr.mxu0 0.0
        %2542 = vmatpush1.msra.mxu0 0.0
        %2543 = vmatprep.subr.mxu0 0.0
        %2544 = vmatpush1.msra.mxu0 0.0
        %2545 = vmatprep.subr.mxu0 0.0
        %2546 = vmatpush1.msra.mxu0 0.0
        %2547 = vmatprep.subr.mxu0 0.0
        %2548 = vmatpush1.msra.mxu0 0.0
        %2549 = vmatprep.subr.mxu0 0.0
        %2550 = vmatpush1.msra.mxu0 0.0
        %2551 = vmatprep.subr.mxu0 0.0
        %2552 = vmatpush1.msra.mxu0 0.0
        %2553 = vmatprep.subr.mxu0 0.0
        %2554 = vmatpush1.msra.mxu0 0.0
        %2555 = vmatprep.subr.mxu0 0.0
        %2556 = vmatpush1.msra.mxu0 0.0
        %2557 = vmatprep.subr.mxu0 0.0
        %2558 = vmatpush1.msra.mxu0 0.0
        %2559 = vmatprep.subr.mxu0 0.0
        %2560 = vmatpush1.msra.mxu0 0.0
        %2561 = vmatprep.subr.mxu0 0.0
        %2562 = vmatpush1.msra.mxu0 0.0
        %2563 = vmatprep.subr.mxu0 0.0
        %2564 = vmatpush1.msra.mxu0 0.0
        %2565 = vmatprep.subr.mxu0 0.0
        %2566 = vmatpush1.msra.mxu0 %v2530
        %2567 = vmatprep.subr.mxu0 0.0
        %2568 = vmatpush2.msra.mxu0 0.0
        %2569 = vmatprep.subr.mxu0 0.0
        %2570 = vmatpush2.msra.mxu0 0.0
        %2571 = vmatprep.subr.mxu0 0.0
        %2572 = vmatpush2.msra.mxu0 0.0
        %2573 = vmatprep.subr.mxu0 0.0
        %2574 = vmatpush2.msra.mxu0 0.0
        %2575 = vmatprep.subr.mxu0 0.0
        %2576 = vmatpush2.msra.mxu0 0.0
        %2577 = vmatprep.subr.mxu0 0.0
        %2578 = vmatpush2.msra.mxu0 0.0
        %2579 = vmatprep.subr.mxu0 0.0
        %2580 = vmatpush2.msra.mxu0 0.0
        %2581 = vmatprep.subr.mxu0 0.0
        %2582 = vmatpush2.msra.mxu0 0.0
        %2583 = vmatprep.subr.mxu0 0.0
        %2584 = vmatpush2.msra.mxu0 0.0
        %2585 = vmatprep.subr.mxu0 0.0
        %2586 = vmatpush2.msra.mxu0 0.0
        %2587 = vmatprep.subr.mxu0 0.0
        %2588 = vmatpush2.msra.mxu0 0.0
        %2589 = vmatprep.subr.mxu0 0.0
        %2590 = vmatpush2.msra.mxu0 0.0
        %2591 = vmatprep.subr.mxu0 0.0
        %2592 = vmatpush2.msra.mxu0 0.0
        %2593 = vmatprep.subr.mxu0 0.0
        %2594 = vmatpush2.msra.mxu0 0.0
        %2595 = vmatprep.subr.mxu0 0.0
        %2596 = vmatpush2.msra.mxu0 0.0
        %2597 = vmatprep.subr.mxu0 0.0
        %2598 = vmatpush2.msra.mxu0 0.0
        %2599 = vmatprep.mubr.f32.mxu0 0.0
        %2600 = vmatmul.mubr.f32.gmra.mxu0 %v2533
        %v2601 = vpop.f32.mrf.mxu0
        %v2602 = vadd.f32 0.0, %v2601
        %v2603 = vpop.f32.mrf.mxu0
        %2604 = vdwg.mxu0
        %v2606 = vsel %vm446, %v2602, 0
        %2608 = vmatprep.subr.mxu0 0.0
        %2609 = vmatpush1.msra.mxu0 0.0
        %2610 = vmatprep.subr.mxu0 0.0
        %2611 = vmatpush1.msra.mxu0 0.0
        %2612 = vmatprep.subr.mxu0 0.0
        %2613 = vmatpush1.msra.mxu0 0.0
        %2614 = vmatprep.subr.mxu0 0.0
        %2615 = vmatpush1.msra.mxu0 0.0
        %2616 = vmatprep.subr.mxu0 0.0
        %2617 = vmatpush1.msra.mxu0 0.0
        %2618 = vmatprep.subr.mxu0 0.0
        %2619 = vmatpush1.msra.mxu0 0.0
        %2620 = vmatprep.subr.mxu0 0.0
        %2621 = vmatpush1.msra.mxu0 0.0
        %2622 = vmatprep.subr.mxu0 0.0
        %2623 = vmatpush1.msra.mxu0 0.0
        %2624 = vmatprep.subr.mxu0 0.0
        %2625 = vmatpush1.msra.mxu0 0.0
        %2626 = vmatprep.subr.mxu0 0.0
        %2627 = vmatpush1.msra.mxu0 0.0
        %2628 = vmatprep.subr.mxu0 0.0
        %2629 = vmatpush1.msra.mxu0 0.0
        %2630 = vmatprep.subr.mxu0 0.0
        %2631 = vmatpush1.msra.mxu0 0.0
        %2632 = vmatprep.subr.mxu0 0.0
        %2633 = vmatpush1.msra.mxu0 0.0
        %2634 = vmatprep.subr.mxu0 0.0
        %2635 = vmatpush1.msra.mxu0 0.0
        %2636 = vmatprep.subr.mxu0 0.0
        %2637 = vmatpush1.msra.mxu0 0.0
        %2638 = vmatprep.subr.mxu0 0.0
        %2639 = vmatpush1.msra.mxu0 %v1721
        %2640 = vmatprep.subr.mxu0 0.0
        %2641 = vmatpush2.msra.mxu0 0.0
        %2642 = vmatprep.subr.mxu0 0.0
        %2643 = vmatpush2.msra.mxu0 0.0
        %2644 = vmatprep.subr.mxu0 0.0
        %2645 = vmatpush2.msra.mxu0 0.0
        %2646 = vmatprep.subr.mxu0 0.0
        %2647 = vmatpush2.msra.mxu0 0.0
        %2648 = vmatprep.subr.mxu0 0.0
        %2649 = vmatpush2.msra.mxu0 0.0
        %2650 = vmatprep.subr.mxu0 0.0
        %2651 = vmatpush2.msra.mxu0 0.0
        %2652 = vmatprep.subr.mxu0 0.0
        %2653 = vmatpush2.msra.mxu0 0.0
        %2654 = vmatprep.subr.mxu0 0.0
        %2655 = vmatpush2.msra.mxu0 0.0
        %2656 = vmatprep.subr.mxu0 0.0
        %2657 = vmatpush2.msra.mxu0 0.0
        %2658 = vmatprep.subr.mxu0 0.0
        %2659 = vmatpush2.msra.mxu0 0.0
        %2660 = vmatprep.subr.mxu0 0.0
        %2661 = vmatpush2.msra.mxu0 0.0
        %2662 = vmatprep.subr.mxu0 0.0
        %2663 = vmatpush2.msra.mxu0 0.0
        %2664 = vmatprep.subr.mxu0 0.0
        %2665 = vmatpush2.msra.mxu0 0.0
        %2666 = vmatprep.subr.mxu0 0.0
        %2667 = vmatpush2.msra.mxu0 0.0
        %2668 = vmatprep.subr.mxu0 0.0
        %2669 = vmatpush2.msra.mxu0 0.0
        %2670 = vmatprep.subr.mxu0 0.0
        %2671 = vmatpush2.msra.mxu0 0.0
        %2672 = vmatprep.mubr.f32.mxu0 0.0
        %2673 = vmatmul.mubr.f32.gmra.mxu0 %v2606
        %v2674 = vpop.f32.mrf.mxu0
        %v2675 = vadd.f32 0.0, %v2674
        %v2676 = vpop.f32.mrf.mxu0
        %2677 = vdwg.mxu0
        %v2678 = vadd.f32 %v2438, %v2675
        %v2679 = vadd.f32 %v1605, %v2678
        %v2680 = vlaneseq
        %v2681 = vshrl.u32 %v2680, 7
        %v2682 = vsub.s32 2, %v2681
        %v2683 = vrot.slane %v1607, %v2682
        %v2684 = vadd.f32 %v2679, %v2683
        %v2685 = vsel %vm330, %v2684, 0.0
        %2686 = vadd.xlane.f32.xlu0 %v2685
        %v2687 = vpop.xlane.xlu0 %2686
        %v2688 = vmul.f32 %v2687, %v334
        %v2689 = vsub.f32 %v2684, %v2688
        %v2690 = vmul.f32 %v2689, %v2689
        %v2691 = vsel %vm330, %v2690, 0.0
        %2692 = vadd.xlane.f32.xlu0 %v2691
        %v2693 = vpop.xlane.xlu0 %2692
        %v2694 = vmul.f32 %v2693, %v334
        %v2695 = vadd.f32 %v2694, 1e-06
        %v2696 = vrsqrt.pop %v2695
        %v2697 = vmul.f32 %v2689, %v2696
        %v2698 = vlaneseq
        %v2699 = vshrl.u32 %v2698, 7
        %v2700 = vsub.s32 3, %v2699
        %v2701 = vrot.slane %v1607, %v2700
        %v2702 = vmul.f32 %v2697, %v2701
        %v2703 = vlaneseq
        %v2704 = vshrl.u32 %v2703, 7
        %v2705 = vsub.s32 4, %v2704
        %v2706 = vrot.slane %v1607, %v2705
        %v2707 = vadd.f32 %v2702, %v2706
        %s2708 = scalar_lea.vmem %s4, 32
        %v2709 = vld [vmem:[%s2708] sm:$0xff]
        %v2710 = vld [vmem:[%s2708 + $0x8] sm:$0xff]
        %v2711 = vld [vmem:[%s2708 + $0x10] sm:$0xff]
        %v2712 = vld [vmem:[%s2708 + $0x18] sm:$0xff]
        %s2713 = scalar_lea.vmem %s5, 1
        %v2714 = vld [vmem:[%s2713] sm:$0x1]
        %v2716 = vlaneseq
        %v2717 = vshrl.u32 %v2716, 7
        %v2718 = vsub.s32 0, %v2717
        %v2719 = vrot.slane %v2714, %v2718
        %v2722 = vsel %vm330, %v2707, 0
        %2724 = vmatprep.subr.mxu0 0.0
        %2725 = vmatpush1.msra.mxu0 0.0
        %2726 = vmatprep.subr.mxu0 0.0
        %2727 = vmatpush1.msra.mxu0 0.0
        %2728 = vmatprep.subr.mxu0 0.0
        %2729 = vmatpush1.msra.mxu0 0.0
        %2730 = vmatprep.subr.mxu0 0.0
        %2731 = vmatpush1.msra.mxu0 0.0
        %2732 = vmatprep.subr.mxu0 0.0
        %2733 = vmatpush1.msra.mxu0 0.0
        %2734 = vmatprep.subr.mxu0 0.0
        %2735 = vmatpush1.msra.mxu0 0.0
        %2736 = vmatprep.subr.mxu0 0.0
        %2737 = vmatpush1.msra.mxu0 0.0
        %2738 = vmatprep.subr.mxu0 0.0
        %2739 = vmatpush1.msra.mxu0 0.0
        %2740 = vmatprep.subr.mxu0 0.0
        %2741 = vmatpush1.msra.mxu0 0.0
        %2742 = vmatprep.subr.mxu0 0.0
        %2743 = vmatpush1.msra.mxu0 0.0
        %2744 = vmatprep.subr.mxu0 0.0
        %2745 = vmatpush1.msra.mxu0 0.0
        %2746 = vmatprep.subr.mxu0 0.0
        %2747 = vmatpush1.msra.mxu0 0.0
        %2748 = vmatprep.subr.mxu0 0.0
        %2749 = vmatpush1.msra.mxu0 %v2712
        %2750 = vmatprep.subr.mxu0 0.0
        %2751 = vmatpush1.msra.mxu0 %v2711
        %2752 = vmatprep.subr.mxu0 0.0
        %2753 = vmatpush1.msra.mxu0 %v2710
        %2754 = vmatprep.subr.mxu0 0.0
        %2755 = vmatpush1.msra.mxu0 %v2709
        %2756 = vmatprep.subr.mxu0 0.0
        %2757 = vmatpush2.msra.mxu0 0.0
        %2758 = vmatprep.subr.mxu0 0.0
        %2759 = vmatpush2.msra.mxu0 0.0
        %2760 = vmatprep.subr.mxu0 0.0
        %2761 = vmatpush2.msra.mxu0 0.0
        %2762 = vmatprep.subr.mxu0 0.0
        %2763 = vmatpush2.msra.mxu0 0.0
        %2764 = vmatprep.subr.mxu0 0.0
        %2765 = vmatpush2.msra.mxu0 0.0
        %2766 = vmatprep.subr.mxu0 0.0
        %2767 = vmatpush2.msra.mxu0 0.0
        %2768 = vmatprep.subr.mxu0 0.0
        %2769 = vmatpush2.msra.mxu0 0.0
        %2770 = vmatprep.subr.mxu0 0.0
        %2771 = vmatpush2.msra.mxu0 0.0
        %2772 = vmatprep.subr.mxu0 0.0
        %2773 = vmatpush2.msra.mxu0 0.0
        %2774 = vmatprep.subr.mxu0 0.0
        %2775 = vmatpush2.msra.mxu0 0.0
        %2776 = vmatprep.subr.mxu0 0.0
        %2777 = vmatpush2.msra.mxu0 0.0
        %2778 = vmatprep.subr.mxu0 0.0
        %2779 = vmatpush2.msra.mxu0 0.0
        %2780 = vmatprep.subr.mxu0 0.0
        %2781 = vmatpush2.msra.mxu0 0.0
        %2782 = vmatprep.subr.mxu0 0.0
        %2783 = vmatpush2.msra.mxu0 0.0
        %2784 = vmatprep.subr.mxu0 0.0
        %2785 = vmatpush2.msra.mxu0 0.0
        %2786 = vmatprep.subr.mxu0 0.0
        %2787 = vmatpush2.msra.mxu0 0.0
        %2788 = vmatprep.mubr.f32.mxu0 0.0
        %2789 = vmatmul.mubr.f32.gmra.mxu0 %v2722
        %v2790 = vpop.f32.mrf.mxu0
        %v2791 = vadd.f32 %v2719, %v2790
        %v2792 = vpop.f32.mrf.mxu0
        %2793 = vdwg.mxu0
        %v2794 = vmul.f32 %v2791, 0.5
        %v2795 = vmul.f32 %v2791, 0.70710677
        %v2796 = verf.f32.pop %v2795
        %v2797 = vadd.f32 %v2796, 1.0
        %v2798 = vmul.f32 %v2794, %v2797
        %s2799 = scalar_lea.vmem %s6, 64
        %v2800 = vld [vmem:[%s2799] sm:$0xff]
        %v2801 = vld [vmem:[%s2799 + $0x8] sm:$0xff]
        %v2802 = vld [vmem:[%s2799 + $0x10] sm:$0xff]
        %v2803 = vld [vmem:[%s2799 + $0x18] sm:$0xff]
        %v2804 = vld [vmem:[%s2799 + $0x20] sm:$0xff]
        %v2805 = vld [vmem:[%s2799 + $0x28] sm:$0xff]
        %v2806 = vld [vmem:[%s2799 + $0x30] sm:$0xff]
        %v2807 = vld [vmem:[%s2799 + $0x38] sm:$0xff]
        %v2808 = vlaneseq
        %v2809 = vshrl.u32 %v2808, 7
        %v2810 = vsub.s32 5, %v2809
        %v2811 = vrot.slane %v1607, %v2810
        %v2813 = vsel %vm1531, %v2798, 0
        %2815 = vmatprep.subr.mxu0 0.0
        %2816 = vmatpush1.msra.mxu0 0.0
        %2817 = vmatprep.subr.mxu0 0.0
        %2818 = vmatpush1.msra.mxu0 0.0
        %2819 = vmatprep.subr.mxu0 0.0
        %2820 = vmatpush1.msra.mxu0 0.0
        %2821 = vmatprep.subr.mxu0 0.0
        %2822 = vmatpush1.msra.mxu0 0.0
        %2823 = vmatprep.subr.mxu0 0.0
        %2824 = vmatpush1.msra.mxu0 0.0
        %2825 = vmatprep.subr.mxu0 0.0
        %2826 = vmatpush1.msra.mxu0 0.0
        %2827 = vmatprep.subr.mxu0 0.0
        %2828 = vmatpush1.msra.mxu0 0.0
        %2829 = vmatprep.subr.mxu0 0.0
        %2830 = vmatpush1.msra.mxu0 0.0
        %2831 = vmatprep.subr.mxu0 0.0
        %2832 = vmatpush1.msra.mxu0 %v2807
        %2833 = vmatprep.subr.mxu0 0.0
        %2834 = vmatpush1.msra.mxu0 %v2806
        %2835 = vmatprep.subr.mxu0 0.0
        %2836 = vmatpush1.msra.mxu0 %v2805
        %2837 = vmatprep.subr.mxu0 0.0
        %2838 = vmatpush1.msra.mxu0 %v2804
        %2839 = vmatprep.subr.mxu0 0.0
        %2840 = vmatpush1.msra.mxu0 %v2803
        %2841 = vmatprep.subr.mxu0 0.0
        %2842 = vmatpush1.msra.mxu0 %v2802
        %2843 = vmatprep.subr.mxu0 0.0
        %2844 = vmatpush1.msra.mxu0 %v2801
        %2845 = vmatprep.subr.mxu0 0.0
        %2846 = vmatpush1.msra.mxu0 %v2800
        %2847 = vmatprep.subr.mxu0 0.0
        %2848 = vmatpush2.msra.mxu0 0.0
        %2849 = vmatprep.subr.mxu0 0.0
        %2850 = vmatpush2.msra.mxu0 0.0
        %2851 = vmatprep.subr.mxu0 0.0
        %2852 = vmatpush2.msra.mxu0 0.0
        %2853 = vmatprep.subr.mxu0 0.0
        %2854 = vmatpush2.msra.mxu0 0.0
        %2855 = vmatprep.subr.mxu0 0.0
        %2856 = vmatpush2.msra.mxu0 0.0
        %2857 = vmatprep.subr.mxu0 0.0
        %2858 = vmatpush2.msra.mxu0 0.0
        %2859 = vmatprep.subr.mxu0 0.0
        %2860 = vmatpush2.msra.mxu0 0.0
        %2861 = vmatprep.subr.mxu0 0.0
        %2862 = vmatpush2.msra.mxu0 0.0
        %2863 = vmatprep.subr.mxu0 0.0
        %2864 = vmatpush2.msra.mxu0 0.0
        %2865 = vmatprep.subr.mxu0 0.0
        %2866 = vmatpush2.msra.mxu0 0.0
        %2867 = vmatprep.subr.mxu0 0.0
        %2868 = vmatpush2.msra.mxu0 0.0
        %2869 = vmatprep.subr.mxu0 0.0
        %2870 = vmatpush2.msra.mxu0 0.0
        %2871 = vmatprep.subr.mxu0 0.0
        %2872 = vmatpush2.msra.mxu0 0.0
        %2873 = vmatprep.subr.mxu0 0.0
        %2874 = vmatpush2.msra.mxu0 0.0
        %2875 = vmatprep.subr.mxu0 0.0
        %2876 = vmatpush2.msra.mxu0 0.0
        %2877 = vmatprep.subr.mxu0 0.0
        %2878 = vmatpush2.msra.mxu0 0.0
        %2879 = vmatprep.mubr.f32.mxu0 0.0
        %2880 = vmatmul.mubr.f32.gmra.mxu0 %v2813
        %v2881 = vpop.f32.mrf.mxu0
        %v2882 = vadd.f32 %v2811, %v2881
        %v2883 = vpop.f32.mrf.mxu0
        %2884 = vdwg.mxu0
        %v2885 = vadd.f32 %v2684, %v2882
        %v2886 = vld [vmem:[%s8] sm:$0x3]
        %v2887 = vsel %vm330, %v2885, 0.0
        %2888 = vadd.xlane.f32.xlu0 %v2887
        %v2889 = vpop.xlane.xlu0 %2888
        %v2890 = vmul.f32 %v2889, %v334
        %v2891 = vsub.f32 %v2885, %v2890
        %v2892 = vmul.f32 %v2891, %v2891
        %v2893 = vsel %vm330, %v2892, 0.0
        %2894 = vadd.xlane.f32.xlu0 %v2893
        %v2895 = vpop.xlane.xlu0 %2894
        %v2896 = vmul.f32 %v2895, %v334
        %v2897 = vadd.f32 %v2896, 1e-06
        %v2898 = vrsqrt.pop %v2897
        %v2899 = vmul.f32 %v2891, %v2898
        %v2900 = vlaneseq
        %v2901 = vshrl.u32 %v2900, 7
        %v2902 = vsub.s32 0, %v2901
        %v2903 = vrot.slane %v2886, %v2902
        %v2904 = vmul.f32 %v2899, %v2903
        %v2905 = vlaneseq
        %v2906 = vshrl.u32 %v2905, 7
        %v2907 = vsub.s32 1, %v2906
        %v2908 = vrot.slane %v2886, %v2907
        %v2909 = vadd.f32 %v2904, %v2908
        %2910 = vst.msk [vmem:[%s323] sm:$0xff] %vm330, %v2909
        %s2911 = sand.u32 %s225, 1
        %s2912 = scalar_lea.sflag [#allocation3], %s2911
        %s2913 = sand.u32 %s225, 1
        %s2914 = smul.addr %s2913, 8
        %s2915 = scalar_lea.vmem [#allocation2], %s2914
        // Predicated region
        $region57: #{encoder_forward.1} parent=55 // pred_check
          %p2916 = pneg %p235
        $region58: #{encoder_forward.1} parent=55 // pred_check_branch
          %2918 = sbr.rel (%p2916) target = $region60
        $region59: #{encoder_forward.1} parent=55 // pred_region
          %s2920 = ssub.s32 128, 128
          %2921 = vsyncadd %s2912, %s2920
          %s2922 = smul.addr %s23, 128
          %s2923 = scalar_lea.hbm %s9, %s2922
          %s2925 = sshll.u32 %s2915, 4
          %s2926 = int_to_ptr.vmem [resolvable:$true] %s2925
          %2928 = dma.vmem_to_hbm [thread:$0]  %s2926, 128, %s2923, %s2912
        $region60: #{encoder_forward.1} parent=55 // pred_fallthru
          _
      $region56: #{encoder_forward.1} parent=5 // pred_fallthru
        _
      %p2929 = scmp.le.s32.totalorder 2, %s18
      // Predicated region
      $region61: #{encoder_forward.1} parent=5 // pred_check
        %p2930 = pneg %p2929
      $region62: #{encoder_forward.1} parent=5 // pred_check_branch
        %2932 = sbr.rel (%p2930) target = $region64
      $region63: #{encoder_forward.1} parent=5 // pred_region
        %s2933 = ssub.s32 %s18, 2
        // Predicated region
        $region65: #{encoder_forward.1} parent=63 // pred_check
          %p2934 = pneg %p241
        $region66: #{encoder_forward.1} parent=63 // pred_check_branch
          %2936 = sbr.rel (%p2934) target = $region68
        $region67: #{encoder_forward.1} parent=63 // pred_region
          %s2937 = sand.u32 %s226, 1
          %s2938 = scalar_lea.sflag [#allocation3], %s2937
          %s2939 = sand.u32 %s226, 1
          %s2940 = smul.addr %s2939, 8
          %s2941 = scalar_lea.vmem [#allocation2], %s2940
          %2942 = dma.done %s2938, 128
        $region68: #{encoder_forward.1} parent=63 // pred_fallthru
          _
      $region64: #{encoder_forward.1} parent=5 // pred_fallthru
        _
    $region6: #{encoder_forward.1} parent=1 // loop_footer
      %s22 = sadd.s32 1, %s18
    $region7: #{encoder_forward.1} parent=1 // loop_footer_branch
      %17 = sbr.rel target = $region3
    $region8: #{encoder_forward.1} parent=1 // loop_exit
      _
    %2943 = vsyncpa [#allocation3], 1
    %s2944 = scalar_lea.sflag [#allocation3], 1
    %2945 = vsyncpa %s2944, 1

</llo_original>
